<compile_context>
chip_gen: v5e
topology: v5e:2x2
jax: 0.10.0
libtpu: 0.0.40
codegen_flags: <defaults>
</compile_context>

<pallas_src>
import math
import jax
import jax.numpy as jnp
from jax.experimental import pallas as pl
from jax.experimental.pallas import tpu as pltpu

# ----------------------------- config (tiny ViT) -----------------------------
IMG = 16            # spatial size
PATCH = 4           # patch size -> 4x4 = 16 patches
IN_CHANS = 3
EMBED = 32          # vit embed_dim
DEPTH = 2
HEADS = 4
MLP_HIDDEN = 64     # mlp_ratio = 2
PROJ_DIM = 32       # CFG.projection_dim
NP = (IMG // PATCH) ** 2        # 16 patches
T = NP + 1                      # 17 tokens (cls + patches)
T_PAD = 32                      # token axis padded: multiple of 16 (bf16 sublane pack)
DH = EMBED // HEADS             # 8
PF = IN_CHANS * PATCH * PATCH   # 48 flattened patch features
VIT_LN_EPS = 1e-6               # timm ViT LayerNorm eps
HEAD_LN_EPS = 1e-5              # nn.LayerNorm default eps
MM_DTYPE = jnp.bfloat16         # MXU operand dtype (f32 accumulation everywhere)


# ----------------------------- in-kernel helpers ------------------------------
def _layernorm(x, g, b, eps):
    # stats in f32 (x is f32 throughout the resident slab)
    mu = jnp.mean(x, axis=-1, keepdims=True)
    xc = x - mu
    var = jnp.mean(xc * xc, axis=-1, keepdims=True)
    return xc * jax.lax.rsqrt(var + eps) * g + b


def _gelu(x):
    # tanh-form GELU: one EUP tanh + a few VPU ops.
    # TODO(synk): swap in exact-erf GELU if strict parity with nn.GELU() goldens is required.
    c = math.sqrt(2.0 / math.pi)
    return 0.5 * x * (1.0 + jnp.tanh(c * (x + 0.044715 * x * x * x)))


def _linear(x, w, b):
    # w is already bf16 (cast in wrapper); accumulate in f32 on the MXU.
    y = jnp.dot(x.astype(MM_DTYPE), w, preferred_element_type=jnp.float32)
    return y + b


def _attn_proj(x_ln, qkv_w, qkv_b, proj_w, proj_b, key_mask):
    """Multi-head scaled-dot-product attention + output projection for one image.
    The per-head concat + proj is fused as acc += o_h @ proj_w[h*DH:(h+1)*DH, :]."""
    qkv = _linear(x_ln, qkv_w, qkv_b)                  # [T_PAD, 3E] f32
    scale = 1.0 / math.sqrt(DH)
    acc = jnp.zeros((T_PAD, EMBED), jnp.float32)
    for h in range(HEADS):                             # static unroll (HEADS = 4)
        q = (qkv[:, h * DH:(h + 1) * DH] * scale).astype(MM_DTYPE)
        k = qkv[:, EMBED + h * DH: EMBED + (h + 1) * DH].astype(MM_DTYPE)
        v = qkv[:, 2 * EMBED + h * DH: 2 * EMBED + (h + 1) * DH].astype(MM_DTYPE)
        s = jax.lax.dot_general(q, k, (((1,), (1,)), ((), ())),
                                preferred_element_type=jnp.float32)   # [T_PAD, T_PAD]
        s = jnp.where(key_mask, s, -1e30)              # mask padded key positions
        s = s - jnp.max(s, axis=-1, keepdims=True)
        p = jnp.exp(s)
        p = p * pl.reciprocal(jnp.sum(p, axis=-1, keepdims=True), approx=True)
        o_h = jnp.dot(p.astype(MM_DTYPE), v, preferred_element_type=jnp.float32)  # [T_PAD, DH]
        acc = acc + jnp.dot(o_h.astype(MM_DTYPE), proj_w[h * DH:(h + 1) * DH, :],
                            preferred_element_type=jnp.float32)
    return acc + proj_b


# ----------------------------- the fused kernel --------------------------------
def _encoder_kernel(*refs):
    patches_ref, patch_w_ref, tok_bias_ref = refs[:3]
    blk_refs = [refs[3 + d * 12: 3 + (d + 1) * 12] for d in range(DEPTH)]
    i0 = 3 + 12 * DEPTH
    norm_g_ref, norm_b_ref = refs[i0], refs[i0 + 1]
    p1w_ref, p1b_ref, p2w_ref, p2b_ref, hg_ref, hb_ref = refs[i0 + 2: i0 + 8]
    o_ref = refs[i0 + 8]

    key_mask = jax.lax.broadcasted_iota(jnp.int32, (1, T_PAD), 1) < T

    # patch embedding; tok_bias already holds patch_bias + pos_embed (+ cls on row 0),
    # and is exactly zero on the padded rows (so padded rows start at 0).
    x = jnp.dot(patches_ref[0].astype(MM_DTYPE), patch_w_ref[...],
                preferred_element_type=jnp.float32) + tok_bias_ref[...]   # [T_PAD, E]

    for (ln1g, ln1b, qkvw, qkvb, projw, projb,
         ln2g, ln2b, fc1w, fc1b, fc2w, fc2b) in blk_refs:
        # attention branch
        h = _layernorm(x, ln1g[...], ln1b[...], VIT_LN_EPS)
        x = x + _attn_proj(h, qkvw[...], qkvb[...], projw[...], projb[...], key_mask)
        # MLP branch
        h = _layernorm(x, ln2g[...], ln2b[...], VIT_LN_EPS)
        h = _gelu(_linear(h, fc1w[...], fc1b[...]))
        x = x + _linear(h, fc2w[...], fc2b[...])

    x = _layernorm(x, norm_g_ref[...], norm_b_ref[...], VIT_LN_EPS)

    # projection head (dropout = identity at inference)
    h = _gelu(_linear(x, p1w_ref[...], p1b_ref[...]))
    h = _linear(h, p2w_ref[...], p2b_ref[...])
    h = _layernorm(h, hg_ref[...], hb_ref[...], HEAD_LN_EPS)

    o_ref[0] = h[:T, :].astype(o_ref.dtype)


# ----------------------------- host-side wrapper --------------------------------
def _const_spec(a):
    nd = a.ndim
    return pl.BlockSpec(a.shape, lambda b, _n=nd: (0,) * _n)


def image_encoder_forward(images, params):
    B = images.shape[0]
    p = PATCH

    # patch extraction (tiny XLA glue): NCHW -> [B, NP, C*p*p] with (C, ph, pw) order,
    # pre-padded to T_PAD rows (row 0 = cls slot, rows >= T = padding) so the in-kernel
    # matmul produces the full token slab in one shot.
    xp = images.reshape(B, IN_CHANS, IMG // p, p, IMG // p, p)
    xp = xp.transpose(0, 2, 4, 1, 3, 5).reshape(B, NP, PF)
    patches = jnp.zeros((B, T_PAD, PF), jnp.float32).at[:, 1:T, :].set(xp)

    vit, head = params["vit"], params["head"]

    def w(a):       # matmul weights -> bf16 MXU operands
        return a.astype(MM_DTYPE)

    def r2(a):      # 1-D params -> [1, N] f32
        return a.reshape(1, -1).astype(jnp.float32)

    # fold patch bias + cls token + pos embed into one [T_PAD, E] slab (zeros on pad rows)
    pos = vit["pos_embed"].reshape(T, EMBED)
    tok_bias = jnp.zeros((T_PAD, EMBED), jnp.float32)
    tok_bias = tok_bias.at[0, :].set(vit["cls_token"].reshape(EMBED) + pos[0])
    tok_bias = tok_bias.at[1:T, :].set(vit["patch_b"].reshape(1, EMBED) + pos[1:])

    args = [patches, w(vit["patch_w"]), tok_bias]
    for blk in vit["blocks"]:
        args += [r2(blk["ln1_g"]), r2(blk["ln1_b"]),
                 w(blk["qkv_w"]), r2(blk["qkv_b"]),
                 w(blk["proj_w"]), r2(blk["proj_b"]),
                 r2(blk["ln2_g"]), r2(blk["ln2_b"]),
                 w(blk["fc1_w"]), r2(blk["fc1_b"]),
                 w(blk["fc2_w"]), r2(blk["fc2_b"])]
    args += [r2(vit["norm_g"]), r2(vit["norm_b"])]
    args += [w(head["p1_w"]), r2(head["p1_b"]),
             w(head["p2_w"]), r2(head["p2_b"]),
             r2(head["ln_g"]), r2(head["ln_b"])]

    in_specs = ([pl.BlockSpec((1, T_PAD, PF), lambda b: (b, 0, 0))] +
                [_const_spec(a) for a in args[1:]])

    return pl.pallas_call(
        _encoder_kernel,
        out_shape=jax.ShapeDtypeStruct((B, T, PROJ_DIM), jnp.float32),
        grid=(B,),
        in_specs=in_specs,
        out_specs=pl.BlockSpec((1, T, PROJ_DIM), lambda b: (b, 0, 0)),
        compiler_params=pltpu.CompilerParams(
            # v7x: shard the batch across both TensorCores (no-op on v5e/v6e).
            dimension_semantics=("parallel",),
            # total resident state here is < 1 MiB; cap well under v7x's 64 MiB VMEM.
            vmem_limit_bytes=32 * 1024 * 1024,
        ),
    )(*args)


# ----------------------------- deterministic params ---------------------------
def init_params(key):
    def nrm(k, shape, std=0.02):
        return (std * jax.random.normal(k, shape)).astype(jnp.float32)

    keys = iter(jax.random.split(key, 64))
    vit = {
        "patch_w": nrm(next(keys), (PF, EMBED)),
        "patch_b": jnp.zeros((EMBED,), jnp.float32),
        "cls_token": nrm(next(keys), (1, 1, EMBED)),
        "pos_embed": nrm(next(keys), (1, T, EMBED)),
        "norm_g": jnp.ones((EMBED,), jnp.float32),
        "norm_b": jnp.zeros((EMBED,), jnp.float32),
        "blocks": [],
    }
    for _ in range(DEPTH):
        vit["blocks"].append({
            "ln1_g": jnp.ones((EMBED,), jnp.float32),
            "ln1_b": jnp.zeros((EMBED,), jnp.float32),
            "qkv_w": nrm(next(keys), (EMBED, 3 * EMBED)),
            "qkv_b": jnp.zeros((3 * EMBED,), jnp.float32),
            "proj_w": nrm(next(keys), (EMBED, EMBED)),
            "proj_b": jnp.zeros((EMBED,), jnp.float32),
            "ln2_g": jnp.ones((EMBED,), jnp.float32),
            "ln2_b": jnp.zeros((EMBED,), jnp.float32),
            "fc1_w": nrm(next(keys), (EMBED, MLP_HIDDEN)),
            "fc1_b": jnp.zeros((MLP_HIDDEN,), jnp.float32),
            "fc2_w": nrm(next(keys), (MLP_HIDDEN, EMBED)),
            "fc2_b": jnp.zeros((EMBED,), jnp.float32),
        })
    head = {
        "p1_w": nrm(next(keys), (EMBED, PROJ_DIM)),
        "p1_b": jnp.zeros((PROJ_DIM,), jnp.float32),
        "p2_w": nrm(next(keys), (PROJ_DIM, PROJ_DIM)),
        "p2_b": jnp.zeros((PROJ_DIM,), jnp.float32),
        "ln_g": jnp.ones((PROJ_DIM,), jnp.float32),
        "ln_b": jnp.zeros((PROJ_DIM,), jnp.float32),
    }
    return {"vit": vit, "head": head}


# ----------------------------------- main --------------------------------------
if __name__ == "__main__":
    key = jax.random.PRNGKey(0)
    k_img, k_par = jax.random.split(key)
    images = jax.random.normal(k_img, (2, IN_CHANS, IMG, IMG), dtype=jnp.float32)
    params = init_params(k_par)

    out = jax.jit(image_encoder_forward)(images, params)
    out = jax.block_until_ready(out)

    expected_shape = (2, T, PROJ_DIM)
    assert out.shape == expected_shape, (out.shape, expected_shape)
    assert jnp.all(jnp.isfinite(out))
    # TODO(synk): the real module loads pretrained timm ViT weights; here the backbone
    # is a structurally-faithful tiny ViT with deterministic synthetic parameters.
    print("KERNEL_OK")
</pallas_src>

<mosaic_0001>
module attributes {stable_mosaic.version = 11 : i64} {
  func.func @_encoder_kernel(%arg0: i32, %arg1: memref<1x32x48xf32, #tpu.memory_space<vmem>>, %arg2: memref<48x32xbf16, #tpu.memory_space<vmem>>, %arg3: memref<32x32xf32, #tpu.memory_space<vmem>>, %arg4: memref<1x32xf32, #tpu.memory_space<vmem>>, %arg5: memref<1x32xf32, #tpu.memory_space<vmem>>, %arg6: memref<32x96xbf16, #tpu.memory_space<vmem>>, %arg7: memref<1x96xf32, #tpu.memory_space<vmem>>, %arg8: memref<32x32xbf16, #tpu.memory_space<vmem>>, %arg9: memref<1x32xf32, #tpu.memory_space<vmem>>, %arg10: memref<1x32xf32, #tpu.memory_space<vmem>>, %arg11: memref<1x32xf32, #tpu.memory_space<vmem>>, %arg12: memref<32x64xbf16, #tpu.memory_space<vmem>>, %arg13: memref<1x64xf32, #tpu.memory_space<vmem>>, %arg14: memref<64x32xbf16, #tpu.memory_space<vmem>>, %arg15: memref<1x32xf32, #tpu.memory_space<vmem>>, %arg16: memref<1x32xf32, #tpu.memory_space<vmem>>, %arg17: memref<1x32xf32, #tpu.memory_space<vmem>>, %arg18: memref<32x96xbf16, #tpu.memory_space<vmem>>, %arg19: memref<1x96xf32, #tpu.memory_space<vmem>>, %arg20: memref<32x32xbf16, #tpu.memory_space<vmem>>, %arg21: memref<1x32xf32, #tpu.memory_space<vmem>>, %arg22: memref<1x32xf32, #tpu.memory_space<vmem>>, %arg23: memref<1x32xf32, #tpu.memory_space<vmem>>, %arg24: memref<32x64xbf16, #tpu.memory_space<vmem>>, %arg25: memref<1x64xf32, #tpu.memory_space<vmem>>, %arg26: memref<64x32xbf16, #tpu.memory_space<vmem>>, %arg27: memref<1x32xf32, #tpu.memory_space<vmem>>, %arg28: memref<1x32xf32, #tpu.memory_space<vmem>>, %arg29: memref<1x32xf32, #tpu.memory_space<vmem>>, %arg30: memref<32x32xbf16, #tpu.memory_space<vmem>>, %arg31: memref<1x32xf32, #tpu.memory_space<vmem>>, %arg32: memref<32x32xbf16, #tpu.memory_space<vmem>>, %arg33: memref<1x32xf32, #tpu.memory_space<vmem>>, %arg34: memref<1x32xf32, #tpu.memory_space<vmem>>, %arg35: memref<1x32xf32, #tpu.memory_space<vmem>>, %arg36: memref<1x17x32xf32, #tpu.memory_space<vmem>>) attributes {dimension_semantics = [#tpu.dimension_semantics<parallel>], iteration_bounds = array<i64: 2>, scalar_prefetch = 0 : i64, scratch_operands = 0 : i64, tpu.core_type = #tpu.core_type<tc>, window_params = [{transform_indices = @transform_0, window_bounds = array<i64: 1, 32, 48>}, {pipeline_mode = #tpu.pipeline_mode<synchronous>, transform_indices = @transform_1, window_bounds = array<i64: 48, 32>}, {pipeline_mode = #tpu.pipeline_mode<synchronous>, transform_indices = @transform_2, window_bounds = array<i64: 32, 32>}, {pipeline_mode = #tpu.pipeline_mode<synchronous>, transform_indices = @transform_3, window_bounds = array<i64: 1, 32>}, {pipeline_mode = #tpu.pipeline_mode<synchronous>, transform_indices = @transform_4, window_bounds = array<i64: 1, 32>}, {pipeline_mode = #tpu.pipeline_mode<synchronous>, transform_indices = @transform_5, window_bounds = array<i64: 32, 96>}, {pipeline_mode = #tpu.pipeline_mode<synchronous>, transform_indices = @transform_6, window_bounds = array<i64: 1, 96>}, {pipeline_mode = #tpu.pipeline_mode<synchronous>, transform_indices = @transform_7, window_bounds = array<i64: 32, 32>}, {pipeline_mode = #tpu.pipeline_mode<synchronous>, transform_indices = @transform_8, window_bounds = array<i64: 1, 32>}, {pipeline_mode = #tpu.pipeline_mode<synchronous>, transform_indices = @transform_9, window_bounds = array<i64: 1, 32>}, {pipeline_mode = #tpu.pipeline_mode<synchronous>, transform_indices = @transform_10, window_bounds = array<i64: 1, 32>}, {pipeline_mode = #tpu.pipeline_mode<synchronous>, transform_indices = @transform_11, window_bounds = array<i64: 32, 64>}, {pipeline_mode = #tpu.pipeline_mode<synchronous>, transform_indices = @transform_12, window_bounds = array<i64: 1, 64>}, {pipeline_mode = #tpu.pipeline_mode<synchronous>, transform_indices = @transform_13, window_bounds = array<i64: 64, 32>}, {pipeline_mode = #tpu.pipeline_mode<synchronous>, transform_indices = @transform_14, window_bounds = array<i64: 1, 32>}, {pipeline_mode = #tpu.pipeline_mode<synchronous>, transform_indices = @transform_15, window_bounds = array<i64: 1, 32>}, {pipeline_mode = #tpu.pipeline_mode<synchronous>, transform_indices = @transform_16, window_bounds = array<i64: 1, 32>}, {pipeline_mode = #tpu.pipeline_mode<synchronous>, transform_indices = @transform_17, window_bounds = array<i64: 32, 96>}, {pipeline_mode = #tpu.pipeline_mode<synchronous>, transform_indices = @transform_18, window_bounds = array<i64: 1, 96>}, {pipeline_mode = #tpu.pipeline_mode<synchronous>, transform_indices = @transform_19, window_bounds = array<i64: 32, 32>}, {pipeline_mode = #tpu.pipeline_mode<synchronous>, transform_indices = @transform_20, window_bounds = array<i64: 1, 32>}, {pipeline_mode = #tpu.pipeline_mode<synchronous>, transform_indices = @transform_21, window_bounds = array<i64: 1, 32>}, {pipeline_mode = #tpu.pipeline_mode<synchronous>, transform_indices = @transform_22, window_bounds = array<i64: 1, 32>}, {pipeline_mode = #tpu.pipeline_mode<synchronous>, transform_indices = @transform_23, window_bounds = array<i64: 32, 64>}, {pipeline_mode = #tpu.pipeline_mode<synchronous>, transform_indices = @transform_24, window_bounds = array<i64: 1, 64>}, {pipeline_mode = #tpu.pipeline_mode<synchronous>, transform_indices = @transform_25, window_bounds = array<i64: 64, 32>}, {pipeline_mode = #tpu.pipeline_mode<synchronous>, transform_indices = @transform_26, window_bounds = array<i64: 1, 32>}, {pipeline_mode = #tpu.pipeline_mode<synchronous>, transform_indices = @transform_27, window_bounds = array<i64: 1, 32>}, {pipeline_mode = #tpu.pipeline_mode<synchronous>, transform_indices = @transform_28, window_bounds = array<i64: 1, 32>}, {pipeline_mode = #tpu.pipeline_mode<synchronous>, transform_indices = @transform_29, window_bounds = array<i64: 32, 32>}, {pipeline_mode = #tpu.pipeline_mode<synchronous>, transform_indices = @transform_30, window_bounds = array<i64: 1, 32>}, {pipeline_mode = #tpu.pipeline_mode<synchronous>, transform_indices = @transform_31, window_bounds = array<i64: 32, 32>}, {pipeline_mode = #tpu.pipeline_mode<synchronous>, transform_indices = @transform_32, window_bounds = array<i64: 1, 32>}, {pipeline_mode = #tpu.pipeline_mode<synchronous>, transform_indices = @transform_33, window_bounds = array<i64: 1, 32>}, {pipeline_mode = #tpu.pipeline_mode<synchronous>, transform_indices = @transform_34, window_bounds = array<i64: 1, 32>}, {transform_indices = @transform_35, window_bounds = array<i64: 1, 17, 32>}]} {
    %0 = tpu.iota {dimensions = array<i32: 1>} : vector<1x32xi32>
    %c17_i32 = arith.constant 17 : i32
    %1 = vector.broadcast %c17_i32 : i32 to vector<1x32xi32>
    %2 = arith.cmpi slt, %0, %1 : vector<1x32xi32>
    %c0 = arith.constant 0 : index
    %c0_0 = arith.constant 0 : index
    %c0_1 = arith.constant 0 : index
    %3 = vector.load %arg1[%c0, %c0_0, %c0_1] : memref<1x32x48xf32, #tpu.memory_space<vmem>>, vector<1x32x48xf32>
    %4 = vector.shape_cast %3 : vector<1x32x48xf32> to vector<32x48xf32>
    %5 = arith.truncf %4 : vector<32x48xf32> to vector<32x48xbf16>
    %c0_2 = arith.constant 0 : index
    %c0_3 = arith.constant 0 : index
    %6 = vector.load %arg2[%c0_2, %c0_3] : memref<48x32xbf16, #tpu.memory_space<vmem>>, vector<48x32xbf16>
    %cst = arith.constant dense<0.000000e+00> : vector<32x32xf32>
    %7 = tpu.matmul %5, %6, %cst {dimension_numbers = #tpu.dot_dimension_numbers<[1], [0], [0], [1], [0, 0, 1, 1], [], []>} : vector<32x48xbf16>, vector<48x32xbf16>, vector<32x32xf32> -> vector<32x32xf32>
    %c0_4 = arith.constant 0 : index
    %c0_5 = arith.constant 0 : index
    %8 = vector.load %arg3[%c0_4, %c0_5] : memref<32x32xf32, #tpu.memory_space<vmem>>, vector<32x32xf32>
    %9 = arith.addf %7, %8 : vector<32x32xf32>
    %c0_6 = arith.constant 0 : index
    %c0_7 = arith.constant 0 : index
    %10 = vector.load %arg4[%c0_6, %c0_7] : memref<1x32xf32, #tpu.memory_space<vmem>>, vector<1x32xf32>
    %c0_8 = arith.constant 0 : index
    %c0_9 = arith.constant 0 : index
    %11 = vector.load %arg5[%c0_8, %c0_9] : memref<1x32xf32, #tpu.memory_space<vmem>>, vector<1x32xf32>
    %cst_10 = arith.constant dense<0.000000e+00> : vector<32xf32>
    %12 = vector.multi_reduction <add>, %9, %cst_10 [1] : vector<32x32xf32> to vector<32xf32>
    %13 = vector.shape_cast %12 : vector<32xf32> to vector<32x1xf32>
    %cst_11 = arith.constant 3.200000e+01 : f32
    %14 = vector.broadcast %cst_11 : f32 to vector<32x1xf32>
    %15 = arith.divf %13, %14 : vector<32x1xf32>
    %16 = vector.broadcast %15 : vector<32x1xf32> to vector<32x32xf32>
    %17 = arith.subf %9, %16 : vector<32x32xf32>
    %18 = arith.mulf %17, %17 : vector<32x32xf32>
    %cst_12 = arith.constant dense<0.000000e+00> : vector<32xf32>
    %19 = vector.multi_reduction <add>, %18, %cst_12 [1] : vector<32x32xf32> to vector<32xf32>
    %20 = vector.shape_cast %19 : vector<32xf32> to vector<32x1xf32>
    %cst_13 = arith.constant 3.200000e+01 : f32
    %21 = vector.broadcast %cst_13 : f32 to vector<32x1xf32>
    %22 = arith.divf %20, %21 : vector<32x1xf32>
    %cst_14 = arith.constant 9.99999997E-7 : f32
    %23 = vector.broadcast %cst_14 : f32 to vector<32x1xf32>
    %24 = arith.addf %22, %23 : vector<32x1xf32>
    %25 = math.rsqrt %24 : vector<32x1xf32>
    %26 = vector.broadcast %25 : vector<32x1xf32> to vector<32x32xf32>
    %27 = arith.mulf %17, %26 : vector<32x32xf32>
    %28 = vector.broadcast %10 : vector<1x32xf32> to vector<32x32xf32>
    %29 = arith.mulf %27, %28 : vector<32x32xf32>
    %30 = vector.broadcast %11 : vector<1x32xf32> to vector<32x32xf32>
    %31 = arith.addf %29, %30 : vector<32x32xf32>
    %c0_15 = arith.constant 0 : index
    %c0_16 = arith.constant 0 : index
    %32 = vector.load %arg6[%c0_15, %c0_16] : memref<32x96xbf16, #tpu.memory_space<vmem>>, vector<32x96xbf16>
    %c0_17 = arith.constant 0 : index
    %c0_18 = arith.constant 0 : index
    %33 = vector.load %arg7[%c0_17, %c0_18] : memref<1x96xf32, #tpu.memory_space<vmem>>, vector<1x96xf32>
    %c0_19 = arith.constant 0 : index
    %c0_20 = arith.constant 0 : index
    %34 = vector.load %arg8[%c0_19, %c0_20] : memref<32x32xbf16, #tpu.memory_space<vmem>>, vector<32x32xbf16>
    %c0_21 = arith.constant 0 : index
    %c0_22 = arith.constant 0 : index
    %35 = vector.load %arg9[%c0_21, %c0_22] : memref<1x32xf32, #tpu.memory_space<vmem>>, vector<1x32xf32>
    %36 = arith.truncf %31 : vector<32x32xf32> to vector<32x32xbf16>
    %cst_23 = arith.constant dense<0.000000e+00> : vector<32x96xf32>
    %37 = tpu.matmul %36, %32, %cst_23 {dimension_numbers = #tpu.dot_dimension_numbers<[1], [0], [0], [1], [0, 0, 1, 1], [], []>} : vector<32x32xbf16>, vector<32x96xbf16>, vector<32x96xf32> -> vector<32x96xf32>
    %38 = vector.broadcast %33 : vector<1x96xf32> to vector<32x96xf32>
    %39 = arith.addf %37, %38 : vector<32x96xf32>
    %cst_24 = arith.constant 0.000000e+00 : f32
    %40 = vector.broadcast %cst_24 : f32 to vector<32x32xf32>
    %41 = vector.extract_strided_slice %39 {offsets = [0, 0], sizes = [32, 8], strides = [1, 1]} : vector<32x96xf32> to vector<32x8xf32>
    %cst_25 = arith.constant 0.353553385 : f32
    %42 = vector.broadcast %cst_25 : f32 to vector<32x8xf32>
    %43 = arith.mulf %41, %42 : vector<32x8xf32>
    %44 = arith.truncf %43 : vector<32x8xf32> to vector<32x8xbf16>
    %45 = vector.extract_strided_slice %39 {offsets = [0, 32], sizes = [32, 8], strides = [1, 1]} : vector<32x96xf32> to vector<32x8xf32>
    %46 = arith.truncf %45 : vector<32x8xf32> to vector<32x8xbf16>
    %47 = vector.extract_strided_slice %39 {offsets = [0, 64], sizes = [32, 8], strides = [1, 1]} : vector<32x96xf32> to vector<32x8xf32>
    %48 = arith.truncf %47 : vector<32x8xf32> to vector<32x8xbf16>
    %cst_26 = arith.constant dense<0.000000e+00> : vector<32x32xf32>
    %49 = tpu.matmul %44, %46, %cst_26 {dimension_numbers = #tpu.dot_dimension_numbers<[1], [1], [0], [0], [0, 0, 1, 0], [], []>} : vector<32x8xbf16>, vector<32x8xbf16>, vector<32x32xf32> -> vector<32x32xf32>
    %cst_27 = arith.constant -1.000000e+30 : f32
    %50 = vector.shape_cast %2 : vector<1x32xi1> to vector<1x32xi1>
    %51 = vector.broadcast %50 : vector<1x32xi1> to vector<32x32xi1>
    %52 = vector.broadcast %cst_27 : f32 to vector<32x32xf32>
    %53 = arith.select %51, %49, %52 : vector<32x32xi1>, vector<32x32xf32>
    %cst_28 = arith.constant dense<0xFF800000> : vector<32xf32>
    %54 = vector.multi_reduction <maximumf>, %53, %cst_28 [1] : vector<32x32xf32> to vector<32xf32>
    %55 = vector.shape_cast %54 : vector<32xf32> to vector<32x1xf32>
    %56 = vector.broadcast %55 : vector<32x1xf32> to vector<32x32xf32>
    %57 = arith.subf %53, %56 : vector<32x32xf32>
    %58 = math.exp %57 : vector<32x32xf32>
    %cst_29 = arith.constant dense<0.000000e+00> : vector<32xf32>
    %59 = vector.multi_reduction <add>, %58, %cst_29 [1] : vector<32x32xf32> to vector<32xf32>
    %60 = vector.shape_cast %59 : vector<32xf32> to vector<32x1xf32>
    %61 = tpu.reciprocal %60 {approx = true} : vector<32x1xf32> -> vector<32x1xf32>
    %62 = vector.broadcast %61 : vector<32x1xf32> to vector<32x32xf32>
    %63 = arith.mulf %58, %62 : vector<32x32xf32>
    %64 = arith.truncf %63 : vector<32x32xf32> to vector<32x32xbf16>
    %cst_30 = arith.constant dense<0.000000e+00> : vector<32x8xf32>
    %65 = tpu.matmul %64, %48, %cst_30 {dimension_numbers = #tpu.dot_dimension_numbers<[1], [0], [0], [1], [0, 0, 1, 1], [], []>} : vector<32x32xbf16>, vector<32x8xbf16>, vector<32x8xf32> -> vector<32x8xf32>
    %66 = arith.truncf %65 : vector<32x8xf32> to vector<32x8xbf16>
    %67 = vector.extract_strided_slice %34 {offsets = [0, 0], sizes = [8, 32], strides = [1, 1]} : vector<32x32xbf16> to vector<8x32xbf16>
    %cst_31 = arith.constant dense<0.000000e+00> : vector<32x32xf32>
    %68 = tpu.matmul %66, %67, %cst_31 {dimension_numbers = #tpu.dot_dimension_numbers<[1], [0], [0], [1], [0, 0, 1, 1], [], []>} : vector<32x8xbf16>, vector<8x32xbf16>, vector<32x32xf32> -> vector<32x32xf32>
    %69 = arith.addf %40, %68 : vector<32x32xf32>
    %70 = vector.extract_strided_slice %39 {offsets = [0, 8], sizes = [32, 8], strides = [1, 1]} : vector<32x96xf32> to vector<32x8xf32>
    %cst_32 = arith.constant 0.353553385 : f32
    %71 = vector.broadcast %cst_32 : f32 to vector<32x8xf32>
    %72 = arith.mulf %70, %71 : vector<32x8xf32>
    %73 = arith.truncf %72 : vector<32x8xf32> to vector<32x8xbf16>
    %74 = vector.extract_strided_slice %39 {offsets = [0, 40], sizes = [32, 8], strides = [1, 1]} : vector<32x96xf32> to vector<32x8xf32>
    %75 = arith.truncf %74 : vector<32x8xf32> to vector<32x8xbf16>
    %76 = vector.extract_strided_slice %39 {offsets = [0, 72], sizes = [32, 8], strides = [1, 1]} : vector<32x96xf32> to vector<32x8xf32>
    %77 = arith.truncf %76 : vector<32x8xf32> to vector<32x8xbf16>
    %cst_33 = arith.constant dense<0.000000e+00> : vector<32x32xf32>
    %78 = tpu.matmul %73, %75, %cst_33 {dimension_numbers = #tpu.dot_dimension_numbers<[1], [1], [0], [0], [0, 0, 1, 0], [], []>} : vector<32x8xbf16>, vector<32x8xbf16>, vector<32x32xf32> -> vector<32x32xf32>
    %cst_34 = arith.constant -1.000000e+30 : f32
    %79 = vector.shape_cast %2 : vector<1x32xi1> to vector<1x32xi1>
    %80 = vector.broadcast %79 : vector<1x32xi1> to vector<32x32xi1>
    %81 = vector.broadcast %cst_34 : f32 to vector<32x32xf32>
    %82 = arith.select %80, %78, %81 : vector<32x32xi1>, vector<32x32xf32>
    %cst_35 = arith.constant dense<0xFF800000> : vector<32xf32>
    %83 = vector.multi_reduction <maximumf>, %82, %cst_35 [1] : vector<32x32xf32> to vector<32xf32>
    %84 = vector.shape_cast %83 : vector<32xf32> to vector<32x1xf32>
    %85 = vector.broadcast %84 : vector<32x1xf32> to vector<32x32xf32>
    %86 = arith.subf %82, %85 : vector<32x32xf32>
    %87 = math.exp %86 : vector<32x32xf32>
    %cst_36 = arith.constant dense<0.000000e+00> : vector<32xf32>
    %88 = vector.multi_reduction <add>, %87, %cst_36 [1] : vector<32x32xf32> to vector<32xf32>
    %89 = vector.shape_cast %88 : vector<32xf32> to vector<32x1xf32>
    %90 = tpu.reciprocal %89 {approx = true} : vector<32x1xf32> -> vector<32x1xf32>
    %91 = vector.broadcast %90 : vector<32x1xf32> to vector<32x32xf32>
    %92 = arith.mulf %87, %91 : vector<32x32xf32>
    %93 = arith.truncf %92 : vector<32x32xf32> to vector<32x32xbf16>
    %cst_37 = arith.constant dense<0.000000e+00> : vector<32x8xf32>
    %94 = tpu.matmul %93, %77, %cst_37 {dimension_numbers = #tpu.dot_dimension_numbers<[1], [0], [0], [1], [0, 0, 1, 1], [], []>} : vector<32x32xbf16>, vector<32x8xbf16>, vector<32x8xf32> -> vector<32x8xf32>
    %95 = arith.truncf %94 : vector<32x8xf32> to vector<32x8xbf16>
    %96 = vector.extract_strided_slice %34 {offsets = [8, 0], sizes = [8, 32], strides = [1, 1]} : vector<32x32xbf16> to vector<8x32xbf16>
    %cst_38 = arith.constant dense<0.000000e+00> : vector<32x32xf32>
    %97 = tpu.matmul %95, %96, %cst_38 {dimension_numbers = #tpu.dot_dimension_numbers<[1], [0], [0], [1], [0, 0, 1, 1], [], []>} : vector<32x8xbf16>, vector<8x32xbf16>, vector<32x32xf32> -> vector<32x32xf32>
    %98 = arith.addf %69, %97 : vector<32x32xf32>
    %99 = vector.extract_strided_slice %39 {offsets = [0, 16], sizes = [32, 8], strides = [1, 1]} : vector<32x96xf32> to vector<32x8xf32>
    %cst_39 = arith.constant 0.353553385 : f32
    %100 = vector.broadcast %cst_39 : f32 to vector<32x8xf32>
    %101 = arith.mulf %99, %100 : vector<32x8xf32>
    %102 = arith.truncf %101 : vector<32x8xf32> to vector<32x8xbf16>
    %103 = vector.extract_strided_slice %39 {offsets = [0, 48], sizes = [32, 8], strides = [1, 1]} : vector<32x96xf32> to vector<32x8xf32>
    %104 = arith.truncf %103 : vector<32x8xf32> to vector<32x8xbf16>
    %105 = vector.extract_strided_slice %39 {offsets = [0, 80], sizes = [32, 8], strides = [1, 1]} : vector<32x96xf32> to vector<32x8xf32>
    %106 = arith.truncf %105 : vector<32x8xf32> to vector<32x8xbf16>
    %cst_40 = arith.constant dense<0.000000e+00> : vector<32x32xf32>
    %107 = tpu.matmul %102, %104, %cst_40 {dimension_numbers = #tpu.dot_dimension_numbers<[1], [1], [0], [0], [0, 0, 1, 0], [], []>} : vector<32x8xbf16>, vector<32x8xbf16>, vector<32x32xf32> -> vector<32x32xf32>
    %cst_41 = arith.constant -1.000000e+30 : f32
    %108 = vector.shape_cast %2 : vector<1x32xi1> to vector<1x32xi1>
    %109 = vector.broadcast %108 : vector<1x32xi1> to vector<32x32xi1>
    %110 = vector.broadcast %cst_41 : f32 to vector<32x32xf32>
    %111 = arith.select %109, %107, %110 : vector<32x32xi1>, vector<32x32xf32>
    %cst_42 = arith.constant dense<0xFF800000> : vector<32xf32>
    %112 = vector.multi_reduction <maximumf>, %111, %cst_42 [1] : vector<32x32xf32> to vector<32xf32>
    %113 = vector.shape_cast %112 : vector<32xf32> to vector<32x1xf32>
    %114 = vector.broadcast %113 : vector<32x1xf32> to vector<32x32xf32>
    %115 = arith.subf %111, %114 : vector<32x32xf32>
    %116 = math.exp %115 : vector<32x32xf32>
    %cst_43 = arith.constant dense<0.000000e+00> : vector<32xf32>
    %117 = vector.multi_reduction <add>, %116, %cst_43 [1] : vector<32x32xf32> to vector<32xf32>
    %118 = vector.shape_cast %117 : vector<32xf32> to vector<32x1xf32>
    %119 = tpu.reciprocal %118 {approx = true} : vector<32x1xf32> -> vector<32x1xf32>
    %120 = vector.broadcast %119 : vector<32x1xf32> to vector<32x32xf32>
    %121 = arith.mulf %116, %120 : vector<32x32xf32>
    %122 = arith.truncf %121 : vector<32x32xf32> to vector<32x32xbf16>
    %cst_44 = arith.constant dense<0.000000e+00> : vector<32x8xf32>
    %123 = tpu.matmul %122, %106, %cst_44 {dimension_numbers = #tpu.dot_dimension_numbers<[1], [0], [0], [1], [0, 0, 1, 1], [], []>} : vector<32x32xbf16>, vector<32x8xbf16>, vector<32x8xf32> -> vector<32x8xf32>
    %124 = arith.truncf %123 : vector<32x8xf32> to vector<32x8xbf16>
    %125 = vector.extract_strided_slice %34 {offsets = [16, 0], sizes = [8, 32], strides = [1, 1]} : vector<32x32xbf16> to vector<8x32xbf16>
    %cst_45 = arith.constant dense<0.000000e+00> : vector<32x32xf32>
    %126 = tpu.matmul %124, %125, %cst_45 {dimension_numbers = #tpu.dot_dimension_numbers<[1], [0], [0], [1], [0, 0, 1, 1], [], []>} : vector<32x8xbf16>, vector<8x32xbf16>, vector<32x32xf32> -> vector<32x32xf32>
    %127 = arith.addf %98, %126 : vector<32x32xf32>
    %128 = vector.extract_strided_slice %39 {offsets = [0, 24], sizes = [32, 8], strides = [1, 1]} : vector<32x96xf32> to vector<32x8xf32>
    %cst_46 = arith.constant 0.353553385 : f32
    %129 = vector.broadcast %cst_46 : f32 to vector<32x8xf32>
    %130 = arith.mulf %128, %129 : vector<32x8xf32>
    %131 = arith.truncf %130 : vector<32x8xf32> to vector<32x8xbf16>
    %132 = vector.extract_strided_slice %39 {offsets = [0, 56], sizes = [32, 8], strides = [1, 1]} : vector<32x96xf32> to vector<32x8xf32>
    %133 = arith.truncf %132 : vector<32x8xf32> to vector<32x8xbf16>
    %134 = vector.extract_strided_slice %39 {offsets = [0, 88], sizes = [32, 8], strides = [1, 1]} : vector<32x96xf32> to vector<32x8xf32>
    %135 = arith.truncf %134 : vector<32x8xf32> to vector<32x8xbf16>
    %cst_47 = arith.constant dense<0.000000e+00> : vector<32x32xf32>
    %136 = tpu.matmul %131, %133, %cst_47 {dimension_numbers = #tpu.dot_dimension_numbers<[1], [1], [0], [0], [0, 0, 1, 0], [], []>} : vector<32x8xbf16>, vector<32x8xbf16>, vector<32x32xf32> -> vector<32x32xf32>
    %cst_48 = arith.constant -1.000000e+30 : f32
    %137 = vector.shape_cast %2 : vector<1x32xi1> to vector<1x32xi1>
    %138 = vector.broadcast %137 : vector<1x32xi1> to vector<32x32xi1>
    %139 = vector.broadcast %cst_48 : f32 to vector<32x32xf32>
    %140 = arith.select %138, %136, %139 : vector<32x32xi1>, vector<32x32xf32>
    %cst_49 = arith.constant dense<0xFF800000> : vector<32xf32>
    %141 = vector.multi_reduction <maximumf>, %140, %cst_49 [1] : vector<32x32xf32> to vector<32xf32>
    %142 = vector.shape_cast %141 : vector<32xf32> to vector<32x1xf32>
    %143 = vector.broadcast %142 : vector<32x1xf32> to vector<32x32xf32>
    %144 = arith.subf %140, %143 : vector<32x32xf32>
    %145 = math.exp %144 : vector<32x32xf32>
    %cst_50 = arith.constant dense<0.000000e+00> : vector<32xf32>
    %146 = vector.multi_reduction <add>, %145, %cst_50 [1] : vector<32x32xf32> to vector<32xf32>
    %147 = vector.shape_cast %146 : vector<32xf32> to vector<32x1xf32>
    %148 = tpu.reciprocal %147 {approx = true} : vector<32x1xf32> -> vector<32x1xf32>
    %149 = vector.broadcast %148 : vector<32x1xf32> to vector<32x32xf32>
    %150 = arith.mulf %145, %149 : vector<32x32xf32>
    %151 = arith.truncf %150 : vector<32x32xf32> to vector<32x32xbf16>
    %cst_51 = arith.constant dense<0.000000e+00> : vector<32x8xf32>
    %152 = tpu.matmul %151, %135, %cst_51 {dimension_numbers = #tpu.dot_dimension_numbers<[1], [0], [0], [1], [0, 0, 1, 1], [], []>} : vector<32x32xbf16>, vector<32x8xbf16>, vector<32x8xf32> -> vector<32x8xf32>
    %153 = arith.truncf %152 : vector<32x8xf32> to vector<32x8xbf16>
    %154 = vector.extract_strided_slice %34 {offsets = [24, 0], sizes = [8, 32], strides = [1, 1]} : vector<32x32xbf16> to vector<8x32xbf16>
    %cst_52 = arith.constant dense<0.000000e+00> : vector<32x32xf32>
    %155 = tpu.matmul %153, %154, %cst_52 {dimension_numbers = #tpu.dot_dimension_numbers<[1], [0], [0], [1], [0, 0, 1, 1], [], []>} : vector<32x8xbf16>, vector<8x32xbf16>, vector<32x32xf32> -> vector<32x32xf32>
    %156 = arith.addf %127, %155 : vector<32x32xf32>
    %157 = vector.broadcast %35 : vector<1x32xf32> to vector<32x32xf32>
    %158 = arith.addf %156, %157 : vector<32x32xf32>
    %159 = arith.addf %9, %158 : vector<32x32xf32>
    %c0_53 = arith.constant 0 : index
    %c0_54 = arith.constant 0 : index
    %160 = vector.load %arg10[%c0_53, %c0_54] : memref<1x32xf32, #tpu.memory_space<vmem>>, vector<1x32xf32>
    %c0_55 = arith.constant 0 : index
    %c0_56 = arith.constant 0 : index
    %161 = vector.load %arg11[%c0_55, %c0_56] : memref<1x32xf32, #tpu.memory_space<vmem>>, vector<1x32xf32>
    %cst_57 = arith.constant dense<0.000000e+00> : vector<32xf32>
    %162 = vector.multi_reduction <add>, %159, %cst_57 [1] : vector<32x32xf32> to vector<32xf32>
    %163 = vector.shape_cast %162 : vector<32xf32> to vector<32x1xf32>
    %cst_58 = arith.constant 3.200000e+01 : f32
    %164 = vector.broadcast %cst_58 : f32 to vector<32x1xf32>
    %165 = arith.divf %163, %164 : vector<32x1xf32>
    %166 = vector.broadcast %165 : vector<32x1xf32> to vector<32x32xf32>
    %167 = arith.subf %159, %166 : vector<32x32xf32>
    %168 = arith.mulf %167, %167 : vector<32x32xf32>
    %cst_59 = arith.constant dense<0.000000e+00> : vector<32xf32>
    %169 = vector.multi_reduction <add>, %168, %cst_59 [1] : vector<32x32xf32> to vector<32xf32>
    %170 = vector.shape_cast %169 : vector<32xf32> to vector<32x1xf32>
    %cst_60 = arith.constant 3.200000e+01 : f32
    %171 = vector.broadcast %cst_60 : f32 to vector<32x1xf32>
    %172 = arith.divf %170, %171 : vector<32x1xf32>
    %cst_61 = arith.constant 9.99999997E-7 : f32
    %173 = vector.broadcast %cst_61 : f32 to vector<32x1xf32>
    %174 = arith.addf %172, %173 : vector<32x1xf32>
    %175 = math.rsqrt %174 : vector<32x1xf32>
    %176 = vector.broadcast %175 : vector<32x1xf32> to vector<32x32xf32>
    %177 = arith.mulf %167, %176 : vector<32x32xf32>
    %178 = vector.broadcast %160 : vector<1x32xf32> to vector<32x32xf32>
    %179 = arith.mulf %177, %178 : vector<32x32xf32>
    %180 = vector.broadcast %161 : vector<1x32xf32> to vector<32x32xf32>
    %181 = arith.addf %179, %180 : vector<32x32xf32>
    %c0_62 = arith.constant 0 : index
    %c0_63 = arith.constant 0 : index
    %182 = vector.load %arg12[%c0_62, %c0_63] : memref<32x64xbf16, #tpu.memory_space<vmem>>, vector<32x64xbf16>
    %c0_64 = arith.constant 0 : index
    %c0_65 = arith.constant 0 : index
    %183 = vector.load %arg13[%c0_64, %c0_65] : memref<1x64xf32, #tpu.memory_space<vmem>>, vector<1x64xf32>
    %184 = arith.truncf %181 : vector<32x32xf32> to vector<32x32xbf16>
    %cst_66 = arith.constant dense<0.000000e+00> : vector<32x64xf32>
    %185 = tpu.matmul %184, %182, %cst_66 {dimension_numbers = #tpu.dot_dimension_numbers<[1], [0], [0], [1], [0, 0, 1, 1], [], []>} : vector<32x32xbf16>, vector<32x64xbf16>, vector<32x64xf32> -> vector<32x64xf32>
    %186 = vector.broadcast %183 : vector<1x64xf32> to vector<32x64xf32>
    %187 = arith.addf %185, %186 : vector<32x64xf32>
    %cst_67 = arith.constant 5.000000e-01 : f32
    %188 = vector.broadcast %cst_67 : f32 to vector<32x64xf32>
    %189 = arith.mulf %188, %187 : vector<32x64xf32>
    %cst_68 = arith.constant 4.471500e-02 : f32
    %190 = vector.broadcast %cst_68 : f32 to vector<32x64xf32>
    %191 = arith.mulf %190, %187 : vector<32x64xf32>
    %192 = arith.mulf %191, %187 : vector<32x64xf32>
    %193 = arith.mulf %192, %187 : vector<32x64xf32>
    %194 = arith.addf %187, %193 : vector<32x64xf32>
    %cst_69 = arith.constant 0.797884583 : f32
    %195 = vector.broadcast %cst_69 : f32 to vector<32x64xf32>
    %196 = arith.mulf %195, %194 : vector<32x64xf32>
    %197 = math.tanh %196 : vector<32x64xf32>
    %cst_70 = arith.constant 1.000000e+00 : f32
    %198 = vector.broadcast %cst_70 : f32 to vector<32x64xf32>
    %199 = arith.addf %198, %197 : vector<32x64xf32>
    %200 = arith.mulf %189, %199 : vector<32x64xf32>
    %c0_71 = arith.constant 0 : index
    %c0_72 = arith.constant 0 : index
    %201 = vector.load %arg14[%c0_71, %c0_72] : memref<64x32xbf16, #tpu.memory_space<vmem>>, vector<64x32xbf16>
    %c0_73 = arith.constant 0 : index
    %c0_74 = arith.constant 0 : index
    %202 = vector.load %arg15[%c0_73, %c0_74] : memref<1x32xf32, #tpu.memory_space<vmem>>, vector<1x32xf32>
    %203 = arith.truncf %200 : vector<32x64xf32> to vector<32x64xbf16>
    %cst_75 = arith.constant dense<0.000000e+00> : vector<32x32xf32>
    %204 = tpu.matmul %203, %201, %cst_75 {dimension_numbers = #tpu.dot_dimension_numbers<[1], [0], [0], [1], [0, 0, 1, 1], [], []>} : vector<32x64xbf16>, vector<64x32xbf16>, vector<32x32xf32> -> vector<32x32xf32>
    %205 = vector.broadcast %202 : vector<1x32xf32> to vector<32x32xf32>
    %206 = arith.addf %204, %205 : vector<32x32xf32>
    %207 = arith.addf %159, %206 : vector<32x32xf32>
    %c0_76 = arith.constant 0 : index
    %c0_77 = arith.constant 0 : index
    %208 = vector.load %arg16[%c0_76, %c0_77] : memref<1x32xf32, #tpu.memory_space<vmem>>, vector<1x32xf32>
    %c0_78 = arith.constant 0 : index
    %c0_79 = arith.constant 0 : index
    %209 = vector.load %arg17[%c0_78, %c0_79] : memref<1x32xf32, #tpu.memory_space<vmem>>, vector<1x32xf32>
    %cst_80 = arith.constant dense<0.000000e+00> : vector<32xf32>
    %210 = vector.multi_reduction <add>, %207, %cst_80 [1] : vector<32x32xf32> to vector<32xf32>
    %211 = vector.shape_cast %210 : vector<32xf32> to vector<32x1xf32>
    %cst_81 = arith.constant 3.200000e+01 : f32
    %212 = vector.broadcast %cst_81 : f32 to vector<32x1xf32>
    %213 = arith.divf %211, %212 : vector<32x1xf32>
    %214 = vector.broadcast %213 : vector<32x1xf32> to vector<32x32xf32>
    %215 = arith.subf %207, %214 : vector<32x32xf32>
    %216 = arith.mulf %215, %215 : vector<32x32xf32>
    %cst_82 = arith.constant dense<0.000000e+00> : vector<32xf32>
    %217 = vector.multi_reduction <add>, %216, %cst_82 [1] : vector<32x32xf32> to vector<32xf32>
    %218 = vector.shape_cast %217 : vector<32xf32> to vector<32x1xf32>
    %cst_83 = arith.constant 3.200000e+01 : f32
    %219 = vector.broadcast %cst_83 : f32 to vector<32x1xf32>
    %220 = arith.divf %218, %219 : vector<32x1xf32>
    %cst_84 = arith.constant 9.99999997E-7 : f32
    %221 = vector.broadcast %cst_84 : f32 to vector<32x1xf32>
    %222 = arith.addf %220, %221 : vector<32x1xf32>
    %223 = math.rsqrt %222 : vector<32x1xf32>
    %224 = vector.broadcast %223 : vector<32x1xf32> to vector<32x32xf32>
    %225 = arith.mulf %215, %224 : vector<32x32xf32>
    %226 = vector.broadcast %208 : vector<1x32xf32> to vector<32x32xf32>
    %227 = arith.mulf %225, %226 : vector<32x32xf32>
    %228 = vector.broadcast %209 : vector<1x32xf32> to vector<32x32xf32>
    %229 = arith.addf %227, %228 : vector<32x32xf32>
    %c0_85 = arith.constant 0 : index
    %c0_86 = arith.constant 0 : index
    %230 = vector.load %arg18[%c0_85, %c0_86] : memref<32x96xbf16, #tpu.memory_space<vmem>>, vector<32x96xbf16>
    %c0_87 = arith.constant 0 : index
    %c0_88 = arith.constant 0 : index
    %231 = vector.load %arg19[%c0_87, %c0_88] : memref<1x96xf32, #tpu.memory_space<vmem>>, vector<1x96xf32>
    %c0_89 = arith.constant 0 : index
    %c0_90 = arith.constant 0 : index
    %232 = vector.load %arg20[%c0_89, %c0_90] : memref<32x32xbf16, #tpu.memory_space<vmem>>, vector<32x32xbf16>
    %c0_91 = arith.constant 0 : index
    %c0_92 = arith.constant 0 : index
    %233 = vector.load %arg21[%c0_91, %c0_92] : memref<1x32xf32, #tpu.memory_space<vmem>>, vector<1x32xf32>
    %234 = arith.truncf %229 : vector<32x32xf32> to vector<32x32xbf16>
    %cst_93 = arith.constant dense<0.000000e+00> : vector<32x96xf32>
    %235 = tpu.matmul %234, %230, %cst_93 {dimension_numbers = #tpu.dot_dimension_numbers<[1], [0], [0], [1], [0, 0, 1, 1], [], []>} : vector<32x32xbf16>, vector<32x96xbf16>, vector<32x96xf32> -> vector<32x96xf32>
    %236 = vector.broadcast %231 : vector<1x96xf32> to vector<32x96xf32>
    %237 = arith.addf %235, %236 : vector<32x96xf32>
    %cst_94 = arith.constant 0.000000e+00 : f32
    %238 = vector.broadcast %cst_94 : f32 to vector<32x32xf32>
    %239 = vector.extract_strided_slice %237 {offsets = [0, 0], sizes = [32, 8], strides = [1, 1]} : vector<32x96xf32> to vector<32x8xf32>
    %cst_95 = arith.constant 0.353553385 : f32
    %240 = vector.broadcast %cst_95 : f32 to vector<32x8xf32>
    %241 = arith.mulf %239, %240 : vector<32x8xf32>
    %242 = arith.truncf %241 : vector<32x8xf32> to vector<32x8xbf16>
    %243 = vector.extract_strided_slice %237 {offsets = [0, 32], sizes = [32, 8], strides = [1, 1]} : vector<32x96xf32> to vector<32x8xf32>
    %244 = arith.truncf %243 : vector<32x8xf32> to vector<32x8xbf16>
    %245 = vector.extract_strided_slice %237 {offsets = [0, 64], sizes = [32, 8], strides = [1, 1]} : vector<32x96xf32> to vector<32x8xf32>
    %246 = arith.truncf %245 : vector<32x8xf32> to vector<32x8xbf16>
    %cst_96 = arith.constant dense<0.000000e+00> : vector<32x32xf32>
    %247 = tpu.matmul %242, %244, %cst_96 {dimension_numbers = #tpu.dot_dimension_numbers<[1], [1], [0], [0], [0, 0, 1, 0], [], []>} : vector<32x8xbf16>, vector<32x8xbf16>, vector<32x32xf32> -> vector<32x32xf32>
    %cst_97 = arith.constant -1.000000e+30 : f32
    %248 = vector.shape_cast %2 : vector<1x32xi1> to vector<1x32xi1>
    %249 = vector.broadcast %248 : vector<1x32xi1> to vector<32x32xi1>
    %250 = vector.broadcast %cst_97 : f32 to vector<32x32xf32>
    %251 = arith.select %249, %247, %250 : vector<32x32xi1>, vector<32x32xf32>
    %cst_98 = arith.constant dense<0xFF800000> : vector<32xf32>
    %252 = vector.multi_reduction <maximumf>, %251, %cst_98 [1] : vector<32x32xf32> to vector<32xf32>
    %253 = vector.shape_cast %252 : vector<32xf32> to vector<32x1xf32>
    %254 = vector.broadcast %253 : vector<32x1xf32> to vector<32x32xf32>
    %255 = arith.subf %251, %254 : vector<32x32xf32>
    %256 = math.exp %255 : vector<32x32xf32>
    %cst_99 = arith.constant dense<0.000000e+00> : vector<32xf32>
    %257 = vector.multi_reduction <add>, %256, %cst_99 [1] : vector<32x32xf32> to vector<32xf32>
    %258 = vector.shape_cast %257 : vector<32xf32> to vector<32x1xf32>
    %259 = tpu.reciprocal %258 {approx = true} : vector<32x1xf32> -> vector<32x1xf32>
    %260 = vector.broadcast %259 : vector<32x1xf32> to vector<32x32xf32>
    %261 = arith.mulf %256, %260 : vector<32x32xf32>
    %262 = arith.truncf %261 : vector<32x32xf32> to vector<32x32xbf16>
    %cst_100 = arith.constant dense<0.000000e+00> : vector<32x8xf32>
    %263 = tpu.matmul %262, %246, %cst_100 {dimension_numbers = #tpu.dot_dimension_numbers<[1], [0], [0], [1], [0, 0, 1, 1], [], []>} : vector<32x32xbf16>, vector<32x8xbf16>, vector<32x8xf32> -> vector<32x8xf32>
    %264 = arith.truncf %263 : vector<32x8xf32> to vector<32x8xbf16>
    %265 = vector.extract_strided_slice %232 {offsets = [0, 0], sizes = [8, 32], strides = [1, 1]} : vector<32x32xbf16> to vector<8x32xbf16>
    %cst_101 = arith.constant dense<0.000000e+00> : vector<32x32xf32>
    %266 = tpu.matmul %264, %265, %cst_101 {dimension_numbers = #tpu.dot_dimension_numbers<[1], [0], [0], [1], [0, 0, 1, 1], [], []>} : vector<32x8xbf16>, vector<8x32xbf16>, vector<32x32xf32> -> vector<32x32xf32>
    %267 = arith.addf %238, %266 : vector<32x32xf32>
    %268 = vector.extract_strided_slice %237 {offsets = [0, 8], sizes = [32, 8], strides = [1, 1]} : vector<32x96xf32> to vector<32x8xf32>
    %cst_102 = arith.constant 0.353553385 : f32
    %269 = vector.broadcast %cst_102 : f32 to vector<32x8xf32>
    %270 = arith.mulf %268, %269 : vector<32x8xf32>
    %271 = arith.truncf %270 : vector<32x8xf32> to vector<32x8xbf16>
    %272 = vector.extract_strided_slice %237 {offsets = [0, 40], sizes = [32, 8], strides = [1, 1]} : vector<32x96xf32> to vector<32x8xf32>
    %273 = arith.truncf %272 : vector<32x8xf32> to vector<32x8xbf16>
    %274 = vector.extract_strided_slice %237 {offsets = [0, 72], sizes = [32, 8], strides = [1, 1]} : vector<32x96xf32> to vector<32x8xf32>
    %275 = arith.truncf %274 : vector<32x8xf32> to vector<32x8xbf16>
    %cst_103 = arith.constant dense<0.000000e+00> : vector<32x32xf32>
    %276 = tpu.matmul %271, %273, %cst_103 {dimension_numbers = #tpu.dot_dimension_numbers<[1], [1], [0], [0], [0, 0, 1, 0], [], []>} : vector<32x8xbf16>, vector<32x8xbf16>, vector<32x32xf32> -> vector<32x32xf32>
    %cst_104 = arith.constant -1.000000e+30 : f32
    %277 = vector.shape_cast %2 : vector<1x32xi1> to vector<1x32xi1>
    %278 = vector.broadcast %277 : vector<1x32xi1> to vector<32x32xi1>
    %279 = vector.broadcast %cst_104 : f32 to vector<32x32xf32>
    %280 = arith.select %278, %276, %279 : vector<32x32xi1>, vector<32x32xf32>
    %cst_105 = arith.constant dense<0xFF800000> : vector<32xf32>
    %281 = vector.multi_reduction <maximumf>, %280, %cst_105 [1] : vector<32x32xf32> to vector<32xf32>
    %282 = vector.shape_cast %281 : vector<32xf32> to vector<32x1xf32>
    %283 = vector.broadcast %282 : vector<32x1xf32> to vector<32x32xf32>
    %284 = arith.subf %280, %283 : vector<32x32xf32>
    %285 = math.exp %284 : vector<32x32xf32>
    %cst_106 = arith.constant dense<0.000000e+00> : vector<32xf32>
    %286 = vector.multi_reduction <add>, %285, %cst_106 [1] : vector<32x32xf32> to vector<32xf32>
    %287 = vector.shape_cast %286 : vector<32xf32> to vector<32x1xf32>
    %288 = tpu.reciprocal %287 {approx = true} : vector<32x1xf32> -> vector<32x1xf32>
    %289 = vector.broadcast %288 : vector<32x1xf32> to vector<32x32xf32>
    %290 = arith.mulf %285, %289 : vector<32x32xf32>
    %291 = arith.truncf %290 : vector<32x32xf32> to vector<32x32xbf16>
    %cst_107 = arith.constant dense<0.000000e+00> : vector<32x8xf32>
    %292 = tpu.matmul %291, %275, %cst_107 {dimension_numbers = #tpu.dot_dimension_numbers<[1], [0], [0], [1], [0, 0, 1, 1], [], []>} : vector<32x32xbf16>, vector<32x8xbf16>, vector<32x8xf32> -> vector<32x8xf32>
    %293 = arith.truncf %292 : vector<32x8xf32> to vector<32x8xbf16>
    %294 = vector.extract_strided_slice %232 {offsets = [8, 0], sizes = [8, 32], strides = [1, 1]} : vector<32x32xbf16> to vector<8x32xbf16>
    %cst_108 = arith.constant dense<0.000000e+00> : vector<32x32xf32>
    %295 = tpu.matmul %293, %294, %cst_108 {dimension_numbers = #tpu.dot_dimension_numbers<[1], [0], [0], [1], [0, 0, 1, 1], [], []>} : vector<32x8xbf16>, vector<8x32xbf16>, vector<32x32xf32> -> vector<32x32xf32>
    %296 = arith.addf %267, %295 : vector<32x32xf32>
    %297 = vector.extract_strided_slice %237 {offsets = [0, 16], sizes = [32, 8], strides = [1, 1]} : vector<32x96xf32> to vector<32x8xf32>
    %cst_109 = arith.constant 0.353553385 : f32
    %298 = vector.broadcast %cst_109 : f32 to vector<32x8xf32>
    %299 = arith.mulf %297, %298 : vector<32x8xf32>
    %300 = arith.truncf %299 : vector<32x8xf32> to vector<32x8xbf16>
    %301 = vector.extract_strided_slice %237 {offsets = [0, 48], sizes = [32, 8], strides = [1, 1]} : vector<32x96xf32> to vector<32x8xf32>
    %302 = arith.truncf %301 : vector<32x8xf32> to vector<32x8xbf16>
    %303 = vector.extract_strided_slice %237 {offsets = [0, 80], sizes = [32, 8], strides = [1, 1]} : vector<32x96xf32> to vector<32x8xf32>
    %304 = arith.truncf %303 : vector<32x8xf32> to vector<32x8xbf16>
    %cst_110 = arith.constant dense<0.000000e+00> : vector<32x32xf32>
    %305 = tpu.matmul %300, %302, %cst_110 {dimension_numbers = #tpu.dot_dimension_numbers<[1], [1], [0], [0], [0, 0, 1, 0], [], []>} : vector<32x8xbf16>, vector<32x8xbf16>, vector<32x32xf32> -> vector<32x32xf32>
    %cst_111 = arith.constant -1.000000e+30 : f32
    %306 = vector.shape_cast %2 : vector<1x32xi1> to vector<1x32xi1>
    %307 = vector.broadcast %306 : vector<1x32xi1> to vector<32x32xi1>
    %308 = vector.broadcast %cst_111 : f32 to vector<32x32xf32>
    %309 = arith.select %307, %305, %308 : vector<32x32xi1>, vector<32x32xf32>
    %cst_112 = arith.constant dense<0xFF800000> : vector<32xf32>
    %310 = vector.multi_reduction <maximumf>, %309, %cst_112 [1] : vector<32x32xf32> to vector<32xf32>
    %311 = vector.shape_cast %310 : vector<32xf32> to vector<32x1xf32>
    %312 = vector.broadcast %311 : vector<32x1xf32> to vector<32x32xf32>
    %313 = arith.subf %309, %312 : vector<32x32xf32>
    %314 = math.exp %313 : vector<32x32xf32>
    %cst_113 = arith.constant dense<0.000000e+00> : vector<32xf32>
    %315 = vector.multi_reduction <add>, %314, %cst_113 [1] : vector<32x32xf32> to vector<32xf32>
    %316 = vector.shape_cast %315 : vector<32xf32> to vector<32x1xf32>
    %317 = tpu.reciprocal %316 {approx = true} : vector<32x1xf32> -> vector<32x1xf32>
    %318 = vector.broadcast %317 : vector<32x1xf32> to vector<32x32xf32>
    %319 = arith.mulf %314, %318 : vector<32x32xf32>
    %320 = arith.truncf %319 : vector<32x32xf32> to vector<32x32xbf16>
    %cst_114 = arith.constant dense<0.000000e+00> : vector<32x8xf32>
    %321 = tpu.matmul %320, %304, %cst_114 {dimension_numbers = #tpu.dot_dimension_numbers<[1], [0], [0], [1], [0, 0, 1, 1], [], []>} : vector<32x32xbf16>, vector<32x8xbf16>, vector<32x8xf32> -> vector<32x8xf32>
    %322 = arith.truncf %321 : vector<32x8xf32> to vector<32x8xbf16>
    %323 = vector.extract_strided_slice %232 {offsets = [16, 0], sizes = [8, 32], strides = [1, 1]} : vector<32x32xbf16> to vector<8x32xbf16>
    %cst_115 = arith.constant dense<0.000000e+00> : vector<32x32xf32>
    %324 = tpu.matmul %322, %323, %cst_115 {dimension_numbers = #tpu.dot_dimension_numbers<[1], [0], [0], [1], [0, 0, 1, 1], [], []>} : vector<32x8xbf16>, vector<8x32xbf16>, vector<32x32xf32> -> vector<32x32xf32>
    %325 = arith.addf %296, %324 : vector<32x32xf32>
    %326 = vector.extract_strided_slice %237 {offsets = [0, 24], sizes = [32, 8], strides = [1, 1]} : vector<32x96xf32> to vector<32x8xf32>
    %cst_116 = arith.constant 0.353553385 : f32
    %327 = vector.broadcast %cst_116 : f32 to vector<32x8xf32>
    %328 = arith.mulf %326, %327 : vector<32x8xf32>
    %329 = arith.truncf %328 : vector<32x8xf32> to vector<32x8xbf16>
    %330 = vector.extract_strided_slice %237 {offsets = [0, 56], sizes = [32, 8], strides = [1, 1]} : vector<32x96xf32> to vector<32x8xf32>
    %331 = arith.truncf %330 : vector<32x8xf32> to vector<32x8xbf16>
    %332 = vector.extract_strided_slice %237 {offsets = [0, 88], sizes = [32, 8], strides = [1, 1]} : vector<32x96xf32> to vector<32x8xf32>
    %333 = arith.truncf %332 : vector<32x8xf32> to vector<32x8xbf16>
    %cst_117 = arith.constant dense<0.000000e+00> : vector<32x32xf32>
    %334 = tpu.matmul %329, %331, %cst_117 {dimension_numbers = #tpu.dot_dimension_numbers<[1], [1], [0], [0], [0, 0, 1, 0], [], []>} : vector<32x8xbf16>, vector<32x8xbf16>, vector<32x32xf32> -> vector<32x32xf32>
    %cst_118 = arith.constant -1.000000e+30 : f32
    %335 = vector.shape_cast %2 : vector<1x32xi1> to vector<1x32xi1>
    %336 = vector.broadcast %335 : vector<1x32xi1> to vector<32x32xi1>
    %337 = vector.broadcast %cst_118 : f32 to vector<32x32xf32>
    %338 = arith.select %336, %334, %337 : vector<32x32xi1>, vector<32x32xf32>
    %cst_119 = arith.constant dense<0xFF800000> : vector<32xf32>
    %339 = vector.multi_reduction <maximumf>, %338, %cst_119 [1] : vector<32x32xf32> to vector<32xf32>
    %340 = vector.shape_cast %339 : vector<32xf32> to vector<32x1xf32>
    %341 = vector.broadcast %340 : vector<32x1xf32> to vector<32x32xf32>
    %342 = arith.subf %338, %341 : vector<32x32xf32>
    %343 = math.exp %342 : vector<32x32xf32>
    %cst_120 = arith.constant dense<0.000000e+00> : vector<32xf32>
    %344 = vector.multi_reduction <add>, %343, %cst_120 [1] : vector<32x32xf32> to vector<32xf32>
    %345 = vector.shape_cast %344 : vector<32xf32> to vector<32x1xf32>
    %346 = tpu.reciprocal %345 {approx = true} : vector<32x1xf32> -> vector<32x1xf32>
    %347 = vector.broadcast %346 : vector<32x1xf32> to vector<32x32xf32>
    %348 = arith.mulf %343, %347 : vector<32x32xf32>
    %349 = arith.truncf %348 : vector<32x32xf32> to vector<32x32xbf16>
    %cst_121 = arith.constant dense<0.000000e+00> : vector<32x8xf32>
    %350 = tpu.matmul %349, %333, %cst_121 {dimension_numbers = #tpu.dot_dimension_numbers<[1], [0], [0], [1], [0, 0, 1, 1], [], []>} : vector<32x32xbf16>, vector<32x8xbf16>, vector<32x8xf32> -> vector<32x8xf32>
    %351 = arith.truncf %350 : vector<32x8xf32> to vector<32x8xbf16>
    %352 = vector.extract_strided_slice %232 {offsets = [24, 0], sizes = [8, 32], strides = [1, 1]} : vector<32x32xbf16> to vector<8x32xbf16>
    %cst_122 = arith.constant dense<0.000000e+00> : vector<32x32xf32>
    %353 = tpu.matmul %351, %352, %cst_122 {dimension_numbers = #tpu.dot_dimension_numbers<[1], [0], [0], [1], [0, 0, 1, 1], [], []>} : vector<32x8xbf16>, vector<8x32xbf16>, vector<32x32xf32> -> vector<32x32xf32>
    %354 = arith.addf %325, %353 : vector<32x32xf32>
    %355 = vector.broadcast %233 : vector<1x32xf32> to vector<32x32xf32>
    %356 = arith.addf %354, %355 : vector<32x32xf32>
    %357 = arith.addf %207, %356 : vector<32x32xf32>
    %c0_123 = arith.constant 0 : index
    %c0_124 = arith.constant 0 : index
    %358 = vector.load %arg22[%c0_123, %c0_124] : memref<1x32xf32, #tpu.memory_space<vmem>>, vector<1x32xf32>
    %c0_125 = arith.constant 0 : index
    %c0_126 = arith.constant 0 : index
    %359 = vector.load %arg23[%c0_125, %c0_126] : memref<1x32xf32, #tpu.memory_space<vmem>>, vector<1x32xf32>
    %cst_127 = arith.constant dense<0.000000e+00> : vector<32xf32>
    %360 = vector.multi_reduction <add>, %357, %cst_127 [1] : vector<32x32xf32> to vector<32xf32>
    %361 = vector.shape_cast %360 : vector<32xf32> to vector<32x1xf32>
    %cst_128 = arith.constant 3.200000e+01 : f32
    %362 = vector.broadcast %cst_128 : f32 to vector<32x1xf32>
    %363 = arith.divf %361, %362 : vector<32x1xf32>
    %364 = vector.broadcast %363 : vector<32x1xf32> to vector<32x32xf32>
    %365 = arith.subf %357, %364 : vector<32x32xf32>
    %366 = arith.mulf %365, %365 : vector<32x32xf32>
    %cst_129 = arith.constant dense<0.000000e+00> : vector<32xf32>
    %367 = vector.multi_reduction <add>, %366, %cst_129 [1] : vector<32x32xf32> to vector<32xf32>
    %368 = vector.shape_cast %367 : vector<32xf32> to vector<32x1xf32>
    %cst_130 = arith.constant 3.200000e+01 : f32
    %369 = vector.broadcast %cst_130 : f32 to vector<32x1xf32>
    %370 = arith.divf %368, %369 : vector<32x1xf32>
    %cst_131 = arith.constant 9.99999997E-7 : f32
    %371 = vector.broadcast %cst_131 : f32 to vector<32x1xf32>
    %372 = arith.addf %370, %371 : vector<32x1xf32>
    %373 = math.rsqrt %372 : vector<32x1xf32>
    %374 = vector.broadcast %373 : vector<32x1xf32> to vector<32x32xf32>
    %375 = arith.mulf %365, %374 : vector<32x32xf32>
    %376 = vector.broadcast %358 : vector<1x32xf32> to vector<32x32xf32>
    %377 = arith.mulf %375, %376 : vector<32x32xf32>
    %378 = vector.broadcast %359 : vector<1x32xf32> to vector<32x32xf32>
    %379 = arith.addf %377, %378 : vector<32x32xf32>
    %c0_132 = arith.constant 0 : index
    %c0_133 = arith.constant 0 : index
    %380 = vector.load %arg24[%c0_132, %c0_133] : memref<32x64xbf16, #tpu.memory_space<vmem>>, vector<32x64xbf16>
    %c0_134 = arith.constant 0 : index
    %c0_135 = arith.constant 0 : index
    %381 = vector.load %arg25[%c0_134, %c0_135] : memref<1x64xf32, #tpu.memory_space<vmem>>, vector<1x64xf32>
    %382 = arith.truncf %379 : vector<32x32xf32> to vector<32x32xbf16>
    %cst_136 = arith.constant dense<0.000000e+00> : vector<32x64xf32>
    %383 = tpu.matmul %382, %380, %cst_136 {dimension_numbers = #tpu.dot_dimension_numbers<[1], [0], [0], [1], [0, 0, 1, 1], [], []>} : vector<32x32xbf16>, vector<32x64xbf16>, vector<32x64xf32> -> vector<32x64xf32>
    %384 = vector.broadcast %381 : vector<1x64xf32> to vector<32x64xf32>
    %385 = arith.addf %383, %384 : vector<32x64xf32>
    %cst_137 = arith.constant 5.000000e-01 : f32
    %386 = vector.broadcast %cst_137 : f32 to vector<32x64xf32>
    %387 = arith.mulf %386, %385 : vector<32x64xf32>
    %cst_138 = arith.constant 4.471500e-02 : f32
    %388 = vector.broadcast %cst_138 : f32 to vector<32x64xf32>
    %389 = arith.mulf %388, %385 : vector<32x64xf32>
    %390 = arith.mulf %389, %385 : vector<32x64xf32>
    %391 = arith.mulf %390, %385 : vector<32x64xf32>
    %392 = arith.addf %385, %391 : vector<32x64xf32>
    %cst_139 = arith.constant 0.797884583 : f32
    %393 = vector.broadcast %cst_139 : f32 to vector<32x64xf32>
    %394 = arith.mulf %393, %392 : vector<32x64xf32>
    %395 = math.tanh %394 : vector<32x64xf32>
    %cst_140 = arith.constant 1.000000e+00 : f32
    %396 = vector.broadcast %cst_140 : f32 to vector<32x64xf32>
    %397 = arith.addf %396, %395 : vector<32x64xf32>
    %398 = arith.mulf %387, %397 : vector<32x64xf32>
    %c0_141 = arith.constant 0 : index
    %c0_142 = arith.constant 0 : index
    %399 = vector.load %arg26[%c0_141, %c0_142] : memref<64x32xbf16, #tpu.memory_space<vmem>>, vector<64x32xbf16>
    %c0_143 = arith.constant 0 : index
    %c0_144 = arith.constant 0 : index
    %400 = vector.load %arg27[%c0_143, %c0_144] : memref<1x32xf32, #tpu.memory_space<vmem>>, vector<1x32xf32>
    %401 = arith.truncf %398 : vector<32x64xf32> to vector<32x64xbf16>
    %cst_145 = arith.constant dense<0.000000e+00> : vector<32x32xf32>
    %402 = tpu.matmul %401, %399, %cst_145 {dimension_numbers = #tpu.dot_dimension_numbers<[1], [0], [0], [1], [0, 0, 1, 1], [], []>} : vector<32x64xbf16>, vector<64x32xbf16>, vector<32x32xf32> -> vector<32x32xf32>
    %403 = vector.broadcast %400 : vector<1x32xf32> to vector<32x32xf32>
    %404 = arith.addf %402, %403 : vector<32x32xf32>
    %405 = arith.addf %357, %404 : vector<32x32xf32>
    %c0_146 = arith.constant 0 : index
    %c0_147 = arith.constant 0 : index
    %406 = vector.load %arg28[%c0_146, %c0_147] : memref<1x32xf32, #tpu.memory_space<vmem>>, vector<1x32xf32>
    %c0_148 = arith.constant 0 : index
    %c0_149 = arith.constant 0 : index
    %407 = vector.load %arg29[%c0_148, %c0_149] : memref<1x32xf32, #tpu.memory_space<vmem>>, vector<1x32xf32>
    %cst_150 = arith.constant dense<0.000000e+00> : vector<32xf32>
    %408 = vector.multi_reduction <add>, %405, %cst_150 [1] : vector<32x32xf32> to vector<32xf32>
    %409 = vector.shape_cast %408 : vector<32xf32> to vector<32x1xf32>
    %cst_151 = arith.constant 3.200000e+01 : f32
    %410 = vector.broadcast %cst_151 : f32 to vector<32x1xf32>
    %411 = arith.divf %409, %410 : vector<32x1xf32>
    %412 = vector.broadcast %411 : vector<32x1xf32> to vector<32x32xf32>
    %413 = arith.subf %405, %412 : vector<32x32xf32>
    %414 = arith.mulf %413, %413 : vector<32x32xf32>
    %cst_152 = arith.constant dense<0.000000e+00> : vector<32xf32>
    %415 = vector.multi_reduction <add>, %414, %cst_152 [1] : vector<32x32xf32> to vector<32xf32>
    %416 = vector.shape_cast %415 : vector<32xf32> to vector<32x1xf32>
    %cst_153 = arith.constant 3.200000e+01 : f32
    %417 = vector.broadcast %cst_153 : f32 to vector<32x1xf32>
    %418 = arith.divf %416, %417 : vector<32x1xf32>
    %cst_154 = arith.constant 9.99999997E-7 : f32
    %419 = vector.broadcast %cst_154 : f32 to vector<32x1xf32>
    %420 = arith.addf %418, %419 : vector<32x1xf32>
    %421 = math.rsqrt %420 : vector<32x1xf32>
    %422 = vector.broadcast %421 : vector<32x1xf32> to vector<32x32xf32>
    %423 = arith.mulf %413, %422 : vector<32x32xf32>
    %424 = vector.broadcast %406 : vector<1x32xf32> to vector<32x32xf32>
    %425 = arith.mulf %423, %424 : vector<32x32xf32>
    %426 = vector.broadcast %407 : vector<1x32xf32> to vector<32x32xf32>
    %427 = arith.addf %425, %426 : vector<32x32xf32>
    %c0_155 = arith.constant 0 : index
    %c0_156 = arith.constant 0 : index
    %428 = vector.load %arg30[%c0_155, %c0_156] : memref<32x32xbf16, #tpu.memory_space<vmem>>, vector<32x32xbf16>
    %c0_157 = arith.constant 0 : index
    %c0_158 = arith.constant 0 : index
    %429 = vector.load %arg31[%c0_157, %c0_158] : memref<1x32xf32, #tpu.memory_space<vmem>>, vector<1x32xf32>
    %430 = arith.truncf %427 : vector<32x32xf32> to vector<32x32xbf16>
    %cst_159 = arith.constant dense<0.000000e+00> : vector<32x32xf32>
    %431 = tpu.matmul %430, %428, %cst_159 {dimension_numbers = #tpu.dot_dimension_numbers<[1], [0], [0], [1], [0, 0, 1, 1], [], []>} : vector<32x32xbf16>, vector<32x32xbf16>, vector<32x32xf32> -> vector<32x32xf32>
    %432 = vector.broadcast %429 : vector<1x32xf32> to vector<32x32xf32>
    %433 = arith.addf %431, %432 : vector<32x32xf32>
    %cst_160 = arith.constant 5.000000e-01 : f32
    %434 = vector.broadcast %cst_160 : f32 to vector<32x32xf32>
    %435 = arith.mulf %434, %433 : vector<32x32xf32>
    %cst_161 = arith.constant 4.471500e-02 : f32
    %436 = vector.broadcast %cst_161 : f32 to vector<32x32xf32>
    %437 = arith.mulf %436, %433 : vector<32x32xf32>
    %438 = arith.mulf %437, %433 : vector<32x32xf32>
    %439 = arith.mulf %438, %433 : vector<32x32xf32>
    %440 = arith.addf %433, %439 : vector<32x32xf32>
    %cst_162 = arith.constant 0.797884583 : f32
    %441 = vector.broadcast %cst_162 : f32 to vector<32x32xf32>
    %442 = arith.mulf %441, %440 : vector<32x32xf32>
    %443 = math.tanh %442 : vector<32x32xf32>
    %cst_163 = arith.constant 1.000000e+00 : f32
    %444 = vector.broadcast %cst_163 : f32 to vector<32x32xf32>
    %445 = arith.addf %444, %443 : vector<32x32xf32>
    %446 = arith.mulf %435, %445 : vector<32x32xf32>
    %c0_164 = arith.constant 0 : index
    %c0_165 = arith.constant 0 : index
    %447 = vector.load %arg32[%c0_164, %c0_165] : memref<32x32xbf16, #tpu.memory_space<vmem>>, vector<32x32xbf16>
    %c0_166 = arith.constant 0 : index
    %c0_167 = arith.constant 0 : index
    %448 = vector.load %arg33[%c0_166, %c0_167] : memref<1x32xf32, #tpu.memory_space<vmem>>, vector<1x32xf32>
    %449 = arith.truncf %446 : vector<32x32xf32> to vector<32x32xbf16>
    %cst_168 = arith.constant dense<0.000000e+00> : vector<32x32xf32>
    %450 = tpu.matmul %449, %447, %cst_168 {dimension_numbers = #tpu.dot_dimension_numbers<[1], [0], [0], [1], [0, 0, 1, 1], [], []>} : vector<32x32xbf16>, vector<32x32xbf16>, vector<32x32xf32> -> vector<32x32xf32>
    %451 = vector.broadcast %448 : vector<1x32xf32> to vector<32x32xf32>
    %452 = arith.addf %450, %451 : vector<32x32xf32>
    %c0_169 = arith.constant 0 : index
    %c0_170 = arith.constant 0 : index
    %453 = vector.load %arg34[%c0_169, %c0_170] : memref<1x32xf32, #tpu.memory_space<vmem>>, vector<1x32xf32>
    %c0_171 = arith.constant 0 : index
    %c0_172 = arith.constant 0 : index
    %454 = vector.load %arg35[%c0_171, %c0_172] : memref<1x32xf32, #tpu.memory_space<vmem>>, vector<1x32xf32>
    %cst_173 = arith.constant dense<0.000000e+00> : vector<32xf32>
    %455 = vector.multi_reduction <add>, %452, %cst_173 [1] : vector<32x32xf32> to vector<32xf32>
    %456 = vector.shape_cast %455 : vector<32xf32> to vector<32x1xf32>
    %cst_174 = arith.constant 3.200000e+01 : f32
    %457 = vector.broadcast %cst_174 : f32 to vector<32x1xf32>
    %458 = arith.divf %456, %457 : vector<32x1xf32>
    %459 = vector.broadcast %458 : vector<32x1xf32> to vector<32x32xf32>
    %460 = arith.subf %452, %459 : vector<32x32xf32>
    %461 = arith.mulf %460, %460 : vector<32x32xf32>
    %cst_175 = arith.constant dense<0.000000e+00> : vector<32xf32>
    %462 = vector.multi_reduction <add>, %461, %cst_175 [1] : vector<32x32xf32> to vector<32xf32>
    %463 = vector.shape_cast %462 : vector<32xf32> to vector<32x1xf32>
    %cst_176 = arith.constant 3.200000e+01 : f32
    %464 = vector.broadcast %cst_176 : f32 to vector<32x1xf32>
    %465 = arith.divf %463, %464 : vector<32x1xf32>
    %cst_177 = arith.constant 9.99999974E-6 : f32
    %466 = vector.broadcast %cst_177 : f32 to vector<32x1xf32>
    %467 = arith.addf %465, %466 : vector<32x1xf32>
    %468 = math.rsqrt %467 : vector<32x1xf32>
    %469 = vector.broadcast %468 : vector<32x1xf32> to vector<32x32xf32>
    %470 = arith.mulf %460, %469 : vector<32x32xf32>
    %471 = vector.broadcast %453 : vector<1x32xf32> to vector<32x32xf32>
    %472 = arith.mulf %470, %471 : vector<32x32xf32>
    %473 = vector.broadcast %454 : vector<1x32xf32> to vector<32x32xf32>
    %474 = arith.addf %472, %473 : vector<32x32xf32>
    %475 = vector.extract_strided_slice %474 {offsets = [0, 0], sizes = [17, 32], strides = [1, 1]} : vector<32x32xf32> to vector<17x32xf32>
    %c0_178 = arith.constant 0 : index
    %c0_179 = arith.constant 0 : index
    %c0_180 = arith.constant 0 : index
    %476 = vector.load %arg36[%c0_178, %c0_179, %c0_180] : memref<1x17x32xf32, #tpu.memory_space<vmem>>, vector<1x17x32xf32>
    %477 = vector.shape_cast %476 : vector<1x17x32xf32> to vector<17x32xf32>
    %478 = vector.shape_cast %475 : vector<17x32xf32> to vector<1x17x32xf32>
    tpu.vector_store %arg36[%c0_178, %c0_179, %c0_180], %478 {strides = array<i32>} : memref<1x17x32xf32, #tpu.memory_space<vmem>>, vector<1x17x32xf32>,
    return
  }
  func.func @transform_0(%arg0: i32) -> (i32, i32, i32) {
    %c0_i32 = arith.constant 0 : i32
    %c0_i32_0 = arith.constant 0 : i32
    %c0_i32_1 = arith.constant 0 : i32
    return %arg0, %c0_i32, %c0_i32_0 : i32, i32, i32
  }
  func.func @transform_1(%arg0: i32) -> (i32, i32) {
    %c0_i32 = arith.constant 0 : i32
    %c0_i32_0 = arith.constant 0 : i32
    %c0_i32_1 = arith.constant 0 : i32
    return %c0_i32, %c0_i32_0 : i32, i32
  }
  func.func @transform_2(%arg0: i32) -> (i32, i32) {
    %c0_i32 = arith.constant 0 : i32
    %c0_i32_0 = arith.constant 0 : i32
    %c0_i32_1 = arith.constant 0 : i32
    return %c0_i32, %c0_i32_0 : i32, i32
  }
  func.func @transform_3(%arg0: i32) -> (i32, i32) {
    %c0_i32 = arith.constant 0 : i32
    %c0_i32_0 = arith.constant 0 : i32
    %c0_i32_1 = arith.constant 0 : i32
    return %c0_i32, %c0_i32_0 : i32, i32
  }
  func.func @transform_4(%arg0: i32) -> (i32, i32) {
    %c0_i32 = arith.constant 0 : i32
    %c0_i32_0 = arith.constant 0 : i32
    %c0_i32_1 = arith.constant 0 : i32
    return %c0_i32, %c0_i32_0 : i32, i32
  }
  func.func @transform_5(%arg0: i32) -> (i32, i32) {
    %c0_i32 = arith.constant 0 : i32
    %c0_i32_0 = arith.constant 0 : i32
    %c0_i32_1 = arith.constant 0 : i32
    return %c0_i32, %c0_i32_0 : i32, i32
  }
  func.func @transform_6(%arg0: i32) -> (i32, i32) {
    %c0_i32 = arith.constant 0 : i32
    %c0_i32_0 = arith.constant 0 : i32
    %c0_i32_1 = arith.constant 0 : i32
    return %c0_i32, %c0_i32_0 : i32, i32
  }
  func.func @transform_7(%arg0: i32) -> (i32, i32) {
    %c0_i32 = arith.constant 0 : i32
    %c0_i32_0 = arith.constant 0 : i32
    %c0_i32_1 = arith.constant 0 : i32
    return %c0_i32, %c0_i32_0 : i32, i32
  }
  func.func @transform_8(%arg0: i32) -> (i32, i32) {
    %c0_i32 = arith.constant 0 : i32
    %c0_i32_0 = arith.constant 0 : i32
    %c0_i32_1 = arith.constant 0 : i32
    return %c0_i32, %c0_i32_0 : i32, i32
  }
  func.func @transform_9(%arg0: i32) -> (i32, i32) {
    %c0_i32 = arith.constant 0 : i32
    %c0_i32_0 = arith.constant 0 : i32
    %c0_i32_1 = arith.constant 0 : i32
    return %c0_i32, %c0_i32_0 : i32, i32
  }
  func.func @transform_10(%arg0: i32) -> (i32, i32) {
    %c0_i32 = arith.constant 0 : i32
    %c0_i32_0 = arith.constant 0 : i32
    %c0_i32_1 = arith.constant 0 : i32
    return %c0_i32, %c0_i32_0 : i32, i32
  }
  func.func @transform_11(%arg0: i32) -> (i32, i32) {
    %c0_i32 = arith.constant 0 : i32
    %c0_i32_0 = arith.constant 0 : i32
    %c0_i32_1 = arith.constant 0 : i32
    return %c0_i32, %c0_i32_0 : i32, i32
  }
  func.func @transform_12(%arg0: i32) -> (i32, i32) {
    %c0_i32 = arith.constant 0 : i32
    %c0_i32_0 = arith.constant 0 : i32
    %c0_i32_1 = arith.constant 0 : i32
    return %c0_i32, %c0_i32_0 : i32, i32
  }
  func.func @transform_13(%arg0: i32) -> (i32, i32) {
    %c0_i32 = arith.constant 0 : i32
    %c0_i32_0 = arith.constant 0 : i32
    %c0_i32_1 = arith.constant 0 : i32
    return %c0_i32, %c0_i32_0 : i32, i32
  }
  func.func @transform_14(%arg0: i32) -> (i32, i32) {
    %c0_i32 = arith.constant 0 : i32
    %c0_i32_0 = arith.constant 0 : i32
    %c0_i32_1 = arith.constant 0 : i32
    return %c0_i32, %c0_i32_0 : i32, i32
  }
  func.func @transform_15(%arg0: i32) -> (i32, i32) {
    %c0_i32 = arith.constant 0 : i32
    %c0_i32_0 = arith.constant 0 : i32
    %c0_i32_1 = arith.constant 0 : i32
    return %c0_i32, %c0_i32_0 : i32, i32
  }
  func.func @transform_16(%arg0: i32) -> (i32, i32) {
    %c0_i32 = arith.constant 0 : i32
    %c0_i32_0 = arith.constant 0 : i32
    %c0_i32_1 = arith.constant 0 : i32
    return %c0_i32, %c0_i32_0 : i32, i32
  }
  func.func @transform_17(%arg0: i32) -> (i32, i32) {
    %c0_i32 = arith.constant 0 : i32
    %c0_i32_0 = arith.constant 0 : i32
    %c0_i32_1 = arith.constant 0 : i32
    return %c0_i32, %c0_i32_0 : i32, i32
  }
  func.func @transform_18(%arg0: i32) -> (i32, i32) {
    %c0_i32 = arith.constant 0 : i32
    %c0_i32_0 = arith.constant 0 : i32
    %c0_i32_1 = arith.constant 0 : i32
    return %c0_i32, %c0_i32_0 : i32, i32
  }
  func.func @transform_19(%arg0: i32) -> (i32, i32) {
    %c0_i32 = arith.constant 0 : i32
    %c0_i32_0 = arith.constant 0 : i32
    %c0_i32_1 = arith.constant 0 : i32
    return %c0_i32, %c0_i32_0 : i32, i32
  }
  func.func @transform_20(%arg0: i32) -> (i32, i32) {
    %c0_i32 = arith.constant 0 : i32
    %c0_i32_0 = arith.constant 0 : i32
    %c0_i32_1 = arith.constant 0 : i32
    return %c0_i32, %c0_i32_0 : i32, i32
  }
  func.func @transform_21(%arg0: i32) -> (i32, i32) {
    %c0_i32 = arith.constant 0 : i32
    %c0_i32_0 = arith.constant 0 : i32
    %c0_i32_1 = arith.constant 0 : i32
    return %c0_i32, %c0_i32_0 : i32, i32
  }
  func.func @transform_22(%arg0: i32) -> (i32, i32) {
    %c0_i32 = arith.constant 0 : i32
    %c0_i32_0 = arith.constant 0 : i32
    %c0_i32_1 = arith.constant 0 : i32
    return %c0_i32, %c0_i32_0 : i32, i32
  }
  func.func @transform_23(%arg0: i32) -> (i32, i32) {
    %c0_i32 = arith.constant 0 : i32
    %c0_i32_0 = arith.constant 0 : i32
    %c0_i32_1 = arith.constant 0 : i32
    return %c0_i32, %c0_i32_0 : i32, i32
  }
  func.func @transform_24(%arg0: i32) -> (i32, i32) {
    %c0_i32 = arith.constant 0 : i32
    %c0_i32_0 = arith.constant 0 : i32
    %c0_i32_1 = arith.constant 0 : i32
    return %c0_i32, %c0_i32_0 : i32, i32
  }
  func.func @transform_25(%arg0: i32) -> (i32, i32) {
    %c0_i32 = arith.constant 0 : i32
    %c0_i32_0 = arith.constant 0 : i32
    %c0_i32_1 = arith.constant 0 : i32
    return %c0_i32, %c0_i32_0 : i32, i32
  }
  func.func @transform_26(%arg0: i32) -> (i32, i32) {
    %c0_i32 = arith.constant 0 : i32
    %c0_i32_0 = arith.constant 0 : i32
    %c0_i32_1 = arith.constant 0 : i32
    return %c0_i32, %c0_i32_0 : i32, i32
  }
  func.func @transform_27(%arg0: i32) -> (i32, i32) {
    %c0_i32 = arith.constant 0 : i32
    %c0_i32_0 = arith.constant 0 : i32
    %c0_i32_1 = arith.constant 0 : i32
    return %c0_i32, %c0_i32_0 : i32, i32
  }
  func.func @transform_28(%arg0: i32) -> (i32, i32) {
    %c0_i32 = arith.constant 0 : i32
    %c0_i32_0 = arith.constant 0 : i32
    %c0_i32_1 = arith.constant 0 : i32
    return %c0_i32, %c0_i32_0 : i32, i32
  }
  func.func @transform_29(%arg0: i32) -> (i32, i32) {
    %c0_i32 = arith.constant 0 : i32
    %c0_i32_0 = arith.constant 0 : i32
    %c0_i32_1 = arith.constant 0 : i32
    return %c0_i32, %c0_i32_0 : i32, i32
  }
  func.func @transform_30(%arg0: i32) -> (i32, i32) {
    %c0_i32 = arith.constant 0 : i32
    %c0_i32_0 = arith.constant 0 : i32
    %c0_i32_1 = arith.constant 0 : i32
    return %c0_i32, %c0_i32_0 : i32, i32
  }
  func.func @transform_31(%arg0: i32) -> (i32, i32) {
    %c0_i32 = arith.constant 0 : i32
    %c0_i32_0 = arith.constant 0 : i32
    %c0_i32_1 = arith.constant 0 : i32
    return %c0_i32, %c0_i32_0 : i32, i32
  }
  func.func @transform_32(%arg0: i32) -> (i32, i32) {
    %c0_i32 = arith.constant 0 : i32
    %c0_i32_0 = arith.constant 0 : i32
    %c0_i32_1 = arith.constant 0 : i32
    return %c0_i32, %c0_i32_0 : i32, i32
  }
  func.func @transform_33(%arg0: i32) -> (i32, i32) {
    %c0_i32 = arith.constant 0 : i32
    %c0_i32_0 = arith.constant 0 : i32
    %c0_i32_1 = arith.constant 0 : i32
    return %c0_i32, %c0_i32_0 : i32, i32
  }
  func.func @transform_34(%arg0: i32) -> (i32, i32) {
    %c0_i32 = arith.constant 0 : i32
    %c0_i32_0 = arith.constant 0 : i32
    %c0_i32_1 = arith.constant 0 : i32
    return %c0_i32, %c0_i32_0 : i32, i32
  }
  func.func @transform_35(%arg0: i32) -> (i32, i32, i32) {
    %c0_i32 = arith.constant 0 : i32
    %c0_i32_0 = arith.constant 0 : i32
    %c0_i32_1 = arith.constant 0 : i32
    return %arg0, %c0_i32, %c0_i32_0 : i32, i32, i32
  }
}

</mosaic_0001>

<llo_original>
// kernel: image_encoder_forward.1
$region0: #{image_encoder_forward.1}
  #allocation0 [shape = 'u32[]', space=smem, size = 0x4, offset = 0x4, fixed_abs, tag = 'smem constant byte address 0x4 - core index']
  #allocation1 [shape = 'u32[72,128]{1,0:T(1,128)}', space=vmem, size = 0x9000, scoped, tag = 'internal scratch']
  %s0 = inlined_call_operand.smem [shape: u32[36], index: -1, kind: input, shape index: {}]
  %s1 = sld [smem:[%s0]]
  %s2 = scalar_lea.smem %s0, 1
  %s3 = sld [smem:[%s2]]
  %s4 = scalar_lea.smem %s0, 2
  %s5 = sld [smem:[%s4]]
  %s6 = scalar_lea.smem %s0, 3
  %s7 = sld [smem:[%s6]]
  %s8 = scalar_lea.smem %s0, 4
  %s9 = sld [smem:[%s8]]
  %s10 = scalar_lea.smem %s0, 5
  %s11 = sld [smem:[%s10]]
  %s12 = scalar_lea.smem %s0, 6
  %s13 = sld [smem:[%s12]]
  %s14 = scalar_lea.smem %s0, 7
  %s15 = sld [smem:[%s14]]
  %s16 = scalar_lea.smem %s0, 8
  %s17 = sld [smem:[%s16]]
  %s18 = scalar_lea.smem %s0, 9
  %s19 = sld [smem:[%s18]]
  %s20 = scalar_lea.smem %s0, 10
  %s21 = sld [smem:[%s20]]
  %s22 = scalar_lea.smem %s0, 11
  %s23 = sld [smem:[%s22]]
  %s24 = scalar_lea.smem %s0, 12
  %s25 = sld [smem:[%s24]]
  %s26 = scalar_lea.smem %s0, 13
  %s27 = sld [smem:[%s26]]
  %s28 = scalar_lea.smem %s0, 14
  %s29 = sld [smem:[%s28]]
  %s30 = scalar_lea.smem %s0, 15
  %s31 = sld [smem:[%s30]]
  %s32 = scalar_lea.smem %s0, 16
  %s33 = sld [smem:[%s32]]
  %s34 = scalar_lea.smem %s0, 17
  %s35 = sld [smem:[%s34]]
  %s36 = scalar_lea.smem %s0, 18
  %s37 = sld [smem:[%s36]]
  %s38 = scalar_lea.smem %s0, 19
  %s39 = sld [smem:[%s38]]
  %s40 = scalar_lea.smem %s0, 20
  %s41 = sld [smem:[%s40]]
  %s42 = scalar_lea.smem %s0, 21
  %s43 = sld [smem:[%s42]]
  %s44 = scalar_lea.smem %s0, 22
  %s45 = sld [smem:[%s44]]
  %s46 = scalar_lea.smem %s0, 23
  %s47 = sld [smem:[%s46]]
  %s48 = scalar_lea.smem %s0, 24
  %s49 = sld [smem:[%s48]]
  %s50 = scalar_lea.smem %s0, 25
  %s51 = sld [smem:[%s50]]
  %s52 = scalar_lea.smem %s0, 26
  %s53 = sld [smem:[%s52]]
  %s54 = scalar_lea.smem %s0, 27
  %s55 = sld [smem:[%s54]]
  %s56 = scalar_lea.smem %s0, 28
  %s57 = sld [smem:[%s56]]
  %s58 = scalar_lea.smem %s0, 29
  %s59 = sld [smem:[%s58]]
  %s60 = scalar_lea.smem %s0, 30
  %s61 = sld [smem:[%s60]]
  %s62 = scalar_lea.smem %s0, 31
  %s63 = sld [smem:[%s62]]
  %s64 = scalar_lea.smem %s0, 32
  %s65 = sld [smem:[%s64]]
  %s66 = scalar_lea.smem %s0, 33
  %s67 = sld [smem:[%s66]]
  %s68 = scalar_lea.smem %s0, 34
  %s69 = sld [smem:[%s68]]
  %s70 = scalar_lea.smem %s0, 35
  %s71 = sld [smem:[%s70]]
  %s72 = sld [smem:[#allocation0]]
  $region173: #{image_encoder_forward.1} parent=0
    _
  %s74 = ssub.s32 1, %s72
  %s75 = scalar_select 0, %s74, %s72
  loop: start=0, step=1, limit=4
  $region2: #{image_encoder_forward.1} parent=0 // loop_pre_header
    _
  $region3: #{image_encoder_forward.1} parent=0 // loop_header
    %s77 = sphi 0, %s81
    %p78 = scmp.ge.s32.totalorder %s77, 4
    %s87 = sphi 0, %s89
    %s90 = sphi 0, %s87
    %s91 = sphi 0, %s90
    %s107 = sphi 0, %s91
    %s111 = sphi 0, %s111
    %s113 = sphi 0, %s111
    %s114 = sphi 0, %s113
    %s128 = sphi 0, %s114
    %s132 = sphi 0, %s132
    %s134 = sphi 0, %s132
    %s135 = sphi 0, %s134
    %s149 = sphi 0, %s135
    %s153 = sphi 0, %s153
    %s155 = sphi 0, %s153
    %s156 = sphi 0, %s155
    %s170 = sphi 0, %s156
    %s174 = sphi 0, %s174
    %s176 = sphi 0, %s174
    %s177 = sphi 0, %s176
    %s191 = sphi 0, %s177
    %s195 = sphi 0, %s195
    %s197 = sphi 0, %s195
    %s198 = sphi 0, %s197
    %s212 = sphi 0, %s198
    %s216 = sphi 0, %s216
    %s218 = sphi 0, %s216
    %s219 = sphi 0, %s218
    %s233 = sphi 0, %s219
    %s237 = sphi 0, %s237
    %s239 = sphi 0, %s237
    %s240 = sphi 0, %s239
    %s254 = sphi 0, %s240
    %s258 = sphi 0, %s258
    %s260 = sphi 0, %s258
    %s261 = sphi 0, %s260
    %s275 = sphi 0, %s261
    %s279 = sphi 0, %s279
    %s281 = sphi 0, %s279
    %s282 = sphi 0, %s281
    %s296 = sphi 0, %s282
    %s300 = sphi 0, %s300
    %s302 = sphi 0, %s300
    %s303 = sphi 0, %s302
    %s317 = sphi 0, %s303
    %s321 = sphi 0, %s321
    %s323 = sphi 0, %s321
    %s324 = sphi 0, %s323
    %s338 = sphi 0, %s324
    %s342 = sphi 0, %s342
    %s344 = sphi 0, %s342
    %s345 = sphi 0, %s344
    %s359 = sphi 0, %s345
    %s363 = sphi 0, %s363
    %s365 = sphi 0, %s363
    %s366 = sphi 0, %s365
    %s380 = sphi 0, %s366
    %s384 = sphi 0, %s384
    %s386 = sphi 0, %s384
    %s387 = sphi 0, %s386
    %s401 = sphi 0, %s387
    %s405 = sphi 0, %s405
    %s407 = sphi 0, %s405
    %s408 = sphi 0, %s407
    %s422 = sphi 0, %s408
    %s426 = sphi 0, %s426
    %s428 = sphi 0, %s426
    %s429 = sphi 0, %s428
    %s443 = sphi 0, %s429
    %s447 = sphi 0, %s447
    %s449 = sphi 0, %s447
    %s450 = sphi 0, %s449
    %s464 = sphi 0, %s450
    %s468 = sphi 0, %s468
    %s470 = sphi 0, %s468
    %s471 = sphi 0, %s470
    %s485 = sphi 0, %s471
    %s489 = sphi 0, %s489
    %s491 = sphi 0, %s489
    %s492 = sphi 0, %s491
    %s506 = sphi 0, %s492
    %s510 = sphi 0, %s510
    %s512 = sphi 0, %s510
    %s513 = sphi 0, %s512
    %s527 = sphi 0, %s513
    %s531 = sphi 0, %s531
    %s533 = sphi 0, %s531
    %s534 = sphi 0, %s533
    %s548 = sphi 0, %s534
    %s552 = sphi 0, %s552
    %s554 = sphi 0, %s552
    %s555 = sphi 0, %s554
    %s569 = sphi 0, %s555
    %s573 = sphi 0, %s573
    %s575 = sphi 0, %s573
    %s576 = sphi 0, %s575
    %s590 = sphi 0, %s576
    %s594 = sphi 0, %s594
    %s596 = sphi 0, %s594
    %s597 = sphi 0, %s596
    %s611 = sphi 0, %s597
    %s615 = sphi 0, %s615
    %s617 = sphi 0, %s615
    %s618 = sphi 0, %s617
    %s632 = sphi 0, %s618
    %s636 = sphi 0, %s636
    %s638 = sphi 0, %s636
    %s639 = sphi 0, %s638
    %s653 = sphi 0, %s639
    %s657 = sphi 0, %s657
    %s659 = sphi 0, %s657
    %s660 = sphi 0, %s659
    %s674 = sphi 0, %s660
    %s678 = sphi 0, %s678
    %s680 = sphi 0, %s678
    %s681 = sphi 0, %s680
    %s695 = sphi 0, %s681
    %s699 = sphi 0, %s699
    %s701 = sphi 0, %s699
    %s702 = sphi 0, %s701
    %s716 = sphi 0, %s702
    %s720 = sphi 0, %s720
    %s722 = sphi 0, %s720
    %s723 = sphi 0, %s722
    %s737 = sphi 0, %s723
    %s741 = sphi 0, %s741
    %s743 = sphi 0, %s741
    %s744 = sphi 0, %s743
    %s758 = sphi 0, %s744
    %s762 = sphi 0, %s762
    %s764 = sphi 0, %s762
    %s765 = sphi 0, %s764
    %s779 = sphi 0, %s765
    %s783 = sphi 0, %s783
    %s785 = sphi 0, %s783
    %s786 = sphi 0, %s785
    %s800 = sphi 0, %s786
    %s804 = sphi 0, %s804
    %s806 = sphi 0, %s804
    %s807 = sphi 0, %s806
    %s821 = sphi 0, %s807
    %s827 = sphi 0, %s829
    %s830 = sphi 0, %s827
    %s831 = sphi 0, %s830
    %s847 = sphi 0, %s831
  $region4: #{image_encoder_forward.1} parent=0 // loop_header_branch
    %80 = sbr.rel (%p78) target = $region8
  $region5: #{image_encoder_forward.1} parent=0 // loop_body
    %s82 = ssub.s32 %s77, 1
    %s83 = ssub.s32 %s77, 2
    %s84 = sadd.s32 %s77, 1
    %s85 = ssub.s32 %s77, %s84
    %p86 = scmp.eq.s32.totalorder %s85, 0
    %s88 = sadd.s32 %s87, 1
    %s89 = scalar_select %p86, %s87, %s88
    %p92 = pneg %p86
    %p93 = scmp.eq.s32.totalorder %s77, 1
    %p94 = por %p92, %p93
    %p95 = scmp.ne.s32.totalorder %s87, %s90
    %p96 = scmp.eq.s32.totalorder %s77, 0
    %p97 = por %p95, %p96
    %p98 = scmp.ne.s32.totalorder %s87, %s90
    %p99 = scmp.eq.s32.totalorder %s82, 1
    %p100 = por %p98, %p99
    %p101 = scmp.ne.s32.totalorder %s90, %s91
    %p102 = scmp.eq.s32.totalorder %s82, 0
    %p103 = por %p101, %p102
    %p104 = scmp.ne.s32.totalorder %s90, %s91
    %p105 = scmp.eq.s32.totalorder %s83, 1
    %p106 = por %p104, %p105
    %p108 = scmp.ne.s32.totalorder %s91, %s107
    %p109 = scmp.eq.s32.totalorder %s83, 0
    %p110 = por %p108, %p109
    %s112 = sadd.s32 %s111, 1
    %p115 = scmp.eq.s32.totalorder %s77, 1
    %p116 = scmp.ne.s32.totalorder %s111, %s113
    %p117 = scmp.eq.s32.totalorder %s77, 0
    %p118 = por %p116, %p117
    %p119 = scmp.ne.s32.totalorder %s111, %s113
    %p120 = scmp.eq.s32.totalorder %s82, 1
    %p121 = por %p119, %p120
    %p122 = scmp.ne.s32.totalorder %s113, %s114
    %p123 = scmp.eq.s32.totalorder %s82, 0
    %p124 = por %p122, %p123
    %p125 = scmp.ne.s32.totalorder %s113, %s114
    %p126 = scmp.eq.s32.totalorder %s83, 1
    %p127 = por %p125, %p126
    %p129 = scmp.ne.s32.totalorder %s114, %s128
    %p130 = scmp.eq.s32.totalorder %s83, 0
    %p131 = por %p129, %p130
    %s133 = sadd.s32 %s132, 1
    %p136 = scmp.eq.s32.totalorder %s77, 1
    %p137 = scmp.ne.s32.totalorder %s132, %s134
    %p138 = scmp.eq.s32.totalorder %s77, 0
    %p139 = por %p137, %p138
    %p140 = scmp.ne.s32.totalorder %s132, %s134
    %p141 = scmp.eq.s32.totalorder %s82, 1
    %p142 = por %p140, %p141
    %p143 = scmp.ne.s32.totalorder %s134, %s135
    %p144 = scmp.eq.s32.totalorder %s82, 0
    %p145 = por %p143, %p144
    %p146 = scmp.ne.s32.totalorder %s134, %s135
    %p147 = scmp.eq.s32.totalorder %s83, 1
    %p148 = por %p146, %p147
    %p150 = scmp.ne.s32.totalorder %s135, %s149
    %p151 = scmp.eq.s32.totalorder %s83, 0
    %p152 = por %p150, %p151
    %s154 = sadd.s32 %s153, 1
    %p157 = scmp.eq.s32.totalorder %s77, 1
    %p158 = scmp.ne.s32.totalorder %s153, %s155
    %p159 = scmp.eq.s32.totalorder %s77, 0
    %p160 = por %p158, %p159
    %p161 = scmp.ne.s32.totalorder %s153, %s155
    %p162 = scmp.eq.s32.totalorder %s82, 1
    %p163 = por %p161, %p162
    %p164 = scmp.ne.s32.totalorder %s155, %s156
    %p165 = scmp.eq.s32.totalorder %s82, 0
    %p166 = por %p164, %p165
    %p167 = scmp.ne.s32.totalorder %s155, %s156
    %p168 = scmp.eq.s32.totalorder %s83, 1
    %p169 = por %p167, %p168
    %p171 = scmp.ne.s32.totalorder %s156, %s170
    %p172 = scmp.eq.s32.totalorder %s83, 0
    %p173 = por %p171, %p172
    %s175 = sadd.s32 %s174, 1
    %p178 = scmp.eq.s32.totalorder %s77, 1
    %p179 = scmp.ne.s32.totalorder %s174, %s176
    %p180 = scmp.eq.s32.totalorder %s77, 0
    %p181 = por %p179, %p180
    %p182 = scmp.ne.s32.totalorder %s174, %s176
    %p183 = scmp.eq.s32.totalorder %s82, 1
    %p184 = por %p182, %p183
    %p185 = scmp.ne.s32.totalorder %s176, %s177
    %p186 = scmp.eq.s32.totalorder %s82, 0
    %p187 = por %p185, %p186
    %p188 = scmp.ne.s32.totalorder %s176, %s177
    %p189 = scmp.eq.s32.totalorder %s83, 1
    %p190 = por %p188, %p189
    %p192 = scmp.ne.s32.totalorder %s177, %s191
    %p193 = scmp.eq.s32.totalorder %s83, 0
    %p194 = por %p192, %p193
    %s196 = sadd.s32 %s195, 1
    %p199 = scmp.eq.s32.totalorder %s77, 1
    %p200 = scmp.ne.s32.totalorder %s195, %s197
    %p201 = scmp.eq.s32.totalorder %s77, 0
    %p202 = por %p200, %p201
    %p203 = scmp.ne.s32.totalorder %s195, %s197
    %p204 = scmp.eq.s32.totalorder %s82, 1
    %p205 = por %p203, %p204
    %p206 = scmp.ne.s32.totalorder %s197, %s198
    %p207 = scmp.eq.s32.totalorder %s82, 0
    %p208 = por %p206, %p207
    %p209 = scmp.ne.s32.totalorder %s197, %s198
    %p210 = scmp.eq.s32.totalorder %s83, 1
    %p211 = por %p209, %p210
    %p213 = scmp.ne.s32.totalorder %s198, %s212
    %p214 = scmp.eq.s32.totalorder %s83, 0
    %p215 = por %p213, %p214
    %s217 = sadd.s32 %s216, 1
    %p220 = scmp.eq.s32.totalorder %s77, 1
    %p221 = scmp.ne.s32.totalorder %s216, %s218
    %p222 = scmp.eq.s32.totalorder %s77, 0
    %p223 = por %p221, %p222
    %p224 = scmp.ne.s32.totalorder %s216, %s218
    %p225 = scmp.eq.s32.totalorder %s82, 1
    %p226 = por %p224, %p225
    %p227 = scmp.ne.s32.totalorder %s218, %s219
    %p228 = scmp.eq.s32.totalorder %s82, 0
    %p229 = por %p227, %p228
    %p230 = scmp.ne.s32.totalorder %s218, %s219
    %p231 = scmp.eq.s32.totalorder %s83, 1
    %p232 = por %p230, %p231
    %p234 = scmp.ne.s32.totalorder %s219, %s233
    %p235 = scmp.eq.s32.totalorder %s83, 0
    %p236 = por %p234, %p235
    %s238 = sadd.s32 %s237, 1
    %p241 = scmp.eq.s32.totalorder %s77, 1
    %p242 = scmp.ne.s32.totalorder %s237, %s239
    %p243 = scmp.eq.s32.totalorder %s77, 0
    %p244 = por %p242, %p243
    %p245 = scmp.ne.s32.totalorder %s237, %s239
    %p246 = scmp.eq.s32.totalorder %s82, 1
    %p247 = por %p245, %p246
    %p248 = scmp.ne.s32.totalorder %s239, %s240
    %p249 = scmp.eq.s32.totalorder %s82, 0
    %p250 = por %p248, %p249
    %p251 = scmp.ne.s32.totalorder %s239, %s240
    %p252 = scmp.eq.s32.totalorder %s83, 1
    %p253 = por %p251, %p252
    %p255 = scmp.ne.s32.totalorder %s240, %s254
    %p256 = scmp.eq.s32.totalorder %s83, 0
    %p257 = por %p255, %p256
    %s259 = sadd.s32 %s258, 1
    %p262 = scmp.eq.s32.totalorder %s77, 1
    %p263 = scmp.ne.s32.totalorder %s258, %s260
    %p264 = scmp.eq.s32.totalorder %s77, 0
    %p265 = por %p263, %p264
    %p266 = scmp.ne.s32.totalorder %s258, %s260
    %p267 = scmp.eq.s32.totalorder %s82, 1
    %p268 = por %p266, %p267
    %p269 = scmp.ne.s32.totalorder %s260, %s261
    %p270 = scmp.eq.s32.totalorder %s82, 0
    %p271 = por %p269, %p270
    %p272 = scmp.ne.s32.totalorder %s260, %s261
    %p273 = scmp.eq.s32.totalorder %s83, 1
    %p274 = por %p272, %p273
    %p276 = scmp.ne.s32.totalorder %s261, %s275
    %p277 = scmp.eq.s32.totalorder %s83, 0
    %p278 = por %p276, %p277
    %s280 = sadd.s32 %s279, 1
    %p283 = scmp.eq.s32.totalorder %s77, 1
    %p284 = scmp.ne.s32.totalorder %s279, %s281
    %p285 = scmp.eq.s32.totalorder %s77, 0
    %p286 = por %p284, %p285
    %p287 = scmp.ne.s32.totalorder %s279, %s281
    %p288 = scmp.eq.s32.totalorder %s82, 1
    %p289 = por %p287, %p288
    %p290 = scmp.ne.s32.totalorder %s281, %s282
    %p291 = scmp.eq.s32.totalorder %s82, 0
    %p292 = por %p290, %p291
    %p293 = scmp.ne.s32.totalorder %s281, %s282
    %p294 = scmp.eq.s32.totalorder %s83, 1
    %p295 = por %p293, %p294
    %p297 = scmp.ne.s32.totalorder %s282, %s296
    %p298 = scmp.eq.s32.totalorder %s83, 0
    %p299 = por %p297, %p298
    %s301 = sadd.s32 %s300, 1
    %p304 = scmp.eq.s32.totalorder %s77, 1
    %p305 = scmp.ne.s32.totalorder %s300, %s302
    %p306 = scmp.eq.s32.totalorder %s77, 0
    %p307 = por %p305, %p306
    %p308 = scmp.ne.s32.totalorder %s300, %s302
    %p309 = scmp.eq.s32.totalorder %s82, 1
    %p310 = por %p308, %p309
    %p311 = scmp.ne.s32.totalorder %s302, %s303
    %p312 = scmp.eq.s32.totalorder %s82, 0
    %p313 = por %p311, %p312
    %p314 = scmp.ne.s32.totalorder %s302, %s303
    %p315 = scmp.eq.s32.totalorder %s83, 1
    %p316 = por %p314, %p315
    %p318 = scmp.ne.s32.totalorder %s303, %s317
    %p319 = scmp.eq.s32.totalorder %s83, 0
    %p320 = por %p318, %p319
    %s322 = sadd.s32 %s321, 1
    %p325 = scmp.eq.s32.totalorder %s77, 1
    %p326 = scmp.ne.s32.totalorder %s321, %s323
    %p327 = scmp.eq.s32.totalorder %s77, 0
    %p328 = por %p326, %p327
    %p329 = scmp.ne.s32.totalorder %s321, %s323
    %p330 = scmp.eq.s32.totalorder %s82, 1
    %p331 = por %p329, %p330
    %p332 = scmp.ne.s32.totalorder %s323, %s324
    %p333 = scmp.eq.s32.totalorder %s82, 0
    %p334 = por %p332, %p333
    %p335 = scmp.ne.s32.totalorder %s323, %s324
    %p336 = scmp.eq.s32.totalorder %s83, 1
    %p337 = por %p335, %p336
    %p339 = scmp.ne.s32.totalorder %s324, %s338
    %p340 = scmp.eq.s32.totalorder %s83, 0
    %p341 = por %p339, %p340
    %s343 = sadd.s32 %s342, 1
    %p346 = scmp.eq.s32.totalorder %s77, 1
    %p347 = scmp.ne.s32.totalorder %s342, %s344
    %p348 = scmp.eq.s32.totalorder %s77, 0
    %p349 = por %p347, %p348
    %p350 = scmp.ne.s32.totalorder %s342, %s344
    %p351 = scmp.eq.s32.totalorder %s82, 1
    %p352 = por %p350, %p351
    %p353 = scmp.ne.s32.totalorder %s344, %s345
    %p354 = scmp.eq.s32.totalorder %s82, 0
    %p355 = por %p353, %p354
    %p356 = scmp.ne.s32.totalorder %s344, %s345
    %p357 = scmp.eq.s32.totalorder %s83, 1
    %p358 = por %p356, %p357
    %p360 = scmp.ne.s32.totalorder %s345, %s359
    %p361 = scmp.eq.s32.totalorder %s83, 0
    %p362 = por %p360, %p361
    %s364 = sadd.s32 %s363, 1
    %p367 = scmp.eq.s32.totalorder %s77, 1
    %p368 = scmp.ne.s32.totalorder %s363, %s365
    %p369 = scmp.eq.s32.totalorder %s77, 0
    %p370 = por %p368, %p369
    %p371 = scmp.ne.s32.totalorder %s363, %s365
    %p372 = scmp.eq.s32.totalorder %s82, 1
    %p373 = por %p371, %p372
    %p374 = scmp.ne.s32.totalorder %s365, %s366
    %p375 = scmp.eq.s32.totalorder %s82, 0
    %p376 = por %p374, %p375
    %p377 = scmp.ne.s32.totalorder %s365, %s366
    %p378 = scmp.eq.s32.totalorder %s83, 1
    %p379 = por %p377, %p378
    %p381 = scmp.ne.s32.totalorder %s366, %s380
    %p382 = scmp.eq.s32.totalorder %s83, 0
    %p383 = por %p381, %p382
    %s385 = sadd.s32 %s384, 1
    %p388 = scmp.eq.s32.totalorder %s77, 1
    %p389 = scmp.ne.s32.totalorder %s384, %s386
    %p390 = scmp.eq.s32.totalorder %s77, 0
    %p391 = por %p389, %p390
    %p392 = scmp.ne.s32.totalorder %s384, %s386
    %p393 = scmp.eq.s32.totalorder %s82, 1
    %p394 = por %p392, %p393
    %p395 = scmp.ne.s32.totalorder %s386, %s387
    %p396 = scmp.eq.s32.totalorder %s82, 0
    %p397 = por %p395, %p396
    %p398 = scmp.ne.s32.totalorder %s386, %s387
    %p399 = scmp.eq.s32.totalorder %s83, 1
    %p400 = por %p398, %p399
    %p402 = scmp.ne.s32.totalorder %s387, %s401
    %p403 = scmp.eq.s32.totalorder %s83, 0
    %p404 = por %p402, %p403
    %s406 = sadd.s32 %s405, 1
    %p409 = scmp.eq.s32.totalorder %s77, 1
    %p410 = scmp.ne.s32.totalorder %s405, %s407
    %p411 = scmp.eq.s32.totalorder %s77, 0
    %p412 = por %p410, %p411
    %p413 = scmp.ne.s32.totalorder %s405, %s407
    %p414 = scmp.eq.s32.totalorder %s82, 1
    %p415 = por %p413, %p414
    %p416 = scmp.ne.s32.totalorder %s407, %s408
    %p417 = scmp.eq.s32.totalorder %s82, 0
    %p418 = por %p416, %p417
    %p419 = scmp.ne.s32.totalorder %s407, %s408
    %p420 = scmp.eq.s32.totalorder %s83, 1
    %p421 = por %p419, %p420
    %p423 = scmp.ne.s32.totalorder %s408, %s422
    %p424 = scmp.eq.s32.totalorder %s83, 0
    %p425 = por %p423, %p424
    %s427 = sadd.s32 %s426, 1
    %p430 = scmp.eq.s32.totalorder %s77, 1
    %p431 = scmp.ne.s32.totalorder %s426, %s428
    %p432 = scmp.eq.s32.totalorder %s77, 0
    %p433 = por %p431, %p432
    %p434 = scmp.ne.s32.totalorder %s426, %s428
    %p435 = scmp.eq.s32.totalorder %s82, 1
    %p436 = por %p434, %p435
    %p437 = scmp.ne.s32.totalorder %s428, %s429
    %p438 = scmp.eq.s32.totalorder %s82, 0
    %p439 = por %p437, %p438
    %p440 = scmp.ne.s32.totalorder %s428, %s429
    %p441 = scmp.eq.s32.totalorder %s83, 1
    %p442 = por %p440, %p441
    %p444 = scmp.ne.s32.totalorder %s429, %s443
    %p445 = scmp.eq.s32.totalorder %s83, 0
    %p446 = por %p444, %p445
    %s448 = sadd.s32 %s447, 1
    %p451 = scmp.eq.s32.totalorder %s77, 1
    %p452 = scmp.ne.s32.totalorder %s447, %s449
    %p453 = scmp.eq.s32.totalorder %s77, 0
    %p454 = por %p452, %p453
    %p455 = scmp.ne.s32.totalorder %s447, %s449
    %p456 = scmp.eq.s32.totalorder %s82, 1
    %p457 = por %p455, %p456
    %p458 = scmp.ne.s32.totalorder %s449, %s450
    %p459 = scmp.eq.s32.totalorder %s82, 0
    %p460 = por %p458, %p459
    %p461 = scmp.ne.s32.totalorder %s449, %s450
    %p462 = scmp.eq.s32.totalorder %s83, 1
    %p463 = por %p461, %p462
    %p465 = scmp.ne.s32.totalorder %s450, %s464
    %p466 = scmp.eq.s32.totalorder %s83, 0
    %p467 = por %p465, %p466
    %s469 = sadd.s32 %s468, 1
    %p472 = scmp.eq.s32.totalorder %s77, 1
    %p473 = scmp.ne.s32.totalorder %s468, %s470
    %p474 = scmp.eq.s32.totalorder %s77, 0
    %p475 = por %p473, %p474
    %p476 = scmp.ne.s32.totalorder %s468, %s470
    %p477 = scmp.eq.s32.totalorder %s82, 1
    %p478 = por %p476, %p477
    %p479 = scmp.ne.s32.totalorder %s470, %s471
    %p480 = scmp.eq.s32.totalorder %s82, 0
    %p481 = por %p479, %p480
    %p482 = scmp.ne.s32.totalorder %s470, %s471
    %p483 = scmp.eq.s32.totalorder %s83, 1
    %p484 = por %p482, %p483
    %p486 = scmp.ne.s32.totalorder %s471, %s485
    %p487 = scmp.eq.s32.totalorder %s83, 0
    %p488 = por %p486, %p487
    %s490 = sadd.s32 %s489, 1
    %p493 = scmp.eq.s32.totalorder %s77, 1
    %p494 = scmp.ne.s32.totalorder %s489, %s491
    %p495 = scmp.eq.s32.totalorder %s77, 0
    %p496 = por %p494, %p495
    %p497 = scmp.ne.s32.totalorder %s489, %s491
    %p498 = scmp.eq.s32.totalorder %s82, 1
    %p499 = por %p497, %p498
    %p500 = scmp.ne.s32.totalorder %s491, %s492
    %p501 = scmp.eq.s32.totalorder %s82, 0
    %p502 = por %p500, %p501
    %p503 = scmp.ne.s32.totalorder %s491, %s492
    %p504 = scmp.eq.s32.totalorder %s83, 1
    %p505 = por %p503, %p504
    %p507 = scmp.ne.s32.totalorder %s492, %s506
    %p508 = scmp.eq.s32.totalorder %s83, 0
    %p509 = por %p507, %p508
    %s511 = sadd.s32 %s510, 1
    %p514 = scmp.eq.s32.totalorder %s77, 1
    %p515 = scmp.ne.s32.totalorder %s510, %s512
    %p516 = scmp.eq.s32.totalorder %s77, 0
    %p517 = por %p515, %p516
    %p518 = scmp.ne.s32.totalorder %s510, %s512
    %p519 = scmp.eq.s32.totalorder %s82, 1
    %p520 = por %p518, %p519
    %p521 = scmp.ne.s32.totalorder %s512, %s513
    %p522 = scmp.eq.s32.totalorder %s82, 0
    %p523 = por %p521, %p522
    %p524 = scmp.ne.s32.totalorder %s512, %s513
    %p525 = scmp.eq.s32.totalorder %s83, 1
    %p526 = por %p524, %p525
    %p528 = scmp.ne.s32.totalorder %s513, %s527
    %p529 = scmp.eq.s32.totalorder %s83, 0
    %p530 = por %p528, %p529
    %s532 = sadd.s32 %s531, 1
    %p535 = scmp.eq.s32.totalorder %s77, 1
    %p536 = scmp.ne.s32.totalorder %s531, %s533
    %p537 = scmp.eq.s32.totalorder %s77, 0
    %p538 = por %p536, %p537
    %p539 = scmp.ne.s32.totalorder %s531, %s533
    %p540 = scmp.eq.s32.totalorder %s82, 1
    %p541 = por %p539, %p540
    %p542 = scmp.ne.s32.totalorder %s533, %s534
    %p543 = scmp.eq.s32.totalorder %s82, 0
    %p544 = por %p542, %p543
    %p545 = scmp.ne.s32.totalorder %s533, %s534
    %p546 = scmp.eq.s32.totalorder %s83, 1
    %p547 = por %p545, %p546
    %p549 = scmp.ne.s32.totalorder %s534, %s548
    %p550 = scmp.eq.s32.totalorder %s83, 0
    %p551 = por %p549, %p550
    %s553 = sadd.s32 %s552, 1
    %p556 = scmp.eq.s32.totalorder %s77, 1
    %p557 = scmp.ne.s32.totalorder %s552, %s554
    %p558 = scmp.eq.s32.totalorder %s77, 0
    %p559 = por %p557, %p558
    %p560 = scmp.ne.s32.totalorder %s552, %s554
    %p561 = scmp.eq.s32.totalorder %s82, 1
    %p562 = por %p560, %p561
    %p563 = scmp.ne.s32.totalorder %s554, %s555
    %p564 = scmp.eq.s32.totalorder %s82, 0
    %p565 = por %p563, %p564
    %p566 = scmp.ne.s32.totalorder %s554, %s555
    %p567 = scmp.eq.s32.totalorder %s83, 1
    %p568 = por %p566, %p567
    %p570 = scmp.ne.s32.totalorder %s555, %s569
    %p571 = scmp.eq.s32.totalorder %s83, 0
    %p572 = por %p570, %p571
    %s574 = sadd.s32 %s573, 1
    %p577 = scmp.eq.s32.totalorder %s77, 1
    %p578 = scmp.ne.s32.totalorder %s573, %s575
    %p579 = scmp.eq.s32.totalorder %s77, 0
    %p580 = por %p578, %p579
    %p581 = scmp.ne.s32.totalorder %s573, %s575
    %p582 = scmp.eq.s32.totalorder %s82, 1
    %p583 = por %p581, %p582
    %p584 = scmp.ne.s32.totalorder %s575, %s576
    %p585 = scmp.eq.s32.totalorder %s82, 0
    %p586 = por %p584, %p585
    %p587 = scmp.ne.s32.totalorder %s575, %s576
    %p588 = scmp.eq.s32.totalorder %s83, 1
    %p589 = por %p587, %p588
    %p591 = scmp.ne.s32.totalorder %s576, %s590
    %p592 = scmp.eq.s32.totalorder %s83, 0
    %p593 = por %p591, %p592
    %s595 = sadd.s32 %s594, 1
    %p598 = scmp.eq.s32.totalorder %s77, 1
    %p599 = scmp.ne.s32.totalorder %s594, %s596
    %p600 = scmp.eq.s32.totalorder %s77, 0
    %p601 = por %p599, %p600
    %p602 = scmp.ne.s32.totalorder %s594, %s596
    %p603 = scmp.eq.s32.totalorder %s82, 1
    %p604 = por %p602, %p603
    %p605 = scmp.ne.s32.totalorder %s596, %s597
    %p606 = scmp.eq.s32.totalorder %s82, 0
    %p607 = por %p605, %p606
    %p608 = scmp.ne.s32.totalorder %s596, %s597
    %p609 = scmp.eq.s32.totalorder %s83, 1
    %p610 = por %p608, %p609
    %p612 = scmp.ne.s32.totalorder %s597, %s611
    %p613 = scmp.eq.s32.totalorder %s83, 0
    %p614 = por %p612, %p613
    %s616 = sadd.s32 %s615, 1
    %p619 = scmp.eq.s32.totalorder %s77, 1
    %p620 = scmp.ne.s32.totalorder %s615, %s617
    %p621 = scmp.eq.s32.totalorder %s77, 0
    %p622 = por %p620, %p621
    %p623 = scmp.ne.s32.totalorder %s615, %s617
    %p624 = scmp.eq.s32.totalorder %s82, 1
    %p625 = por %p623, %p624
    %p626 = scmp.ne.s32.totalorder %s617, %s618
    %p627 = scmp.eq.s32.totalorder %s82, 0
    %p628 = por %p626, %p627
    %p629 = scmp.ne.s32.totalorder %s617, %s618
    %p630 = scmp.eq.s32.totalorder %s83, 1
    %p631 = por %p629, %p630
    %p633 = scmp.ne.s32.totalorder %s618, %s632
    %p634 = scmp.eq.s32.totalorder %s83, 0
    %p635 = por %p633, %p634
    %s637 = sadd.s32 %s636, 1
    %p640 = scmp.eq.s32.totalorder %s77, 1
    %p641 = scmp.ne.s32.totalorder %s636, %s638
    %p642 = scmp.eq.s32.totalorder %s77, 0
    %p643 = por %p641, %p642
    %p644 = scmp.ne.s32.totalorder %s636, %s638
    %p645 = scmp.eq.s32.totalorder %s82, 1
    %p646 = por %p644, %p645
    %p647 = scmp.ne.s32.totalorder %s638, %s639
    %p648 = scmp.eq.s32.totalorder %s82, 0
    %p649 = por %p647, %p648
    %p650 = scmp.ne.s32.totalorder %s638, %s639
    %p651 = scmp.eq.s32.totalorder %s83, 1
    %p652 = por %p650, %p651
    %p654 = scmp.ne.s32.totalorder %s639, %s653
    %p655 = scmp.eq.s32.totalorder %s83, 0
    %p656 = por %p654, %p655
    %s658 = sadd.s32 %s657, 1
    %p661 = scmp.eq.s32.totalorder %s77, 1
    %p662 = scmp.ne.s32.totalorder %s657, %s659
    %p663 = scmp.eq.s32.totalorder %s77, 0
    %p664 = por %p662, %p663
    %p665 = scmp.ne.s32.totalorder %s657, %s659
    %p666 = scmp.eq.s32.totalorder %s82, 1
    %p667 = por %p665, %p666
    %p668 = scmp.ne.s32.totalorder %s659, %s660
    %p669 = scmp.eq.s32.totalorder %s82, 0
    %p670 = por %p668, %p669
    %p671 = scmp.ne.s32.totalorder %s659, %s660
    %p672 = scmp.eq.s32.totalorder %s83, 1
    %p673 = por %p671, %p672
    %p675 = scmp.ne.s32.totalorder %s660, %s674
    %p676 = scmp.eq.s32.totalorder %s83, 0
    %p677 = por %p675, %p676
    %s679 = sadd.s32 %s678, 1
    %p682 = scmp.eq.s32.totalorder %s77, 1
    %p683 = scmp.ne.s32.totalorder %s678, %s680
    %p684 = scmp.eq.s32.totalorder %s77, 0
    %p685 = por %p683, %p684
    %p686 = scmp.ne.s32.totalorder %s678, %s680
    %p687 = scmp.eq.s32.totalorder %s82, 1
    %p688 = por %p686, %p687
    %p689 = scmp.ne.s32.totalorder %s680, %s681
    %p690 = scmp.eq.s32.totalorder %s82, 0
    %p691 = por %p689, %p690
    %p692 = scmp.ne.s32.totalorder %s680, %s681
    %p693 = scmp.eq.s32.totalorder %s83, 1
    %p694 = por %p692, %p693
    %p696 = scmp.ne.s32.totalorder %s681, %s695
    %p697 = scmp.eq.s32.totalorder %s83, 0
    %p698 = por %p696, %p697
    %s700 = sadd.s32 %s699, 1
    %p703 = scmp.eq.s32.totalorder %s77, 1
    %p704 = scmp.ne.s32.totalorder %s699, %s701
    %p705 = scmp.eq.s32.totalorder %s77, 0
    %p706 = por %p704, %p705
    %p707 = scmp.ne.s32.totalorder %s699, %s701
    %p708 = scmp.eq.s32.totalorder %s82, 1
    %p709 = por %p707, %p708
    %p710 = scmp.ne.s32.totalorder %s701, %s702
    %p711 = scmp.eq.s32.totalorder %s82, 0
    %p712 = por %p710, %p711
    %p713 = scmp.ne.s32.totalorder %s701, %s702
    %p714 = scmp.eq.s32.totalorder %s83, 1
    %p715 = por %p713, %p714
    %p717 = scmp.ne.s32.totalorder %s702, %s716
    %p718 = scmp.eq.s32.totalorder %s83, 0
    %p719 = por %p717, %p718
    %s721 = sadd.s32 %s720, 1
    %p724 = scmp.eq.s32.totalorder %s77, 1
    %p725 = scmp.ne.s32.totalorder %s720, %s722
    %p726 = scmp.eq.s32.totalorder %s77, 0
    %p727 = por %p725, %p726
    %p728 = scmp.ne.s32.totalorder %s720, %s722
    %p729 = scmp.eq.s32.totalorder %s82, 1
    %p730 = por %p728, %p729
    %p731 = scmp.ne.s32.totalorder %s722, %s723
    %p732 = scmp.eq.s32.totalorder %s82, 0
    %p733 = por %p731, %p732
    %p734 = scmp.ne.s32.totalorder %s722, %s723
    %p735 = scmp.eq.s32.totalorder %s83, 1
    %p736 = por %p734, %p735
    %p738 = scmp.ne.s32.totalorder %s723, %s737
    %p739 = scmp.eq.s32.totalorder %s83, 0
    %p740 = por %p738, %p739
    %s742 = sadd.s32 %s741, 1
    %p745 = scmp.eq.s32.totalorder %s77, 1
    %p746 = scmp.ne.s32.totalorder %s741, %s743
    %p747 = scmp.eq.s32.totalorder %s77, 0
    %p748 = por %p746, %p747
    %p749 = scmp.ne.s32.totalorder %s741, %s743
    %p750 = scmp.eq.s32.totalorder %s82, 1
    %p751 = por %p749, %p750
    %p752 = scmp.ne.s32.totalorder %s743, %s744
    %p753 = scmp.eq.s32.totalorder %s82, 0
    %p754 = por %p752, %p753
    %p755 = scmp.ne.s32.totalorder %s743, %s744
    %p756 = scmp.eq.s32.totalorder %s83, 1
    %p757 = por %p755, %p756
    %p759 = scmp.ne.s32.totalorder %s744, %s758
    %p760 = scmp.eq.s32.totalorder %s83, 0
    %p761 = por %p759, %p760
    %s763 = sadd.s32 %s762, 1
    %p766 = scmp.eq.s32.totalorder %s77, 1
    %p767 = scmp.ne.s32.totalorder %s762, %s764
    %p768 = scmp.eq.s32.totalorder %s77, 0
    %p769 = por %p767, %p768
    %p770 = scmp.ne.s32.totalorder %s762, %s764
    %p771 = scmp.eq.s32.totalorder %s82, 1
    %p772 = por %p770, %p771
    %p773 = scmp.ne.s32.totalorder %s764, %s765
    %p774 = scmp.eq.s32.totalorder %s82, 0
    %p775 = por %p773, %p774
    %p776 = scmp.ne.s32.totalorder %s764, %s765
    %p777 = scmp.eq.s32.totalorder %s83, 1
    %p778 = por %p776, %p777
    %p780 = scmp.ne.s32.totalorder %s765, %s779
    %p781 = scmp.eq.s32.totalorder %s83, 0
    %p782 = por %p780, %p781
    %s784 = sadd.s32 %s783, 1
    %p787 = scmp.eq.s32.totalorder %s77, 1
    %p788 = scmp.ne.s32.totalorder %s783, %s785
    %p789 = scmp.eq.s32.totalorder %s77, 0
    %p790 = por %p788, %p789
    %p791 = scmp.ne.s32.totalorder %s783, %s785
    %p792 = scmp.eq.s32.totalorder %s82, 1
    %p793 = por %p791, %p792
    %p794 = scmp.ne.s32.totalorder %s785, %s786
    %p795 = scmp.eq.s32.totalorder %s82, 0
    %p796 = por %p794, %p795
    %p797 = scmp.ne.s32.totalorder %s785, %s786
    %p798 = scmp.eq.s32.totalorder %s83, 1
    %p799 = por %p797, %p798
    %p801 = scmp.ne.s32.totalorder %s786, %s800
    %p802 = scmp.eq.s32.totalorder %s83, 0
    %p803 = por %p801, %p802
    %s805 = sadd.s32 %s804, 1
    %p808 = scmp.eq.s32.totalorder %s77, 1
    %p809 = scmp.ne.s32.totalorder %s804, %s806
    %p810 = scmp.eq.s32.totalorder %s77, 0
    %p811 = por %p809, %p810
    %p812 = scmp.ne.s32.totalorder %s804, %s806
    %p813 = scmp.eq.s32.totalorder %s82, 1
    %p814 = por %p812, %p813
    %p815 = scmp.ne.s32.totalorder %s806, %s807
    %p816 = scmp.eq.s32.totalorder %s82, 0
    %p817 = por %p815, %p816
    %p818 = scmp.ne.s32.totalorder %s806, %s807
    %p819 = scmp.eq.s32.totalorder %s83, 1
    %p820 = por %p818, %p819
    %p822 = scmp.ne.s32.totalorder %s807, %s821
    %p823 = scmp.eq.s32.totalorder %s83, 0
    %p824 = por %p822, %p823
    %s825 = ssub.s32 %s77, %s84
    %p826 = scmp.eq.s32.totalorder %s825, 0
    %s828 = sadd.s32 %s827, 1
    %s829 = scalar_select %p826, %s827, %s828
    %p832 = pneg %p826
    %p833 = scmp.eq.s32.totalorder %s77, 1
    %p834 = por %p832, %p833
    %p835 = scmp.ne.s32.totalorder %s827, %s830
    %p836 = scmp.eq.s32.totalorder %s77, 0
    %p837 = por %p835, %p836
    %p838 = scmp.ne.s32.totalorder %s827, %s830
    %p839 = scmp.eq.s32.totalorder %s82, 1
    %p840 = por %p838, %p839
    %p841 = scmp.ne.s32.totalorder %s830, %s831
    %p842 = scmp.eq.s32.totalorder %s82, 0
    %p843 = por %p841, %p842
    %p844 = scmp.ne.s32.totalorder %s830, %s831
    %p845 = scmp.eq.s32.totalorder %s83, 1
    %p846 = por %p844, %p845
    %p848 = scmp.ne.s32.totalorder %s831, %s847
    %p849 = scmp.eq.s32.totalorder %s83, 0
    %p850 = por %p848, %p849
    %p851 = scmp.le.s32.totalorder 1, %s77
    %p852 = scmp.lt.s32.totalorder %s77, 3
    %p853 = pnand %p851, %p852
    %p854 = pneg %p853
    // Predicated region
    $region9: #{image_encoder_forward.1} parent=5 // pred_check
      _
    $region10: #{image_encoder_forward.1} parent=5 // pred_check_branch
      %856 = sbr.rel (%p853) target = $region12
    $region11: #{image_encoder_forward.1} parent=5 // pred_region
      %s857 = ssub.s32 %s77, 1
      // Predicated region
      $region13: #{image_encoder_forward.1} parent=11 // pred_check
        %p858 = pneg %p124
      $region14: #{image_encoder_forward.1} parent=11 // pred_check_branch
        %860 = sbr.rel (%p858) target = $region16
      $region15: #{image_encoder_forward.1} parent=11 // pred_region
        _
      $region16: #{image_encoder_forward.1} parent=11 // pred_fallthru
        _
      // Predicated region
      $region17: #{image_encoder_forward.1} parent=11 // pred_check
        %p861 = pneg %p145
      $region18: #{image_encoder_forward.1} parent=11 // pred_check_branch
        %863 = sbr.rel (%p861) target = $region20
      $region19: #{image_encoder_forward.1} parent=11 // pred_region
        _
      $region20: #{image_encoder_forward.1} parent=11 // pred_fallthru
        _
      // Predicated region
      $region21: #{image_encoder_forward.1} parent=11 // pred_check
        %p864 = pneg %p166
      $region22: #{image_encoder_forward.1} parent=11 // pred_check_branch
        %866 = sbr.rel (%p864) target = $region24
      $region23: #{image_encoder_forward.1} parent=11 // pred_region
        _
      $region24: #{image_encoder_forward.1} parent=11 // pred_fallthru
        _
      // Predicated region
      $region25: #{image_encoder_forward.1} parent=11 // pred_check
        %p867 = pneg %p187
      $region26: #{image_encoder_forward.1} parent=11 // pred_check_branch
        %869 = sbr.rel (%p867) target = $region28
      $region27: #{image_encoder_forward.1} parent=11 // pred_region
        _
      $region28: #{image_encoder_forward.1} parent=11 // pred_fallthru
        _
      // Predicated region
      $region29: #{image_encoder_forward.1} parent=11 // pred_check
        %p870 = pneg %p208
      $region30: #{image_encoder_forward.1} parent=11 // pred_check_branch
        %872 = sbr.rel (%p870) target = $region32
      $region31: #{image_encoder_forward.1} parent=11 // pred_region
        _
      $region32: #{image_encoder_forward.1} parent=11 // pred_fallthru
        _
      // Predicated region
      $region33: #{image_encoder_forward.1} parent=11 // pred_check
        %p873 = pneg %p229
      $region34: #{image_encoder_forward.1} parent=11 // pred_check_branch
        %875 = sbr.rel (%p873) target = $region36
      $region35: #{image_encoder_forward.1} parent=11 // pred_region
        _
      $region36: #{image_encoder_forward.1} parent=11 // pred_fallthru
        _
      // Predicated region
      $region37: #{image_encoder_forward.1} parent=11 // pred_check
        %p876 = pneg %p250
      $region38: #{image_encoder_forward.1} parent=11 // pred_check_branch
        %878 = sbr.rel (%p876) target = $region40
      $region39: #{image_encoder_forward.1} parent=11 // pred_region
        _
      $region40: #{image_encoder_forward.1} parent=11 // pred_fallthru
        _
      // Predicated region
      $region41: #{image_encoder_forward.1} parent=11 // pred_check
        %p879 = pneg %p271
      $region42: #{image_encoder_forward.1} parent=11 // pred_check_branch
        %881 = sbr.rel (%p879) target = $region44
      $region43: #{image_encoder_forward.1} parent=11 // pred_region
        _
      $region44: #{image_encoder_forward.1} parent=11 // pred_fallthru
        _
      // Predicated region
      $region45: #{image_encoder_forward.1} parent=11 // pred_check
        %p882 = pneg %p292
      $region46: #{image_encoder_forward.1} parent=11 // pred_check_branch
        %884 = sbr.rel (%p882) target = $region48
      $region47: #{image_encoder_forward.1} parent=11 // pred_region
        _
      $region48: #{image_encoder_forward.1} parent=11 // pred_fallthru
        _
      // Predicated region
      $region49: #{image_encoder_forward.1} parent=11 // pred_check
        %p885 = pneg %p313
      $region50: #{image_encoder_forward.1} parent=11 // pred_check_branch
        %887 = sbr.rel (%p885) target = $region52
      $region51: #{image_encoder_forward.1} parent=11 // pred_region
        _
      $region52: #{image_encoder_forward.1} parent=11 // pred_fallthru
        _
      // Predicated region
      $region53: #{image_encoder_forward.1} parent=11 // pred_check
        %p888 = pneg %p334
      $region54: #{image_encoder_forward.1} parent=11 // pred_check_branch
        %890 = sbr.rel (%p888) target = $region56
      $region55: #{image_encoder_forward.1} parent=11 // pred_region
        _
      $region56: #{image_encoder_forward.1} parent=11 // pred_fallthru
        _
      // Predicated region
      $region57: #{image_encoder_forward.1} parent=11 // pred_check
        %p891 = pneg %p355
      $region58: #{image_encoder_forward.1} parent=11 // pred_check_branch
        %893 = sbr.rel (%p891) target = $region60
      $region59: #{image_encoder_forward.1} parent=11 // pred_region
        _
      $region60: #{image_encoder_forward.1} parent=11 // pred_fallthru
        _
      // Predicated region
      $region61: #{image_encoder_forward.1} parent=11 // pred_check
        %p894 = pneg %p376
      $region62: #{image_encoder_forward.1} parent=11 // pred_check_branch
        %896 = sbr.rel (%p894) target = $region64
      $region63: #{image_encoder_forward.1} parent=11 // pred_region
        _
      $region64: #{image_encoder_forward.1} parent=11 // pred_fallthru
        _
      // Predicated region
      $region65: #{image_encoder_forward.1} parent=11 // pred_check
        %p897 = pneg %p397
      $region66: #{image_encoder_forward.1} parent=11 // pred_check_branch
        %899 = sbr.rel (%p897) target = $region68
      $region67: #{image_encoder_forward.1} parent=11 // pred_region
        _
      $region68: #{image_encoder_forward.1} parent=11 // pred_fallthru
        _
      // Predicated region
      $region69: #{image_encoder_forward.1} parent=11 // pred_check
        %p900 = pneg %p418
      $region70: #{image_encoder_forward.1} parent=11 // pred_check_branch
        %902 = sbr.rel (%p900) target = $region72
      $region71: #{image_encoder_forward.1} parent=11 // pred_region
        _
      $region72: #{image_encoder_forward.1} parent=11 // pred_fallthru
        _
      // Predicated region
      $region73: #{image_encoder_forward.1} parent=11 // pred_check
        %p903 = pneg %p439
      $region74: #{image_encoder_forward.1} parent=11 // pred_check_branch
        %905 = sbr.rel (%p903) target = $region76
      $region75: #{image_encoder_forward.1} parent=11 // pred_region
        _
      $region76: #{image_encoder_forward.1} parent=11 // pred_fallthru
        _
      // Predicated region
      $region77: #{image_encoder_forward.1} parent=11 // pred_check
        %p906 = pneg %p460
      $region78: #{image_encoder_forward.1} parent=11 // pred_check_branch
        %908 = sbr.rel (%p906) target = $region80
      $region79: #{image_encoder_forward.1} parent=11 // pred_region
        _
      $region80: #{image_encoder_forward.1} parent=11 // pred_fallthru
        _
      // Predicated region
      $region81: #{image_encoder_forward.1} parent=11 // pred_check
        %p909 = pneg %p481
      $region82: #{image_encoder_forward.1} parent=11 // pred_check_branch
        %911 = sbr.rel (%p909) target = $region84
      $region83: #{image_encoder_forward.1} parent=11 // pred_region
        _
      $region84: #{image_encoder_forward.1} parent=11 // pred_fallthru
        _
      // Predicated region
      $region85: #{image_encoder_forward.1} parent=11 // pred_check
        %p912 = pneg %p502
      $region86: #{image_encoder_forward.1} parent=11 // pred_check_branch
        %914 = sbr.rel (%p912) target = $region88
      $region87: #{image_encoder_forward.1} parent=11 // pred_region
        _
      $region88: #{image_encoder_forward.1} parent=11 // pred_fallthru
        _
      // Predicated region
      $region89: #{image_encoder_forward.1} parent=11 // pred_check
        %p915 = pneg %p523
      $region90: #{image_encoder_forward.1} parent=11 // pred_check_branch
        %917 = sbr.rel (%p915) target = $region92
      $region91: #{image_encoder_forward.1} parent=11 // pred_region
        _
      $region92: #{image_encoder_forward.1} parent=11 // pred_fallthru
        _
      // Predicated region
      $region93: #{image_encoder_forward.1} parent=11 // pred_check
        %p918 = pneg %p544
      $region94: #{image_encoder_forward.1} parent=11 // pred_check_branch
        %920 = sbr.rel (%p918) target = $region96
      $region95: #{image_encoder_forward.1} parent=11 // pred_region
        _
      $region96: #{image_encoder_forward.1} parent=11 // pred_fallthru
        _
      // Predicated region
      $region97: #{image_encoder_forward.1} parent=11 // pred_check
        %p921 = pneg %p565
      $region98: #{image_encoder_forward.1} parent=11 // pred_check_branch
        %923 = sbr.rel (%p921) target = $region100
      $region99: #{image_encoder_forward.1} parent=11 // pred_region
        _
      $region100: #{image_encoder_forward.1} parent=11 // pred_fallthru
        _
      // Predicated region
      $region101: #{image_encoder_forward.1} parent=11 // pred_check
        %p924 = pneg %p586
      $region102: #{image_encoder_forward.1} parent=11 // pred_check_branch
        %926 = sbr.rel (%p924) target = $region104
      $region103: #{image_encoder_forward.1} parent=11 // pred_region
        _
      $region104: #{image_encoder_forward.1} parent=11 // pred_fallthru
        _
      // Predicated region
      $region105: #{image_encoder_forward.1} parent=11 // pred_check
        %p927 = pneg %p607
      $region106: #{image_encoder_forward.1} parent=11 // pred_check_branch
        %929 = sbr.rel (%p927) target = $region108
      $region107: #{image_encoder_forward.1} parent=11 // pred_region
        _
      $region108: #{image_encoder_forward.1} parent=11 // pred_fallthru
        _
      // Predicated region
      $region109: #{image_encoder_forward.1} parent=11 // pred_check
        %p930 = pneg %p628
      $region110: #{image_encoder_forward.1} parent=11 // pred_check_branch
        %932 = sbr.rel (%p930) target = $region112
      $region111: #{image_encoder_forward.1} parent=11 // pred_region
        _
      $region112: #{image_encoder_forward.1} parent=11 // pred_fallthru
        _
      // Predicated region
      $region113: #{image_encoder_forward.1} parent=11 // pred_check
        %p933 = pneg %p649
      $region114: #{image_encoder_forward.1} parent=11 // pred_check_branch
        %935 = sbr.rel (%p933) target = $region116
      $region115: #{image_encoder_forward.1} parent=11 // pred_region
        _
      $region116: #{image_encoder_forward.1} parent=11 // pred_fallthru
        _
      // Predicated region
      $region117: #{image_encoder_forward.1} parent=11 // pred_check
        %p936 = pneg %p670
      $region118: #{image_encoder_forward.1} parent=11 // pred_check_branch
        %938 = sbr.rel (%p936) target = $region120
      $region119: #{image_encoder_forward.1} parent=11 // pred_region
        _
      $region120: #{image_encoder_forward.1} parent=11 // pred_fallthru
        _
      // Predicated region
      $region121: #{image_encoder_forward.1} parent=11 // pred_check
        %p939 = pneg %p691
      $region122: #{image_encoder_forward.1} parent=11 // pred_check_branch
        %941 = sbr.rel (%p939) target = $region124
      $region123: #{image_encoder_forward.1} parent=11 // pred_region
        _
      $region124: #{image_encoder_forward.1} parent=11 // pred_fallthru
        _
      // Predicated region
      $region125: #{image_encoder_forward.1} parent=11 // pred_check
        %p942 = pneg %p712
      $region126: #{image_encoder_forward.1} parent=11 // pred_check_branch
        %944 = sbr.rel (%p942) target = $region128
      $region127: #{image_encoder_forward.1} parent=11 // pred_region
        _
      $region128: #{image_encoder_forward.1} parent=11 // pred_fallthru
        _
      // Predicated region
      $region129: #{image_encoder_forward.1} parent=11 // pred_check
        %p945 = pneg %p733
      $region130: #{image_encoder_forward.1} parent=11 // pred_check_branch
        %947 = sbr.rel (%p945) target = $region132
      $region131: #{image_encoder_forward.1} parent=11 // pred_region
        _
      $region132: #{image_encoder_forward.1} parent=11 // pred_fallthru
        _
      // Predicated region
      $region133: #{image_encoder_forward.1} parent=11 // pred_check
        %p948 = pneg %p754
      $region134: #{image_encoder_forward.1} parent=11 // pred_check_branch
        %950 = sbr.rel (%p948) target = $region136
      $region135: #{image_encoder_forward.1} parent=11 // pred_region
        _
      $region136: #{image_encoder_forward.1} parent=11 // pred_fallthru
        _
      // Predicated region
      $region137: #{image_encoder_forward.1} parent=11 // pred_check
        %p951 = pneg %p775
      $region138: #{image_encoder_forward.1} parent=11 // pred_check_branch
        %953 = sbr.rel (%p951) target = $region140
      $region139: #{image_encoder_forward.1} parent=11 // pred_region
        _
      $region140: #{image_encoder_forward.1} parent=11 // pred_fallthru
        _
      // Predicated region
      $region141: #{image_encoder_forward.1} parent=11 // pred_check
        %p954 = pneg %p796
      $region142: #{image_encoder_forward.1} parent=11 // pred_check_branch
        %956 = sbr.rel (%p954) target = $region144
      $region143: #{image_encoder_forward.1} parent=11 // pred_region
        _
      $region144: #{image_encoder_forward.1} parent=11 // pred_fallthru
        _
      // Predicated region
      $region145: #{image_encoder_forward.1} parent=11 // pred_check
        %p957 = pneg %p817
      $region146: #{image_encoder_forward.1} parent=11 // pred_check_branch
        %959 = sbr.rel (%p957) target = $region148
      $region147: #{image_encoder_forward.1} parent=11 // pred_region
        _
      $region148: #{image_encoder_forward.1} parent=11 // pred_fallthru
        _
    $region12: #{image_encoder_forward.1} parent=5 // pred_fallthru
      _
    %p960 = scmp.lt.s32.totalorder %s77, 2
    // Predicated region
    $region149: #{image_encoder_forward.1} parent=5 // pred_check
      %p961 = pneg %p960
    $region150: #{image_encoder_forward.1} parent=5 // pred_check_branch
      %963 = sbr.rel (%p961) target = $region152
    $region151: #{image_encoder_forward.1} parent=5 // pred_region
      // Predicated region
      $region153: #{image_encoder_forward.1} parent=151 // pred_check
        %p964 = pneg %p97
      $region154: #{image_encoder_forward.1} parent=151 // pred_check_branch
        %966 = sbr.rel (%p964) target = $region156
      $region155: #{image_encoder_forward.1} parent=151 // pred_region
        %p967 = scmp.lt.s32.totalorder %s77, 1
        %s968 = scalar_select %p967, %s77, 1
        %s969 = smul.addr %s968, 4
        %s970 = smul.addr %s969, 8
        %s971 = scalar_lea.vmem %s1, %s970
      $region156: #{image_encoder_forward.1} parent=151 // pred_fallthru
        _
    $region152: #{image_encoder_forward.1} parent=5 // pred_fallthru
      _
    %p972 = scmp.le.s32.totalorder 1, %s77
    %p973 = scmp.lt.s32.totalorder %s77, 3
    %p974 = pnand %p972, %p973
    %p975 = pneg %p974
    // Predicated region
    $region157: #{image_encoder_forward.1} parent=5 // pred_check
      _
    $region158: #{image_encoder_forward.1} parent=5 // pred_check_branch
      %977 = sbr.rel (%p974) target = $region160
    $region159: #{image_encoder_forward.1} parent=5 // pred_region
      %s978 = ssub.s32 %s77, 1
      %p979 = scmp.lt.s32.totalorder %s82, 1
      %s980 = scalar_select %p979, %s82, 1
      %s981 = smul.addr %s980, 4
      %s982 = smul.addr %s981, 8
      %s983 = scalar_lea.vmem %s1, %s982
      %p984 = pneg %p103
      %p985 = pneg %p100
      %p986 = pneg %p124
      %p987 = pneg %p121
      %p988 = pneg %p145
      %p989 = pneg %p142
      %p990 = pneg %p166
      %p991 = pneg %p163
      %p992 = pneg %p187
      %p993 = pneg %p184
      %p994 = pneg %p208
      %p995 = pneg %p205
      %p996 = pneg %p229
      %p997 = pneg %p226
      %p998 = pneg %p250
      %p999 = pneg %p247
      %p1000 = pneg %p271
      %p1001 = pneg %p268
      %p1002 = pneg %p292
      %p1003 = pneg %p289
      %p1004 = pneg %p313
      %p1005 = pneg %p310
      %p1006 = pneg %p334
      %p1007 = pneg %p331
      %p1008 = pneg %p355
      %p1009 = pneg %p352
      %p1010 = pneg %p376
      %p1011 = pneg %p373
      %p1012 = pneg %p397
      %p1013 = pneg %p394
      %p1014 = pneg %p418
      %p1015 = pneg %p415
      %p1016 = pneg %p439
      %p1017 = pneg %p436
      %p1018 = pneg %p460
      %p1019 = pneg %p457
      %p1020 = pneg %p481
      %p1021 = pneg %p478
      %p1022 = pneg %p502
      %p1023 = pneg %p499
      %p1024 = pneg %p523
      %p1025 = pneg %p520
      %p1026 = pneg %p544
      %p1027 = pneg %p541
      %p1028 = pneg %p565
      %p1029 = pneg %p562
      %p1030 = pneg %p586
      %p1031 = pneg %p583
      %p1032 = pneg %p607
      %p1033 = pneg %p604
      %p1034 = pneg %p628
      %p1035 = pneg %p625
      %p1036 = pneg %p649
      %p1037 = pneg %p646
      %p1038 = pneg %p670
      %p1039 = pneg %p667
      %p1040 = pneg %p691
      %p1041 = pneg %p688
      %p1042 = pneg %p712
      %p1043 = pneg %p709
      %p1044 = pneg %p733
      %p1045 = pneg %p730
      %p1046 = pneg %p754
      %p1047 = pneg %p751
      %p1048 = pneg %p775
      %p1049 = pneg %p772
      %p1050 = pneg %p796
      %p1051 = pneg %p793
      %p1052 = pneg %p817
      %p1053 = pneg %p814
      %p1054 = pneg %p843
      %p1055 = pneg %p840
      %p1056 = scmp.lt.s32.totalorder %s82, 1
      %s1057 = scalar_select %p1056, %s82, 1
      %s1058 = smul.addr %s1057, 3
      %s1059 = smul.addr %s1058, 8
      %s1060 = scalar_lea.vmem %s71, %s1059
      %p1061 = scmp.lt.s32.totalorder %s82, 1
      %s1062 = scalar_select %p1061, %s82, 1
      %s1063 = smul.addr %s1062, 4
      %s1064 = smul.addr %s1063, 8
      %s1065 = scalar_lea.vmem %s1, %s1064
      %p1066 = scmp.lt.s32.totalorder %s82, 1
      %s1067 = scalar_select %p1066, %s82, 1
      %s1068 = smul.addr %s1067, 3
      %s1069 = smul.addr %s1068, 8
      %s1070 = scalar_lea.vmem %s71, %s1069
      %v1072 = vlaneseq
      %v1073 = vand.u32 %v1072, 127
      %vm1074 = vcmp.lt.s32.totalorder %v1073, 17
      %v1075 = vld [vmem:[%s1065] sm:$0xff]
      %v1076 = vld [vmem:[%s1065 + $0x8] sm:$0xff]
      %v1077 = vld [vmem:[%s1065 + $0x10] sm:$0xff]
      %v1078 = vld [vmem:[%s1065 + $0x18] sm:$0xff]
      %v1079 = vpack.c.bf16 %v1076, %v1075
      %v1080 = vpack.c.bf16 %v1078, %v1077
      %v1081 = vld [vmem:[%s3] sm:$0xf]
      %v1082 = vld [vmem:[%s3 + $0x4] sm:$0xf]
      %v1083 = vld [vmem:[%s3 + $0x8] sm:$0xf]
      %v1084 = vld [vmem:[%s3 + $0xc] sm:$0xf]
      %v1085 = vld [vmem:[%s3 + $0x10] sm:$0xf]
      %v1086 = vld [vmem:[%s3 + $0x14] sm:$0xf]
      %v1087 = vld [vmem:[%s5] sm:$0xff]
      %v1088 = vld [vmem:[%s5 + $0x8] sm:$0xff]
      %v1089 = vld [vmem:[%s5 + $0x10] sm:$0xff]
      %v1090 = vld [vmem:[%s5 + $0x18] sm:$0xff]
      %v1097 = vunpack.c.l.b16 %v1081
      %v1098 = vunpack.c.l.b16 %v1082
      %v1099 = vunpack.c.l.b16 %v1083
      %v1100 = vunpack.c.l.b16 %v1084
      %v1101 = vunpack.c.l.b16 %v1085
      %v1102 = vunpack.c.l.b16 %v1086
      %v1103 = vpack.c.b16 %v1098, %v1097
      %v1104 = vpack.c.b16 %v1100, %v1099
      %v1105 = vpack.c.b16 %v1102, %v1101
      %vm1109 = vcmask 392192
      %v1111 = vsel %vm1109, %v1079, 0
      %v1114 = vsel %vm1109, %v1080, 0
      %1116 = vmatpush.bf16.msra.mxu0 0
      %1117 = vmatpush.bf16.msra.mxu0 0
      %1118 = vmatpush.bf16.msra.mxu0 0
      %1119 = vmatpush.bf16.msra.mxu0 0
      %1120 = vmatpush.bf16.msra.mxu0 0
      %1121 = vmatpush.bf16.msra.mxu0 %v1105
      %1122 = vmatpush.bf16.msra.mxu0 %v1104
      %1123 = vmatpush.bf16.msra.mxu0 %v1103
      %1124 = vmatmul.bf16.gmra.mxu0 %v1111
      %v1125 = vpop.f32.mrf.mxu0
      %v1126 = vadd.f32 %v1087, %v1125
      %v1127 = vpop.f32.mrf.mxu0
      %v1128 = vadd.f32 %v1088, %v1127
      %1129 = vmatmul.bf16.gmra.mxu0 %v1114
      %v1130 = vpop.f32.mrf.mxu0
      %v1131 = vadd.f32 %v1089, %v1130
      %v1132 = vpop.f32.mrf.mxu0
      %v1133 = vadd.f32 %v1090, %v1132
      %1134 = vdwg.mxu0
      %v1135 = vld [vmem:[%s7] sm:$0x1]
      %v1136 = vld [vmem:[%s9] sm:$0x1]
      %vm1137 = vcmask 261120
      %v1138 = vsel %vm1137, %v1126, 0.0
      %1139 = vadd.xlane.f32.xlu0 %v1138
      %v1140 = vpop.xlane.xlu0 %1139
      %v1141 = vsel %vm1137, %v1128, 0.0
      %1142 = vadd.xlane.f32.xlu0 %v1141
      %v1143 = vpop.xlane.xlu0 %1142
      %v1144 = vsel %vm1137, %v1131, 0.0
      %1145 = vadd.xlane.f32.xlu0 %v1144
      %v1146 = vpop.xlane.xlu0 %1145
      %v1147 = vsel %vm1137, %v1133, 0.0
      %1148 = vadd.xlane.f32.xlu0 %v1147
      %v1149 = vpop.xlane.xlu0 %1148
      %v1150 = vrcp.pop 32.0
      %v1151 = vmul.f32 32.0, %v1150
      %v1152 = vsub.f32 1.0, %v1151
      %v1153 = vmul.f32 %v1150, %v1152
      %v1154 = vadd.f32 %v1150, %v1153
      %vm1155 = vweird.f32 %v1150
      %v1156 = vsel %vm1155, %v1150, %v1154
      %v1157 = vmul.f32 %v1140, %v1156
      %v1158 = vmul.f32 %v1143, %v1156
      %v1159 = vmul.f32 %v1146, %v1156
      %v1160 = vmul.f32 %v1149, %v1156
      %v1161 = vsub.f32 %v1126, %v1157
      %v1162 = vsub.f32 %v1128, %v1158
      %v1163 = vsub.f32 %v1131, %v1159
      %v1164 = vsub.f32 %v1133, %v1160
      %v1165 = vmul.f32 %v1161, %v1161
      %v1166 = vmul.f32 %v1162, %v1162
      %v1167 = vmul.f32 %v1163, %v1163
      %v1168 = vmul.f32 %v1164, %v1164
      %v1169 = vsel %vm1137, %v1165, 0.0
      %1170 = vadd.xlane.f32.xlu0 %v1169
      %v1171 = vpop.xlane.xlu0 %1170
      %v1172 = vsel %vm1137, %v1166, 0.0
      %1173 = vadd.xlane.f32.xlu0 %v1172
      %v1174 = vpop.xlane.xlu0 %1173
      %v1175 = vsel %vm1137, %v1167, 0.0
      %1176 = vadd.xlane.f32.xlu0 %v1175
      %v1177 = vpop.xlane.xlu0 %1176
      %v1178 = vsel %vm1137, %v1168, 0.0
      %1179 = vadd.xlane.f32.xlu0 %v1178
      %v1180 = vpop.xlane.xlu0 %1179
      %v1181 = vmul.f32 %v1171, %v1156
      %v1182 = vmul.f32 %v1174, %v1156
      %v1183 = vmul.f32 %v1177, %v1156
      %v1184 = vmul.f32 %v1180, %v1156
      %v1185 = vadd.f32 %v1181, 1e-06
      %v1186 = vadd.f32 %v1182, 1e-06
      %v1187 = vadd.f32 %v1183, 1e-06
      %v1188 = vadd.f32 %v1184, 1e-06
      %v1189 = vrsqrt.pop %v1185
      %v1190 = vmul.f32 %v1189, %v1185
      %v1191 = vmul.f32 %v1190, %v1189
      %v1192 = vmul.f32 0.5, %v1191
      %v1193 = vsub.f32 1.5, %v1192
      %v1194 = vmul.f32 %v1189, %v1193
      %vm1195 = vweird.f32 %v1185
      %vm1196 = vweird.f32 %v1189
      %vm1197 = vmor %vm1195, %vm1196
      %v1198 = vsel %vm1197, %v1189, %v1194
      %v1199 = vrsqrt.pop %v1186
      %v1200 = vmul.f32 %v1199, %v1186
      %v1201 = vmul.f32 %v1200, %v1199
      %v1202 = vmul.f32 0.5, %v1201
      %v1203 = vsub.f32 1.5, %v1202
      %v1204 = vmul.f32 %v1199, %v1203
      %vm1205 = vweird.f32 %v1186
      %vm1206 = vweird.f32 %v1199
      %vm1207 = vmor %vm1205, %vm1206
      %v1208 = vsel %vm1207, %v1199, %v1204
      %v1209 = vrsqrt.pop %v1187
      %v1210 = vmul.f32 %v1209, %v1187
      %v1211 = vmul.f32 %v1210, %v1209
      %v1212 = vmul.f32 0.5, %v1211
      %v1213 = vsub.f32 1.5, %v1212
      %v1214 = vmul.f32 %v1209, %v1213
      %vm1215 = vweird.f32 %v1187
      %vm1216 = vweird.f32 %v1209
      %vm1217 = vmor %vm1215, %vm1216
      %v1218 = vsel %vm1217, %v1209, %v1214
      %v1219 = vrsqrt.pop %v1188
      %v1220 = vmul.f32 %v1219, %v1188
      %v1221 = vmul.f32 %v1220, %v1219
      %v1222 = vmul.f32 0.5, %v1221
      %v1223 = vsub.f32 1.5, %v1222
      %v1224 = vmul.f32 %v1219, %v1223
      %vm1225 = vweird.f32 %v1188
      %vm1226 = vweird.f32 %v1219
      %vm1227 = vmor %vm1225, %vm1226
      %v1228 = vsel %vm1227, %v1219, %v1224
      %v1229 = vmul.f32 %v1161, %v1198
      %v1230 = vmul.f32 %v1162, %v1208
      %v1231 = vmul.f32 %v1163, %v1218
      %v1232 = vmul.f32 %v1164, %v1228
      %v1234 = vperm.slane %v1135, 0
      %v1236 = vmul.f32 %v1229, %v1234
      %v1237 = vmul.f32 %v1230, %v1234
      %v1238 = vmul.f32 %v1231, %v1234
      %v1239 = vmul.f32 %v1232, %v1234
      %v1241 = vperm.slane %v1136, 0
      %v1243 = vadd.f32 %v1236, %v1241
      %v1244 = vadd.f32 %v1237, %v1241
      %v1245 = vadd.f32 %v1238, %v1241
      %v1246 = vadd.f32 %v1239, %v1241
      %v1247 = vld [vmem:[%s11] sm:$0xf]
      %v1248 = vld [vmem:[%s11 + $0x4] sm:$0xf]
      %v1249 = vld [vmem:[%s11 + $0x8] sm:$0xf]
      %v1250 = vld [vmem:[%s11 + $0xc] sm:$0xf]
      %v1251 = vld [vmem:[%s13] sm:$0x1]
      %v1252 = vld [vmem:[%s15] sm:$0xf]
      %v1253 = vld [vmem:[%s15 + $0x4] sm:$0xf]
      %v1254 = vld [vmem:[%s15 + $0x8] sm:$0xf]
      %v1255 = vld [vmem:[%s15 + $0xc] sm:$0xf]
      %v1256 = vld [vmem:[%s17] sm:$0x1]
      %v1257 = vpack.c.bf16 %v1244, %v1243
      %v1258 = vpack.c.bf16 %v1246, %v1245
      %v1260 = vperm.slane %v1251, 0
      %v1266 = vunpack.c.l.b16 %v1247
      %v1267 = vunpack.c.l.b16 %v1248
      %v1268 = vunpack.c.l.b16 %v1249
      %v1269 = vunpack.c.l.b16 %v1250
      %v1270 = vpack.c.b16 %v1267, %v1266
      %v1271 = vpack.c.b16 %v1269, %v1268
      %v1275 = vsel %vm1137, %v1257, 0
      %v1278 = vsel %vm1137, %v1258, 0
      %1280 = vmatpush.bf16.msra.mxu0 0
      %1281 = vmatpush.bf16.msra.mxu0 0
      %1282 = vmatpush.bf16.msra.mxu0 0
      %1283 = vmatpush.bf16.msra.mxu0 0
      %1284 = vmatpush.bf16.msra.mxu0 0
      %1285 = vmatpush.bf16.msra.mxu0 0
      %1286 = vmatpush.bf16.msra.mxu0 %v1271
      %1287 = vmatpush.bf16.msra.mxu0 %v1270
      %1288 = vmatmul.bf16.gmra.mxu0 %v1275
      %v1289 = vpop.f32.mrf.mxu0
      %v1290 = vadd.f32 %v1260, %v1289
      %v1291 = vpop.f32.mrf.mxu0
      %v1292 = vadd.f32 %v1260, %v1291
      %1293 = vmatmul.bf16.gmra.mxu0 %v1278
      %v1294 = vpop.f32.mrf.mxu0
      %v1295 = vadd.f32 %v1260, %v1294
      %v1296 = vpop.f32.mrf.mxu0
      %v1297 = vadd.f32 %v1260, %v1296
      %1298 = vdwg.mxu0
      %v1299 = vmul.f32 %v1290, 0.35355338
      %v1300 = vmul.f32 %v1292, 0.35355338
      %v1301 = vmul.f32 %v1295, 0.35355338
      %v1302 = vmul.f32 %v1297, 0.35355338
      %v1303 = vpack.c.bf16 %v1300, %v1299
      %v1304 = vpack.c.bf16 %v1302, %v1301
      %v1305 = vpack.c.bf16 %v1292, %v1290
      %v1306 = vpack.c.bf16 %v1297, %v1295
      %1309 = vrot.lane.b32.xlu0 %v1305, 96
      %v1310 = vpop.permute.xlu0 %1309
      %1311 = vrot.lane.b32.xlu0 %v1306, 96
      %v1312 = vpop.permute.xlu0 %1311
      %vm1313 = vcmask 64512
      %v1315 = vsel %vm1313, %v1303, 0
      %v1318 = vsel %vm1313, %v1304, 0
      %v1321 = vsel %vm1313, %v1310, 0
      %v1324 = vsel %vm1313, %v1312, 0
      %1326 = vmatpush.bf16.xpose.msra.mxu0 0
      %1327 = vmatpush.bf16.xpose.msra.mxu0 0
      %1328 = vmatpush.bf16.xpose.msra.mxu0 0
      %1329 = vmatpush.bf16.xpose.msra.mxu0 0
      %1330 = vmatpush.bf16.xpose.msra.mxu0 0
      %1331 = vmatpush.bf16.xpose.msra.mxu0 0
      %1332 = vmatpush.bf16.xpose.msra.mxu0 %v1324
      %1333 = vmatpush.bf16.xpose.msra.mxu0 %v1321
      %1334 = vmatmul.bf16.gmra.mxu0 %v1315
      %v1335 = vpop.f32.mrf.mxu0
      %v1336 = vadd.f32 0.0, %v1335
      %v1337 = vpop.f32.mrf.mxu0
      %v1338 = vadd.f32 0.0, %v1337
      %1339 = vmatmul.bf16.gmra.mxu0 %v1318
      %v1340 = vpop.f32.mrf.mxu0
      %v1341 = vadd.f32 0.0, %v1340
      %v1342 = vpop.f32.mrf.mxu0
      %v1343 = vadd.f32 0.0, %v1342
      %1344 = vdwg.mxu0
      %v1345 = vsel %vm1074, 1, 0
      %vm1346 = vcmp.eq.s32.totalorder %v1345, 1
      %v1347 = vsel %vm1346, %v1336, -1e+30
      %v1348 = vsel %vm1346, %v1338, -1e+30
      %v1349 = vsel %vm1346, %v1341, -1e+30
      %v1350 = vsel %vm1346, %v1343, -1e+30
      %v1351 = vsel %vm1137, %v1347, -inf
      %1352 = vmax.xlane.f32.xlu0 %v1351
      %v1353 = vpop.xlane.xlu0 %1352
      %v1354 = vsel %vm1137, %v1348, -inf
      %1355 = vmax.xlane.f32.xlu0 %v1354
      %v1356 = vpop.xlane.xlu0 %1355
      %v1357 = vsel %vm1137, %v1349, -inf
      %1358 = vmax.xlane.f32.xlu0 %v1357
      %v1359 = vpop.xlane.xlu0 %1358
      %v1360 = vsel %vm1137, %v1350, -inf
      %1361 = vmax.xlane.f32.xlu0 %v1360
      %v1362 = vpop.xlane.xlu0 %1361
      %v1363 = vsub.f32 %v1347, %v1353
      %v1364 = vsub.f32 %v1348, %v1356
      %v1365 = vsub.f32 %v1349, %v1359
      %v1366 = vsub.f32 %v1350, %v1362
      %v1367 = vmul.f32 %v1363, 1.442695
      %v1368 = vpow.pop %v1367
      %v1369 = vmul.f32 %v1364, 1.442695
      %v1370 = vpow.pop %v1369
      %v1371 = vmul.f32 %v1365, 1.442695
      %v1372 = vpow.pop %v1371
      %v1373 = vmul.f32 %v1366, 1.442695
      %v1374 = vpow.pop %v1373
      %v1375 = vsel %vm1137, %v1368, 0.0
      %1376 = vadd.xlane.f32.xlu0 %v1375
      %v1377 = vpop.xlane.xlu0 %1376
      %v1378 = vsel %vm1137, %v1370, 0.0
      %1379 = vadd.xlane.f32.xlu0 %v1378
      %v1380 = vpop.xlane.xlu0 %1379
      %v1381 = vsel %vm1137, %v1372, 0.0
      %1382 = vadd.xlane.f32.xlu0 %v1381
      %v1383 = vpop.xlane.xlu0 %1382
      %v1384 = vsel %vm1137, %v1374, 0.0
      %1385 = vadd.xlane.f32.xlu0 %v1384
      %v1386 = vpop.xlane.xlu0 %1385
      %v1387 = vrcp.pop %v1377
      %v1388 = vrcp.pop %v1380
      %v1389 = vrcp.pop %v1383
      %v1390 = vrcp.pop %v1386
      %v1391 = vmul.f32 %v1368, %v1387
      %v1392 = vmul.f32 %v1370, %v1388
      %v1393 = vmul.f32 %v1372, %v1389
      %v1394 = vmul.f32 %v1374, %v1390
      %v1395 = vpack.c.bf16 %v1392, %v1391
      %v1396 = vpack.c.bf16 %v1394, %v1393
      %1397 = vrot.lane.b32.xlu0 %v1305, 64
      %v1398 = vpop.permute.xlu0 %1397
      %1399 = vrot.lane.b32.xlu0 %v1306, 64
      %v1400 = vpop.permute.xlu0 %1399
      %v1404 = vsel %vm1137, %v1395, 0
      %v1407 = vsel %vm1137, %v1396, 0
      %1409 = vmatpush.bf16.msra.mxu0 0
      %1410 = vmatpush.bf16.msra.mxu0 0
      %1411 = vmatpush.bf16.msra.mxu0 0
      %1412 = vmatpush.bf16.msra.mxu0 0
      %1413 = vmatpush.bf16.msra.mxu0 0
      %1414 = vmatpush.bf16.msra.mxu0 0
      %1415 = vmatpush.bf16.msra.mxu0 %v1400
      %1416 = vmatpush.bf16.msra.mxu0 %v1398
      %1417 = vmatmul.bf16.gmra.mxu0 %v1404
      %v1418 = vpop.f32.mrf.mxu0
      %v1419 = vadd.f32 0.0, %v1418
      %v1420 = vpop.f32.mrf.mxu0
      %v1421 = vadd.f32 0.0, %v1420
      %1422 = vmatmul.bf16.gmra.mxu0 %v1407
      %v1423 = vpop.f32.mrf.mxu0
      %v1424 = vadd.f32 0.0, %v1423
      %v1425 = vpop.f32.mrf.mxu0
      %v1426 = vadd.f32 0.0, %v1425
      %1427 = vdwg.mxu0
      %v1428 = vpack.c.bf16 %v1421, %v1419
      %v1429 = vpack.c.bf16 %v1426, %v1424
      %1432 = vrot.lane.b32.xlu0 %v1303, 120
      %v1433 = vpop.permute.xlu0 %1432
      %1434 = vrot.lane.b32.xlu0 %v1304, 120
      %v1435 = vpop.permute.xlu0 %1434
      %1436 = vrot.lane.b32.xlu0 %v1305, 88
      %v1437 = vpop.permute.xlu0 %1436
      %1438 = vrot.lane.b32.xlu0 %v1306, 88
      %v1439 = vpop.permute.xlu0 %1438
      %v1441 = vsel %vm1313, %v1433, 0
      %v1444 = vsel %vm1313, %v1435, 0
      %v1447 = vsel %vm1313, %v1437, 0
      %v1450 = vsel %vm1313, %v1439, 0
      %1452 = vmatpush.bf16.xpose.msra.mxu0 0
      %1453 = vmatpush.bf16.xpose.msra.mxu0 0
      %1454 = vmatpush.bf16.xpose.msra.mxu0 0
      %1455 = vmatpush.bf16.xpose.msra.mxu0 0
      %1456 = vmatpush.bf16.xpose.msra.mxu0 0
      %1457 = vmatpush.bf16.xpose.msra.mxu0 0
      %1458 = vmatpush.bf16.xpose.msra.mxu0 %v1450
      %1459 = vmatpush.bf16.xpose.msra.mxu0 %v1447
      %1460 = vmatmul.bf16.gmra.mxu0 %v1441
      %v1461 = vpop.f32.mrf.mxu0
      %v1462 = vadd.f32 0.0, %v1461
      %v1463 = vpop.f32.mrf.mxu0
      %v1464 = vadd.f32 0.0, %v1463
      %1465 = vmatmul.bf16.gmra.mxu0 %v1444
      %v1466 = vpop.f32.mrf.mxu0
      %v1467 = vadd.f32 0.0, %v1466
      %v1468 = vpop.f32.mrf.mxu0
      %v1469 = vadd.f32 0.0, %v1468
      %1470 = vdwg.mxu0
      %v1471 = vsel %vm1346, %v1462, -1e+30
      %v1472 = vsel %vm1346, %v1464, -1e+30
      %v1473 = vsel %vm1346, %v1467, -1e+30
      %v1474 = vsel %vm1346, %v1469, -1e+30
      %v1475 = vsel %vm1137, %v1471, -inf
      %1476 = vmax.xlane.f32.xlu0 %v1475
      %v1477 = vpop.xlane.xlu0 %1476
      %v1478 = vsel %vm1137, %v1472, -inf
      %1479 = vmax.xlane.f32.xlu0 %v1478
      %v1480 = vpop.xlane.xlu0 %1479
      %v1481 = vsel %vm1137, %v1473, -inf
      %1482 = vmax.xlane.f32.xlu0 %v1481
      %v1483 = vpop.xlane.xlu0 %1482
      %v1484 = vsel %vm1137, %v1474, -inf
      %1485 = vmax.xlane.f32.xlu0 %v1484
      %v1486 = vpop.xlane.xlu0 %1485
      %v1487 = vsub.f32 %v1471, %v1477
      %v1488 = vsub.f32 %v1472, %v1480
      %v1489 = vsub.f32 %v1473, %v1483
      %v1490 = vsub.f32 %v1474, %v1486
      %v1491 = vmul.f32 %v1487, 1.442695
      %v1492 = vpow.pop %v1491
      %v1493 = vmul.f32 %v1488, 1.442695
      %v1494 = vpow.pop %v1493
      %v1495 = vmul.f32 %v1489, 1.442695
      %v1496 = vpow.pop %v1495
      %v1497 = vmul.f32 %v1490, 1.442695
      %v1498 = vpow.pop %v1497
      %v1499 = vsel %vm1137, %v1492, 0.0
      %1500 = vadd.xlane.f32.xlu0 %v1499
      %v1501 = vpop.xlane.xlu0 %1500
      %v1502 = vsel %vm1137, %v1494, 0.0
      %1503 = vadd.xlane.f32.xlu0 %v1502
      %v1504 = vpop.xlane.xlu0 %1503
      %v1505 = vsel %vm1137, %v1496, 0.0
      %1506 = vadd.xlane.f32.xlu0 %v1505
      %v1507 = vpop.xlane.xlu0 %1506
      %v1508 = vsel %vm1137, %v1498, 0.0
      %1509 = vadd.xlane.f32.xlu0 %v1508
      %v1510 = vpop.xlane.xlu0 %1509
      %v1511 = vrcp.pop %v1501
      %v1512 = vrcp.pop %v1504
      %v1513 = vrcp.pop %v1507
      %v1514 = vrcp.pop %v1510
      %v1515 = vmul.f32 %v1492, %v1511
      %v1516 = vmul.f32 %v1494, %v1512
      %v1517 = vmul.f32 %v1496, %v1513
      %v1518 = vmul.f32 %v1498, %v1514
      %v1519 = vpack.c.bf16 %v1516, %v1515
      %v1520 = vpack.c.bf16 %v1518, %v1517
      %1521 = vrot.lane.b32.xlu0 %v1305, 56
      %v1522 = vpop.permute.xlu0 %1521
      %1523 = vrot.lane.b32.xlu0 %v1306, 56
      %v1524 = vpop.permute.xlu0 %1523
      %v1528 = vsel %vm1137, %v1519, 0
      %v1531 = vsel %vm1137, %v1520, 0
      %1533 = vmatpush.bf16.msra.mxu0 0
      %1534 = vmatpush.bf16.msra.mxu0 0
      %1535 = vmatpush.bf16.msra.mxu0 0
      %1536 = vmatpush.bf16.msra.mxu0 0
      %1537 = vmatpush.bf16.msra.mxu0 0
      %1538 = vmatpush.bf16.msra.mxu0 0
      %1539 = vmatpush.bf16.msra.mxu0 %v1524
      %1540 = vmatpush.bf16.msra.mxu0 %v1522
      %1541 = vmatmul.bf16.gmra.mxu0 %v1528
      %v1542 = vpop.f32.mrf.mxu0
      %v1543 = vadd.f32 0.0, %v1542
      %v1544 = vpop.f32.mrf.mxu0
      %v1545 = vadd.f32 0.0, %v1544
      %1546 = vmatmul.bf16.gmra.mxu0 %v1531
      %v1547 = vpop.f32.mrf.mxu0
      %v1548 = vadd.f32 0.0, %v1547
      %v1549 = vpop.f32.mrf.mxu0
      %v1550 = vadd.f32 0.0, %v1549
      %1551 = vdwg.mxu0
      %v1552 = vpack.c.bf16 %v1545, %v1543
      %v1553 = vpack.c.bf16 %v1550, %v1548
      %v1555 = vsel %vm1313, %v1552, 0
      %v1558 = vsel %vm1313, %v1553, 0
      %vm1560 = vcmask 1043456
      %v1562 = vsel %vm1560, %v1253, 0
      %1564 = vmatpush.bf16.msra.mxu0 0
      %1565 = vmatpush.bf16.msra.mxu0 0
      %1566 = vmatpush.bf16.msra.mxu0 0
      %1567 = vmatpush.bf16.msra.mxu0 0
      %1568 = vmatpush.bf16.msra.mxu0 0
      %1569 = vmatpush.bf16.msra.mxu0 0
      %1570 = vmatpush.bf16.msra.mxu0 0
      %1571 = vmatpush.bf16.msra.mxu0 %v1562
      %1572 = vmatmul.bf16.gmra.mxu0 %v1555
      %v1573 = vpop.f32.mrf.mxu0
      %v1574 = vadd.f32 0.0, %v1573
      %v1575 = vpop.f32.mrf.mxu0
      %v1576 = vadd.f32 0.0, %v1575
      %1577 = vmatmul.bf16.gmra.mxu0 %v1558
      %v1578 = vpop.f32.mrf.mxu0
      %v1579 = vadd.f32 0.0, %v1578
      %v1580 = vpop.f32.mrf.mxu0
      %v1581 = vadd.f32 0.0, %v1580
      %1582 = vdwg.mxu0
      %v1584 = vsel %vm1313, %v1428, 0
      %v1587 = vsel %vm1313, %v1429, 0
      %v1590 = vsel %vm1560, %v1252, 0
      %1592 = vmatpush.bf16.msra.mxu0 0
      %1593 = vmatpush.bf16.msra.mxu0 0
      %1594 = vmatpush.bf16.msra.mxu0 0
      %1595 = vmatpush.bf16.msra.mxu0 0
      %1596 = vmatpush.bf16.msra.mxu0 0
      %1597 = vmatpush.bf16.msra.mxu0 0
      %1598 = vmatpush.bf16.msra.mxu0 0
      %1599 = vmatpush.bf16.msra.mxu0 %v1590
      %1600 = vmatmul.bf16.gmra.mxu0 %v1584
      %v1601 = vpop.f32.mrf.mxu0
      %v1602 = vadd.f32 %v1574, %v1601
      %v1603 = vpop.f32.mrf.mxu0
      %v1604 = vadd.f32 %v1576, %v1603
      %1605 = vmatmul.bf16.gmra.mxu0 %v1587
      %v1606 = vpop.f32.mrf.mxu0
      %v1607 = vadd.f32 %v1579, %v1606
      %v1608 = vpop.f32.mrf.mxu0
      %v1609 = vadd.f32 %v1581, %v1608
      %1610 = vdwg.mxu0
      %1611 = vrot.lane.b32.xlu0 %v1303, 112
      %v1612 = vpop.permute.xlu0 %1611
      %1613 = vrot.lane.b32.xlu0 %v1304, 112
      %v1614 = vpop.permute.xlu0 %1613
      %1615 = vrot.lane.b32.xlu0 %v1305, 80
      %v1616 = vpop.permute.xlu0 %1615
      %1617 = vrot.lane.b32.xlu0 %v1306, 80
      %v1618 = vpop.permute.xlu0 %1617
      %v1620 = vsel %vm1313, %v1612, 0
      %v1623 = vsel %vm1313, %v1614, 0
      %v1626 = vsel %vm1313, %v1616, 0
      %v1629 = vsel %vm1313, %v1618, 0
      %1631 = vmatpush.bf16.xpose.msra.mxu0 0
      %1632 = vmatpush.bf16.xpose.msra.mxu0 0
      %1633 = vmatpush.bf16.xpose.msra.mxu0 0
      %1634 = vmatpush.bf16.xpose.msra.mxu0 0
      %1635 = vmatpush.bf16.xpose.msra.mxu0 0
      %1636 = vmatpush.bf16.xpose.msra.mxu0 0
      %1637 = vmatpush.bf16.xpose.msra.mxu0 %v1629
      %1638 = vmatpush.bf16.xpose.msra.mxu0 %v1626
      %1639 = vmatmul.bf16.gmra.mxu0 %v1620
      %v1640 = vpop.f32.mrf.mxu0
      %v1641 = vadd.f32 0.0, %v1640
      %v1642 = vpop.f32.mrf.mxu0
      %v1643 = vadd.f32 0.0, %v1642
      %1644 = vmatmul.bf16.gmra.mxu0 %v1623
      %v1645 = vpop.f32.mrf.mxu0
      %v1646 = vadd.f32 0.0, %v1645
      %v1647 = vpop.f32.mrf.mxu0
      %v1648 = vadd.f32 0.0, %v1647
      %1649 = vdwg.mxu0
      %v1650 = vsel %vm1346, %v1641, -1e+30
      %v1651 = vsel %vm1346, %v1643, -1e+30
      %v1652 = vsel %vm1346, %v1646, -1e+30
      %v1653 = vsel %vm1346, %v1648, -1e+30
      %v1654 = vsel %vm1137, %v1650, -inf
      %1655 = vmax.xlane.f32.xlu0 %v1654
      %v1656 = vpop.xlane.xlu0 %1655
      %v1657 = vsel %vm1137, %v1651, -inf
      %1658 = vmax.xlane.f32.xlu0 %v1657
      %v1659 = vpop.xlane.xlu0 %1658
      %v1660 = vsel %vm1137, %v1652, -inf
      %1661 = vmax.xlane.f32.xlu0 %v1660
      %v1662 = vpop.xlane.xlu0 %1661
      %v1663 = vsel %vm1137, %v1653, -inf
      %1664 = vmax.xlane.f32.xlu0 %v1663
      %v1665 = vpop.xlane.xlu0 %1664
      %v1666 = vsub.f32 %v1650, %v1656
      %v1667 = vsub.f32 %v1651, %v1659
      %v1668 = vsub.f32 %v1652, %v1662
      %v1669 = vsub.f32 %v1653, %v1665
      %v1670 = vmul.f32 %v1666, 1.442695
      %v1671 = vpow.pop %v1670
      %v1672 = vmul.f32 %v1667, 1.442695
      %v1673 = vpow.pop %v1672
      %v1674 = vmul.f32 %v1668, 1.442695
      %v1675 = vpow.pop %v1674
      %v1676 = vmul.f32 %v1669, 1.442695
      %v1677 = vpow.pop %v1676
      %v1678 = vsel %vm1137, %v1671, 0.0
      %1679 = vadd.xlane.f32.xlu0 %v1678
      %v1680 = vpop.xlane.xlu0 %1679
      %v1681 = vsel %vm1137, %v1673, 0.0
      %1682 = vadd.xlane.f32.xlu0 %v1681
      %v1683 = vpop.xlane.xlu0 %1682
      %v1684 = vsel %vm1137, %v1675, 0.0
      %1685 = vadd.xlane.f32.xlu0 %v1684
      %v1686 = vpop.xlane.xlu0 %1685
      %v1687 = vsel %vm1137, %v1677, 0.0
      %1688 = vadd.xlane.f32.xlu0 %v1687
      %v1689 = vpop.xlane.xlu0 %1688
      %v1690 = vrcp.pop %v1680
      %v1691 = vrcp.pop %v1683
      %v1692 = vrcp.pop %v1686
      %v1693 = vrcp.pop %v1689
      %v1694 = vmul.f32 %v1671, %v1690
      %v1695 = vmul.f32 %v1673, %v1691
      %v1696 = vmul.f32 %v1675, %v1692
      %v1697 = vmul.f32 %v1677, %v1693
      %v1698 = vpack.c.bf16 %v1695, %v1694
      %v1699 = vpack.c.bf16 %v1697, %v1696
      %1700 = vrot.lane.b32.xlu0 %v1305, 48
      %v1701 = vpop.permute.xlu0 %1700
      %1702 = vrot.lane.b32.xlu0 %v1306, 48
      %v1703 = vpop.permute.xlu0 %1702
      %v1707 = vsel %vm1137, %v1698, 0
      %v1710 = vsel %vm1137, %v1699, 0
      %1712 = vmatpush.bf16.msra.mxu0 0
      %1713 = vmatpush.bf16.msra.mxu0 0
      %1714 = vmatpush.bf16.msra.mxu0 0
      %1715 = vmatpush.bf16.msra.mxu0 0
      %1716 = vmatpush.bf16.msra.mxu0 0
      %1717 = vmatpush.bf16.msra.mxu0 0
      %1718 = vmatpush.bf16.msra.mxu0 %v1703
      %1719 = vmatpush.bf16.msra.mxu0 %v1701
      %1720 = vmatmul.bf16.gmra.mxu0 %v1707
      %v1721 = vpop.f32.mrf.mxu0
      %v1722 = vadd.f32 0.0, %v1721
      %v1723 = vpop.f32.mrf.mxu0
      %v1724 = vadd.f32 0.0, %v1723
      %1725 = vmatmul.bf16.gmra.mxu0 %v1710
      %v1726 = vpop.f32.mrf.mxu0
      %v1727 = vadd.f32 0.0, %v1726
      %v1728 = vpop.f32.mrf.mxu0
      %v1729 = vadd.f32 0.0, %v1728
      %1730 = vdwg.mxu0
      %v1731 = vpack.c.bf16 %v1724, %v1722
      %v1732 = vpack.c.bf16 %v1729, %v1727
      %v1734 = vsel %vm1313, %v1731, 0
      %v1737 = vsel %vm1313, %v1732, 0
      %v1740 = vsel %vm1560, %v1254, 0
      %1742 = vmatpush.bf16.msra.mxu0 0
      %1743 = vmatpush.bf16.msra.mxu0 0
      %1744 = vmatpush.bf16.msra.mxu0 0
      %1745 = vmatpush.bf16.msra.mxu0 0
      %1746 = vmatpush.bf16.msra.mxu0 0
      %1747 = vmatpush.bf16.msra.mxu0 0
      %1748 = vmatpush.bf16.msra.mxu0 0
      %1749 = vmatpush.bf16.msra.mxu0 %v1740
      %1750 = vmatmul.bf16.gmra.mxu0 %v1734
      %v1751 = vpop.f32.mrf.mxu0
      %v1752 = vadd.f32 0.0, %v1751
      %v1753 = vpop.f32.mrf.mxu0
      %v1754 = vadd.f32 0.0, %v1753
      %1755 = vmatmul.bf16.gmra.mxu0 %v1737
      %v1756 = vpop.f32.mrf.mxu0
      %v1757 = vadd.f32 0.0, %v1756
      %v1758 = vpop.f32.mrf.mxu0
      %v1759 = vadd.f32 0.0, %v1758
      %1760 = vdwg.mxu0
      %v1761 = vadd.f32 %v1602, %v1752
      %v1762 = vadd.f32 %v1604, %v1754
      %v1763 = vadd.f32 %v1607, %v1757
      %v1764 = vadd.f32 %v1609, %v1759
      %1765 = vrot.lane.b32.xlu0 %v1303, 104
      %v1766 = vpop.permute.xlu0 %1765
      %1767 = vrot.lane.b32.xlu0 %v1304, 104
      %v1768 = vpop.permute.xlu0 %1767
      %1769 = vrot.lane.b32.xlu0 %v1305, 72
      %v1770 = vpop.permute.xlu0 %1769
      %1771 = vrot.lane.b32.xlu0 %v1306, 72
      %v1772 = vpop.permute.xlu0 %1771
      %v1774 = vsel %vm1313, %v1766, 0
      %v1777 = vsel %vm1313, %v1768, 0
      %v1780 = vsel %vm1313, %v1770, 0
      %v1783 = vsel %vm1313, %v1772, 0
      %1785 = vmatpush.bf16.xpose.msra.mxu0 0
      %1786 = vmatpush.bf16.xpose.msra.mxu0 0
      %1787 = vmatpush.bf16.xpose.msra.mxu0 0
      %1788 = vmatpush.bf16.xpose.msra.mxu0 0
      %1789 = vmatpush.bf16.xpose.msra.mxu0 0
      %1790 = vmatpush.bf16.xpose.msra.mxu0 0
      %1791 = vmatpush.bf16.xpose.msra.mxu0 %v1783
      %1792 = vmatpush.bf16.xpose.msra.mxu0 %v1780
      %1793 = vmatmul.bf16.gmra.mxu0 %v1774
      %v1794 = vpop.f32.mrf.mxu0
      %v1795 = vadd.f32 0.0, %v1794
      %v1796 = vpop.f32.mrf.mxu0
      %v1797 = vadd.f32 0.0, %v1796
      %1798 = vmatmul.bf16.gmra.mxu0 %v1777
      %v1799 = vpop.f32.mrf.mxu0
      %v1800 = vadd.f32 0.0, %v1799
      %v1801 = vpop.f32.mrf.mxu0
      %v1802 = vadd.f32 0.0, %v1801
      %1803 = vdwg.mxu0
      %v1804 = vsel %vm1346, %v1795, -1e+30
      %v1805 = vsel %vm1346, %v1797, -1e+30
      %v1806 = vsel %vm1346, %v1800, -1e+30
      %v1807 = vsel %vm1346, %v1802, -1e+30
      %v1808 = vsel %vm1137, %v1804, -inf
      %1809 = vmax.xlane.f32.xlu0 %v1808
      %v1810 = vpop.xlane.xlu0 %1809
      %v1811 = vsel %vm1137, %v1805, -inf
      %1812 = vmax.xlane.f32.xlu0 %v1811
      %v1813 = vpop.xlane.xlu0 %1812
      %v1814 = vsel %vm1137, %v1806, -inf
      %1815 = vmax.xlane.f32.xlu0 %v1814
      %v1816 = vpop.xlane.xlu0 %1815
      %v1817 = vsel %vm1137, %v1807, -inf
      %1818 = vmax.xlane.f32.xlu0 %v1817
      %v1819 = vpop.xlane.xlu0 %1818
      %v1820 = vsub.f32 %v1804, %v1810
      %v1821 = vsub.f32 %v1805, %v1813
      %v1822 = vsub.f32 %v1806, %v1816
      %v1823 = vsub.f32 %v1807, %v1819
      %v1824 = vmul.f32 %v1820, 1.442695
      %v1825 = vpow.pop %v1824
      %v1826 = vmul.f32 %v1821, 1.442695
      %v1827 = vpow.pop %v1826
      %v1828 = vmul.f32 %v1822, 1.442695
      %v1829 = vpow.pop %v1828
      %v1830 = vmul.f32 %v1823, 1.442695
      %v1831 = vpow.pop %v1830
      %v1832 = vsel %vm1137, %v1825, 0.0
      %1833 = vadd.xlane.f32.xlu0 %v1832
      %v1834 = vpop.xlane.xlu0 %1833
      %v1835 = vsel %vm1137, %v1827, 0.0
      %1836 = vadd.xlane.f32.xlu0 %v1835
      %v1837 = vpop.xlane.xlu0 %1836
      %v1838 = vsel %vm1137, %v1829, 0.0
      %1839 = vadd.xlane.f32.xlu0 %v1838
      %v1840 = vpop.xlane.xlu0 %1839
      %v1841 = vsel %vm1137, %v1831, 0.0
      %1842 = vadd.xlane.f32.xlu0 %v1841
      %v1843 = vpop.xlane.xlu0 %1842
      %v1844 = vrcp.pop %v1834
      %v1845 = vrcp.pop %v1837
      %v1846 = vrcp.pop %v1840
      %v1847 = vrcp.pop %v1843
      %v1848 = vmul.f32 %v1825, %v1844
      %v1849 = vmul.f32 %v1827, %v1845
      %v1850 = vmul.f32 %v1829, %v1846
      %v1851 = vmul.f32 %v1831, %v1847
      %v1852 = vpack.c.bf16 %v1849, %v1848
      %v1853 = vpack.c.bf16 %v1851, %v1850
      %1854 = vrot.lane.b32.xlu0 %v1305, 40
      %v1855 = vpop.permute.xlu0 %1854
      %1856 = vrot.lane.b32.xlu0 %v1306, 40
      %v1857 = vpop.permute.xlu0 %1856
      %v1861 = vsel %vm1137, %v1852, 0
      %v1864 = vsel %vm1137, %v1853, 0
      %1866 = vmatpush.bf16.msra.mxu0 0
      %1867 = vmatpush.bf16.msra.mxu0 0
      %1868 = vmatpush.bf16.msra.mxu0 0
      %1869 = vmatpush.bf16.msra.mxu0 0
      %1870 = vmatpush.bf16.msra.mxu0 0
      %1871 = vmatpush.bf16.msra.mxu0 0
      %1872 = vmatpush.bf16.msra.mxu0 %v1857
      %1873 = vmatpush.bf16.msra.mxu0 %v1855
      %1874 = vmatmul.bf16.gmra.mxu0 %v1861
      %v1875 = vpop.f32.mrf.mxu0
      %v1876 = vadd.f32 0.0, %v1875
      %v1877 = vpop.f32.mrf.mxu0
      %v1878 = vadd.f32 0.0, %v1877
      %1879 = vmatmul.bf16.gmra.mxu0 %v1864
      %v1880 = vpop.f32.mrf.mxu0
      %v1881 = vadd.f32 0.0, %v1880
      %v1882 = vpop.f32.mrf.mxu0
      %v1883 = vadd.f32 0.0, %v1882
      %1884 = vdwg.mxu0
      %v1885 = vpack.c.bf16 %v1878, %v1876
      %v1886 = vpack.c.bf16 %v1883, %v1881
      %v1888 = vsel %vm1313, %v1885, 0
      %v1891 = vsel %vm1313, %v1886, 0
      %v1894 = vsel %vm1560, %v1255, 0
      %1896 = vmatpush.bf16.msra.mxu0 0
      %1897 = vmatpush.bf16.msra.mxu0 0
      %1898 = vmatpush.bf16.msra.mxu0 0
      %1899 = vmatpush.bf16.msra.mxu0 0
      %1900 = vmatpush.bf16.msra.mxu0 0
      %1901 = vmatpush.bf16.msra.mxu0 0
      %1902 = vmatpush.bf16.msra.mxu0 0
      %1903 = vmatpush.bf16.msra.mxu0 %v1894
      %1904 = vmatmul.bf16.gmra.mxu0 %v1888
      %v1905 = vpop.f32.mrf.mxu0
      %v1906 = vadd.f32 0.0, %v1905
      %v1907 = vpop.f32.mrf.mxu0
      %v1908 = vadd.f32 0.0, %v1907
      %1909 = vmatmul.bf16.gmra.mxu0 %v1891
      %v1910 = vpop.f32.mrf.mxu0
      %v1911 = vadd.f32 0.0, %v1910
      %v1912 = vpop.f32.mrf.mxu0
      %v1913 = vadd.f32 0.0, %v1912
      %1914 = vdwg.mxu0
      %v1915 = vadd.f32 %v1761, %v1906
      %v1916 = vadd.f32 %v1762, %v1908
      %v1917 = vadd.f32 %v1763, %v1911
      %v1918 = vadd.f32 %v1764, %v1913
      %v1920 = vperm.slane %v1256, 0
      %v1922 = vadd.f32 %v1915, %v1920
      %v1923 = vadd.f32 %v1916, %v1920
      %v1924 = vadd.f32 %v1917, %v1920
      %v1925 = vadd.f32 %v1918, %v1920
      %v1926 = vadd.f32 %v1126, %v1922
      %v1927 = vadd.f32 %v1128, %v1923
      %v1928 = vadd.f32 %v1131, %v1924
      %v1929 = vadd.f32 %v1133, %v1925
      %v1930 = vld [vmem:[%s19] sm:$0x1]
      %v1931 = vld [vmem:[%s21] sm:$0x1]
      %v1932 = vsel %vm1137, %v1926, 0.0
      %1933 = vadd.xlane.f32.xlu0 %v1932
      %v1934 = vpop.xlane.xlu0 %1933
      %v1935 = vsel %vm1137, %v1927, 0.0
      %1936 = vadd.xlane.f32.xlu0 %v1935
      %v1937 = vpop.xlane.xlu0 %1936
      %v1938 = vsel %vm1137, %v1928, 0.0
      %1939 = vadd.xlane.f32.xlu0 %v1938
      %v1940 = vpop.xlane.xlu0 %1939
      %v1941 = vsel %vm1137, %v1929, 0.0
      %1942 = vadd.xlane.f32.xlu0 %v1941
      %v1943 = vpop.xlane.xlu0 %1942
      %v1944 = vmul.f32 %v1934, %v1156
      %v1945 = vmul.f32 %v1937, %v1156
      %v1946 = vmul.f32 %v1940, %v1156
      %v1947 = vmul.f32 %v1943, %v1156
      %v1948 = vsub.f32 %v1926, %v1944
      %v1949 = vsub.f32 %v1927, %v1945
      %v1950 = vsub.f32 %v1928, %v1946
      %v1951 = vsub.f32 %v1929, %v1947
      %v1952 = vmul.f32 %v1948, %v1948
      %v1953 = vmul.f32 %v1949, %v1949
      %v1954 = vmul.f32 %v1950, %v1950
      %v1955 = vmul.f32 %v1951, %v1951
      %v1956 = vsel %vm1137, %v1952, 0.0
      %1957 = vadd.xlane.f32.xlu0 %v1956
      %v1958 = vpop.xlane.xlu0 %1957
      %v1959 = vsel %vm1137, %v1953, 0.0
      %1960 = vadd.xlane.f32.xlu0 %v1959
      %v1961 = vpop.xlane.xlu0 %1960
      %v1962 = vsel %vm1137, %v1954, 0.0
      %1963 = vadd.xlane.f32.xlu0 %v1962
      %v1964 = vpop.xlane.xlu0 %1963
      %v1965 = vsel %vm1137, %v1955, 0.0
      %1966 = vadd.xlane.f32.xlu0 %v1965
      %v1967 = vpop.xlane.xlu0 %1966
      %v1968 = vmul.f32 %v1958, %v1156
      %v1969 = vmul.f32 %v1961, %v1156
      %v1970 = vmul.f32 %v1964, %v1156
      %v1971 = vmul.f32 %v1967, %v1156
      %v1972 = vadd.f32 %v1968, 1e-06
      %v1973 = vadd.f32 %v1969, 1e-06
      %v1974 = vadd.f32 %v1970, 1e-06
      %v1975 = vadd.f32 %v1971, 1e-06
      %v1976 = vrsqrt.pop %v1972
      %v1977 = vmul.f32 %v1976, %v1972
      %v1978 = vmul.f32 %v1977, %v1976
      %v1979 = vmul.f32 0.5, %v1978
      %v1980 = vsub.f32 1.5, %v1979
      %v1981 = vmul.f32 %v1976, %v1980
      %vm1982 = vweird.f32 %v1972
      %vm1983 = vweird.f32 %v1976
      %vm1984 = vmor %vm1982, %vm1983
      %v1985 = vsel %vm1984, %v1976, %v1981
      %v1986 = vrsqrt.pop %v1973
      %v1987 = vmul.f32 %v1986, %v1973
      %v1988 = vmul.f32 %v1987, %v1986
      %v1989 = vmul.f32 0.5, %v1988
      %v1990 = vsub.f32 1.5, %v1989
      %v1991 = vmul.f32 %v1986, %v1990
      %vm1992 = vweird.f32 %v1973
      %vm1993 = vweird.f32 %v1986
      %vm1994 = vmor %vm1992, %vm1993
      %v1995 = vsel %vm1994, %v1986, %v1991
      %v1996 = vrsqrt.pop %v1974
      %v1997 = vmul.f32 %v1996, %v1974
      %v1998 = vmul.f32 %v1997, %v1996
      %v1999 = vmul.f32 0.5, %v1998
      %v2000 = vsub.f32 1.5, %v1999
      %v2001 = vmul.f32 %v1996, %v2000
      %vm2002 = vweird.f32 %v1974
      %vm2003 = vweird.f32 %v1996
      %vm2004 = vmor %vm2002, %vm2003
      %v2005 = vsel %vm2004, %v1996, %v2001
      %v2006 = vrsqrt.pop %v1975
      %v2007 = vmul.f32 %v2006, %v1975
      %v2008 = vmul.f32 %v2007, %v2006
      %v2009 = vmul.f32 0.5, %v2008
      %v2010 = vsub.f32 1.5, %v2009
      %v2011 = vmul.f32 %v2006, %v2010
      %vm2012 = vweird.f32 %v1975
      %vm2013 = vweird.f32 %v2006
      %vm2014 = vmor %vm2012, %vm2013
      %v2015 = vsel %vm2014, %v2006, %v2011
      %v2016 = vmul.f32 %v1948, %v1985
      %v2017 = vmul.f32 %v1949, %v1995
      %v2018 = vmul.f32 %v1950, %v2005
      %v2019 = vmul.f32 %v1951, %v2015
      %v2021 = vperm.slane %v1930, 0
      %v2023 = vmul.f32 %v2016, %v2021
      %v2024 = vmul.f32 %v2017, %v2021
      %v2025 = vmul.f32 %v2018, %v2021
      %v2026 = vmul.f32 %v2019, %v2021
      %v2028 = vperm.slane %v1931, 0
      %v2030 = vadd.f32 %v2023, %v2028
      %v2031 = vadd.f32 %v2024, %v2028
      %v2032 = vadd.f32 %v2025, %v2028
      %v2033 = vadd.f32 %v2026, %v2028
      %v2034 = vld [vmem:[%s23] sm:$0xf]
      %v2035 = vld [vmem:[%s23 + $0x4] sm:$0xf]
      %v2036 = vld [vmem:[%s23 + $0x8] sm:$0xf]
      %v2037 = vld [vmem:[%s23 + $0xc] sm:$0xf]
      %v2038 = vld [vmem:[%s25] sm:$0x1]
      %v2039 = vpack.c.bf16 %v2031, %v2030
      %v2040 = vpack.c.bf16 %v2033, %v2032
      %v2042 = vperm.slane %v2038, 0
      %v2048 = vunpack.c.l.b16 %v2034
      %v2049 = vunpack.c.l.b16 %v2035
      %v2050 = vunpack.c.l.b16 %v2036
      %v2051 = vunpack.c.l.b16 %v2037
      %v2052 = vpack.c.b16 %v2049, %v2048
      %v2053 = vpack.c.b16 %v2051, %v2050
      %v2057 = vsel %vm1137, %v2039, 0
      %v2060 = vsel %vm1137, %v2040, 0
      %2062 = vmatpush.bf16.msra.mxu0 0
      %2063 = vmatpush.bf16.msra.mxu0 0
      %2064 = vmatpush.bf16.msra.mxu0 0
      %2065 = vmatpush.bf16.msra.mxu0 0
      %2066 = vmatpush.bf16.msra.mxu0 0
      %2067 = vmatpush.bf16.msra.mxu0 0
      %2068 = vmatpush.bf16.msra.mxu0 %v2053
      %2069 = vmatpush.bf16.msra.mxu0 %v2052
      %2070 = vmatmul.bf16.gmra.mxu0 %v2057
      %v2071 = vpop.f32.mrf.mxu0
      %v2072 = vadd.f32 %v2042, %v2071
      %v2073 = vpop.f32.mrf.mxu0
      %v2074 = vadd.f32 %v2042, %v2073
      %2075 = vmatmul.bf16.gmra.mxu0 %v2060
      %v2076 = vpop.f32.mrf.mxu0
      %v2077 = vadd.f32 %v2042, %v2076
      %v2078 = vpop.f32.mrf.mxu0
      %v2079 = vadd.f32 %v2042, %v2078
      %2080 = vdwg.mxu0
      %v2081 = vmul.f32 %v2072, 0.5
      %v2082 = vmul.f32 %v2074, 0.5
      %v2083 = vmul.f32 %v2077, 0.5
      %v2084 = vmul.f32 %v2079, 0.5
      %v2085 = vmul.f32 %v2072, 0.044715
      %v2086 = vmul.f32 %v2074, 0.044715
      %v2087 = vmul.f32 %v2077, 0.044715
      %v2088 = vmul.f32 %v2079, 0.044715
      %v2089 = vmul.f32 %v2085, %v2072
      %v2090 = vmul.f32 %v2086, %v2074
      %v2091 = vmul.f32 %v2087, %v2077
      %v2092 = vmul.f32 %v2088, %v2079
      %v2093 = vmul.f32 %v2089, %v2072
      %v2094 = vmul.f32 %v2090, %v2074
      %v2095 = vmul.f32 %v2091, %v2077
      %v2096 = vmul.f32 %v2092, %v2079
      %v2097 = vadd.f32 %v2072, %v2093
      %v2098 = vadd.f32 %v2074, %v2094
      %v2099 = vadd.f32 %v2077, %v2095
      %v2100 = vadd.f32 %v2079, %v2096
      %v2101 = vmul.f32 %v2097, 0.7978846
      %v2102 = vmul.f32 %v2098, 0.7978846
      %v2103 = vmul.f32 %v2099, 0.7978846
      %v2104 = vmul.f32 %v2100, 0.7978846
      %v2105 = vtanh.pop %v2101
      %v2106 = vtanh.pop %v2102
      %v2107 = vtanh.pop %v2103
      %v2108 = vtanh.pop %v2104
      %v2109 = vadd.f32 %v2105, 1.0
      %v2110 = vadd.f32 %v2106, 1.0
      %v2111 = vadd.f32 %v2107, 1.0
      %v2112 = vadd.f32 %v2108, 1.0
      %v2113 = vmul.f32 %v2081, %v2109
      %v2114 = vmul.f32 %v2082, %v2110
      %v2115 = vmul.f32 %v2083, %v2111
      %v2116 = vmul.f32 %v2084, %v2112
      %v2117 = vld [vmem:[%s27] sm:$0xf]
      %v2118 = vld [vmem:[%s27 + $0x4] sm:$0xf]
      %v2119 = vld [vmem:[%s27 + $0x8] sm:$0xf]
      %v2120 = vld [vmem:[%s27 + $0xc] sm:$0xf]
      %v2121 = vld [vmem:[%s27 + $0x10] sm:$0xf]
      %v2122 = vld [vmem:[%s27 + $0x14] sm:$0xf]
      %v2123 = vld [vmem:[%s27 + $0x18] sm:$0xf]
      %v2124 = vld [vmem:[%s27 + $0x1c] sm:$0xf]
      %v2125 = vld [vmem:[%s29] sm:$0x1]
      %v2126 = vpack.c.bf16 %v2114, %v2113
      %v2127 = vpack.c.bf16 %v2116, %v2115
      %v2129 = vperm.slane %v2125, 0
      %v2139 = vunpack.c.l.b16 %v2117
      %v2140 = vunpack.c.l.b16 %v2118
      %v2141 = vunpack.c.l.b16 %v2119
      %v2142 = vunpack.c.l.b16 %v2120
      %v2143 = vunpack.c.l.b16 %v2121
      %v2144 = vunpack.c.l.b16 %v2122
      %v2145 = vunpack.c.l.b16 %v2123
      %v2146 = vunpack.c.l.b16 %v2124
      %v2147 = vpack.c.b16 %v2140, %v2139
      %v2148 = vpack.c.b16 %v2142, %v2141
      %v2149 = vpack.c.b16 %v2144, %v2143
      %v2150 = vpack.c.b16 %v2146, %v2145
      %vm2155 = vcmask 523264
      %v2157 = vsel %vm2155, %v2126, 0
      %v2160 = vsel %vm2155, %v2127, 0
      %2162 = vmatpush.bf16.msra.mxu0 0
      %2163 = vmatpush.bf16.msra.mxu0 0
      %2164 = vmatpush.bf16.msra.mxu0 0
      %2165 = vmatpush.bf16.msra.mxu0 0
      %2166 = vmatpush.bf16.msra.mxu0 %v2150
      %2167 = vmatpush.bf16.msra.mxu0 %v2149
      %2168 = vmatpush.bf16.msra.mxu0 %v2148
      %2169 = vmatpush.bf16.msra.mxu0 %v2147
      %2170 = vmatmul.bf16.gmra.mxu0 %v2157
      %v2171 = vpop.f32.mrf.mxu0
      %v2172 = vadd.f32 %v2129, %v2171
      %v2173 = vpop.f32.mrf.mxu0
      %v2174 = vadd.f32 %v2129, %v2173
      %2175 = vmatmul.bf16.gmra.mxu0 %v2160
      %v2176 = vpop.f32.mrf.mxu0
      %v2177 = vadd.f32 %v2129, %v2176
      %v2178 = vpop.f32.mrf.mxu0
      %v2179 = vadd.f32 %v2129, %v2178
      %2180 = vdwg.mxu0
      %v2181 = vadd.f32 %v1926, %v2172
      %v2182 = vadd.f32 %v1927, %v2174
      %v2183 = vadd.f32 %v1928, %v2177
      %v2184 = vadd.f32 %v1929, %v2179
      %v2185 = vld [vmem:[%s31] sm:$0x1]
      %v2186 = vld [vmem:[%s33] sm:$0x1]
      %v2187 = vsel %vm1137, %v2181, 0.0
      %2188 = vadd.xlane.f32.xlu0 %v2187
      %v2189 = vpop.xlane.xlu0 %2188
      %v2190 = vsel %vm1137, %v2182, 0.0
      %2191 = vadd.xlane.f32.xlu0 %v2190
      %v2192 = vpop.xlane.xlu0 %2191
      %v2193 = vsel %vm1137, %v2183, 0.0
      %2194 = vadd.xlane.f32.xlu0 %v2193
      %v2195 = vpop.xlane.xlu0 %2194
      %v2196 = vsel %vm1137, %v2184, 0.0
      %2197 = vadd.xlane.f32.xlu0 %v2196
      %v2198 = vpop.xlane.xlu0 %2197
      %v2199 = vmul.f32 %v2189, %v1156
      %v2200 = vmul.f32 %v2192, %v1156
      %v2201 = vmul.f32 %v2195, %v1156
      %v2202 = vmul.f32 %v2198, %v1156
      %v2203 = vsub.f32 %v2181, %v2199
      %v2204 = vsub.f32 %v2182, %v2200
      %v2205 = vsub.f32 %v2183, %v2201
      %v2206 = vsub.f32 %v2184, %v2202
      %v2207 = vmul.f32 %v2203, %v2203
      %v2208 = vmul.f32 %v2204, %v2204
      %v2209 = vmul.f32 %v2205, %v2205
      %v2210 = vmul.f32 %v2206, %v2206
      %v2211 = vsel %vm1137, %v2207, 0.0
      %2212 = vadd.xlane.f32.xlu0 %v2211
      %v2213 = vpop.xlane.xlu0 %2212
      %v2214 = vsel %vm1137, %v2208, 0.0
      %2215 = vadd.xlane.f32.xlu0 %v2214
      %v2216 = vpop.xlane.xlu0 %2215
      %v2217 = vsel %vm1137, %v2209, 0.0
      %2218 = vadd.xlane.f32.xlu0 %v2217
      %v2219 = vpop.xlane.xlu0 %2218
      %v2220 = vsel %vm1137, %v2210, 0.0
      %2221 = vadd.xlane.f32.xlu0 %v2220
      %v2222 = vpop.xlane.xlu0 %2221
      %v2223 = vmul.f32 %v2213, %v1156
      %v2224 = vmul.f32 %v2216, %v1156
      %v2225 = vmul.f32 %v2219, %v1156
      %v2226 = vmul.f32 %v2222, %v1156
      %v2227 = vadd.f32 %v2223, 1e-06
      %v2228 = vadd.f32 %v2224, 1e-06
      %v2229 = vadd.f32 %v2225, 1e-06
      %v2230 = vadd.f32 %v2226, 1e-06
      %v2231 = vrsqrt.pop %v2227
      %v2232 = vmul.f32 %v2231, %v2227
      %v2233 = vmul.f32 %v2232, %v2231
      %v2234 = vmul.f32 0.5, %v2233
      %v2235 = vsub.f32 1.5, %v2234
      %v2236 = vmul.f32 %v2231, %v2235
      %vm2237 = vweird.f32 %v2227
      %vm2238 = vweird.f32 %v2231
      %vm2239 = vmor %vm2237, %vm2238
      %v2240 = vsel %vm2239, %v2231, %v2236
      %v2241 = vrsqrt.pop %v2228
      %v2242 = vmul.f32 %v2241, %v2228
      %v2243 = vmul.f32 %v2242, %v2241
      %v2244 = vmul.f32 0.5, %v2243
      %v2245 = vsub.f32 1.5, %v2244
      %v2246 = vmul.f32 %v2241, %v2245
      %vm2247 = vweird.f32 %v2228
      %vm2248 = vweird.f32 %v2241
      %vm2249 = vmor %vm2247, %vm2248
      %v2250 = vsel %vm2249, %v2241, %v2246
      %v2251 = vrsqrt.pop %v2229
      %v2252 = vmul.f32 %v2251, %v2229
      %v2253 = vmul.f32 %v2252, %v2251
      %v2254 = vmul.f32 0.5, %v2253
      %v2255 = vsub.f32 1.5, %v2254
      %v2256 = vmul.f32 %v2251, %v2255
      %vm2257 = vweird.f32 %v2229
      %vm2258 = vweird.f32 %v2251
      %vm2259 = vmor %vm2257, %vm2258
      %v2260 = vsel %vm2259, %v2251, %v2256
      %v2261 = vrsqrt.pop %v2230
      %v2262 = vmul.f32 %v2261, %v2230
      %v2263 = vmul.f32 %v2262, %v2261
      %v2264 = vmul.f32 0.5, %v2263
      %v2265 = vsub.f32 1.5, %v2264
      %v2266 = vmul.f32 %v2261, %v2265
      %vm2267 = vweird.f32 %v2230
      %vm2268 = vweird.f32 %v2261
      %vm2269 = vmor %vm2267, %vm2268
      %v2270 = vsel %vm2269, %v2261, %v2266
      %v2271 = vmul.f32 %v2203, %v2240
      %v2272 = vmul.f32 %v2204, %v2250
      %v2273 = vmul.f32 %v2205, %v2260
      %v2274 = vmul.f32 %v2206, %v2270
      %v2276 = vperm.slane %v2185, 0
      %v2278 = vmul.f32 %v2271, %v2276
      %v2279 = vmul.f32 %v2272, %v2276
      %v2280 = vmul.f32 %v2273, %v2276
      %v2281 = vmul.f32 %v2274, %v2276
      %v2283 = vperm.slane %v2186, 0
      %v2285 = vadd.f32 %v2278, %v2283
      %v2286 = vadd.f32 %v2279, %v2283
      %v2287 = vadd.f32 %v2280, %v2283
      %v2288 = vadd.f32 %v2281, %v2283
      %v2289 = vld [vmem:[%s35] sm:$0xf]
      %v2290 = vld [vmem:[%s35 + $0x4] sm:$0xf]
      %v2291 = vld [vmem:[%s35 + $0x8] sm:$0xf]
      %v2292 = vld [vmem:[%s35 + $0xc] sm:$0xf]
      %v2293 = vld [vmem:[%s37] sm:$0x1]
      %v2294 = vld [vmem:[%s39] sm:$0xf]
      %v2295 = vld [vmem:[%s39 + $0x4] sm:$0xf]
      %v2296 = vld [vmem:[%s39 + $0x8] sm:$0xf]
      %v2297 = vld [vmem:[%s39 + $0xc] sm:$0xf]
      %v2298 = vld [vmem:[%s41] sm:$0x1]
      %v2299 = vpack.c.bf16 %v2286, %v2285
      %v2300 = vpack.c.bf16 %v2288, %v2287
      %v2302 = vperm.slane %v2293, 0
      %v2308 = vunpack.c.l.b16 %v2289
      %v2309 = vunpack.c.l.b16 %v2290
      %v2310 = vunpack.c.l.b16 %v2291
      %v2311 = vunpack.c.l.b16 %v2292
      %v2312 = vpack.c.b16 %v2309, %v2308
      %v2313 = vpack.c.b16 %v2311, %v2310
      %v2317 = vsel %vm1137, %v2299, 0
      %v2320 = vsel %vm1137, %v2300, 0
      %2322 = vmatpush.bf16.msra.mxu0 0
      %2323 = vmatpush.bf16.msra.mxu0 0
      %2324 = vmatpush.bf16.msra.mxu0 0
      %2325 = vmatpush.bf16.msra.mxu0 0
      %2326 = vmatpush.bf16.msra.mxu0 0
      %2327 = vmatpush.bf16.msra.mxu0 0
      %2328 = vmatpush.bf16.msra.mxu0 %v2313
      %2329 = vmatpush.bf16.msra.mxu0 %v2312
      %2330 = vmatmul.bf16.gmra.mxu0 %v2317
      %v2331 = vpop.f32.mrf.mxu0
      %v2332 = vadd.f32 %v2302, %v2331
      %v2333 = vpop.f32.mrf.mxu0
      %v2334 = vadd.f32 %v2302, %v2333
      %2335 = vmatmul.bf16.gmra.mxu0 %v2320
      %v2336 = vpop.f32.mrf.mxu0
      %v2337 = vadd.f32 %v2302, %v2336
      %v2338 = vpop.f32.mrf.mxu0
      %v2339 = vadd.f32 %v2302, %v2338
      %2340 = vdwg.mxu0
      %v2341 = vmul.f32 %v2332, 0.35355338
      %v2342 = vmul.f32 %v2334, 0.35355338
      %v2343 = vmul.f32 %v2337, 0.35355338
      %v2344 = vmul.f32 %v2339, 0.35355338
      %v2345 = vpack.c.bf16 %v2342, %v2341
      %v2346 = vpack.c.bf16 %v2344, %v2343
      %v2347 = vpack.c.bf16 %v2334, %v2332
      %v2348 = vpack.c.bf16 %v2339, %v2337
      %2351 = vrot.lane.b32.xlu0 %v2347, 96
      %v2352 = vpop.permute.xlu0 %2351
      %2353 = vrot.lane.b32.xlu0 %v2348, 96
      %v2354 = vpop.permute.xlu0 %2353
      %v2356 = vsel %vm1313, %v2345, 0
      %v2359 = vsel %vm1313, %v2346, 0
      %v2362 = vsel %vm1313, %v2352, 0
      %v2365 = vsel %vm1313, %v2354, 0
      %2367 = vmatpush.bf16.xpose.msra.mxu0 0
      %2368 = vmatpush.bf16.xpose.msra.mxu0 0
      %2369 = vmatpush.bf16.xpose.msra.mxu0 0
      %2370 = vmatpush.bf16.xpose.msra.mxu0 0
      %2371 = vmatpush.bf16.xpose.msra.mxu0 0
      %2372 = vmatpush.bf16.xpose.msra.mxu0 0
      %2373 = vmatpush.bf16.xpose.msra.mxu0 %v2365
      %2374 = vmatpush.bf16.xpose.msra.mxu0 %v2362
      %2375 = vmatmul.bf16.gmra.mxu0 %v2356
      %v2376 = vpop.f32.mrf.mxu0
      %v2377 = vadd.f32 0.0, %v2376
      %v2378 = vpop.f32.mrf.mxu0
      %v2379 = vadd.f32 0.0, %v2378
      %2380 = vmatmul.bf16.gmra.mxu0 %v2359
      %v2381 = vpop.f32.mrf.mxu0
      %v2382 = vadd.f32 0.0, %v2381
      %v2383 = vpop.f32.mrf.mxu0
      %v2384 = vadd.f32 0.0, %v2383
      %2385 = vdwg.mxu0
      %v2386 = vsel %vm1346, %v2377, -1e+30
      %v2387 = vsel %vm1346, %v2379, -1e+30
      %v2388 = vsel %vm1346, %v2382, -1e+30
      %v2389 = vsel %vm1346, %v2384, -1e+30
      %v2390 = vsel %vm1137, %v2386, -inf
      %2391 = vmax.xlane.f32.xlu0 %v2390
      %v2392 = vpop.xlane.xlu0 %2391
      %v2393 = vsel %vm1137, %v2387, -inf
      %2394 = vmax.xlane.f32.xlu0 %v2393
      %v2395 = vpop.xlane.xlu0 %2394
      %v2396 = vsel %vm1137, %v2388, -inf
      %2397 = vmax.xlane.f32.xlu0 %v2396
      %v2398 = vpop.xlane.xlu0 %2397
      %v2399 = vsel %vm1137, %v2389, -inf
      %2400 = vmax.xlane.f32.xlu0 %v2399
      %v2401 = vpop.xlane.xlu0 %2400
      %v2402 = vsub.f32 %v2386, %v2392
      %v2403 = vsub.f32 %v2387, %v2395
      %v2404 = vsub.f32 %v2388, %v2398
      %v2405 = vsub.f32 %v2389, %v2401
      %v2406 = vmul.f32 %v2402, 1.442695
      %v2407 = vpow.pop %v2406
      %v2408 = vmul.f32 %v2403, 1.442695
      %v2409 = vpow.pop %v2408
      %v2410 = vmul.f32 %v2404, 1.442695
      %v2411 = vpow.pop %v2410
      %v2412 = vmul.f32 %v2405, 1.442695
      %v2413 = vpow.pop %v2412
      %v2414 = vsel %vm1137, %v2407, 0.0
      %2415 = vadd.xlane.f32.xlu0 %v2414
      %v2416 = vpop.xlane.xlu0 %2415
      %v2417 = vsel %vm1137, %v2409, 0.0
      %2418 = vadd.xlane.f32.xlu0 %v2417
      %v2419 = vpop.xlane.xlu0 %2418
      %v2420 = vsel %vm1137, %v2411, 0.0
      %2421 = vadd.xlane.f32.xlu0 %v2420
      %v2422 = vpop.xlane.xlu0 %2421
      %v2423 = vsel %vm1137, %v2413, 0.0
      %2424 = vadd.xlane.f32.xlu0 %v2423
      %v2425 = vpop.xlane.xlu0 %2424
      %v2426 = vrcp.pop %v2416
      %v2427 = vrcp.pop %v2419
      %v2428 = vrcp.pop %v2422
      %v2429 = vrcp.pop %v2425
      %v2430 = vmul.f32 %v2407, %v2426
      %v2431 = vmul.f32 %v2409, %v2427
      %v2432 = vmul.f32 %v2411, %v2428
      %v2433 = vmul.f32 %v2413, %v2429
      %v2434 = vpack.c.bf16 %v2431, %v2430
      %v2435 = vpack.c.bf16 %v2433, %v2432
      %2436 = vrot.lane.b32.xlu0 %v2347, 64
      %v2437 = vpop.permute.xlu0 %2436
      %2438 = vrot.lane.b32.xlu0 %v2348, 64
      %v2439 = vpop.permute.xlu0 %2438
      %v2443 = vsel %vm1137, %v2434, 0
      %v2446 = vsel %vm1137, %v2435, 0
      %2448 = vmatpush.bf16.msra.mxu0 0
      %2449 = vmatpush.bf16.msra.mxu0 0
      %2450 = vmatpush.bf16.msra.mxu0 0
      %2451 = vmatpush.bf16.msra.mxu0 0
      %2452 = vmatpush.bf16.msra.mxu0 0
      %2453 = vmatpush.bf16.msra.mxu0 0
      %2454 = vmatpush.bf16.msra.mxu0 %v2439
      %2455 = vmatpush.bf16.msra.mxu0 %v2437
      %2456 = vmatmul.bf16.gmra.mxu0 %v2443
      %v2457 = vpop.f32.mrf.mxu0
      %v2458 = vadd.f32 0.0, %v2457
      %v2459 = vpop.f32.mrf.mxu0
      %v2460 = vadd.f32 0.0, %v2459
      %2461 = vmatmul.bf16.gmra.mxu0 %v2446
      %v2462 = vpop.f32.mrf.mxu0
      %v2463 = vadd.f32 0.0, %v2462
      %v2464 = vpop.f32.mrf.mxu0
      %v2465 = vadd.f32 0.0, %v2464
      %2466 = vdwg.mxu0
      %v2467 = vpack.c.bf16 %v2460, %v2458
      %v2468 = vpack.c.bf16 %v2465, %v2463
      %2471 = vrot.lane.b32.xlu0 %v2345, 120
      %v2472 = vpop.permute.xlu0 %2471
      %2473 = vrot.lane.b32.xlu0 %v2346, 120
      %v2474 = vpop.permute.xlu0 %2473
      %2475 = vrot.lane.b32.xlu0 %v2347, 88
      %v2476 = vpop.permute.xlu0 %2475
      %2477 = vrot.lane.b32.xlu0 %v2348, 88
      %v2478 = vpop.permute.xlu0 %2477
      %v2480 = vsel %vm1313, %v2472, 0
      %v2483 = vsel %vm1313, %v2474, 0
      %v2486 = vsel %vm1313, %v2476, 0
      %v2489 = vsel %vm1313, %v2478, 0
      %2491 = vmatpush.bf16.xpose.msra.mxu0 0
      %2492 = vmatpush.bf16.xpose.msra.mxu0 0
      %2493 = vmatpush.bf16.xpose.msra.mxu0 0
      %2494 = vmatpush.bf16.xpose.msra.mxu0 0
      %2495 = vmatpush.bf16.xpose.msra.mxu0 0
      %2496 = vmatpush.bf16.xpose.msra.mxu0 0
      %2497 = vmatpush.bf16.xpose.msra.mxu0 %v2489
      %2498 = vmatpush.bf16.xpose.msra.mxu0 %v2486
      %2499 = vmatmul.bf16.gmra.mxu0 %v2480
      %v2500 = vpop.f32.mrf.mxu0
      %v2501 = vadd.f32 0.0, %v2500
      %v2502 = vpop.f32.mrf.mxu0
      %v2503 = vadd.f32 0.0, %v2502
      %2504 = vmatmul.bf16.gmra.mxu0 %v2483
      %v2505 = vpop.f32.mrf.mxu0
      %v2506 = vadd.f32 0.0, %v2505
      %v2507 = vpop.f32.mrf.mxu0
      %v2508 = vadd.f32 0.0, %v2507
      %2509 = vdwg.mxu0
      %v2510 = vsel %vm1346, %v2501, -1e+30
      %v2511 = vsel %vm1346, %v2503, -1e+30
      %v2512 = vsel %vm1346, %v2506, -1e+30
      %v2513 = vsel %vm1346, %v2508, -1e+30
      %v2514 = vsel %vm1137, %v2510, -inf
      %2515 = vmax.xlane.f32.xlu0 %v2514
      %v2516 = vpop.xlane.xlu0 %2515
      %v2517 = vsel %vm1137, %v2511, -inf
      %2518 = vmax.xlane.f32.xlu0 %v2517
      %v2519 = vpop.xlane.xlu0 %2518
      %v2520 = vsel %vm1137, %v2512, -inf
      %2521 = vmax.xlane.f32.xlu0 %v2520
      %v2522 = vpop.xlane.xlu0 %2521
      %v2523 = vsel %vm1137, %v2513, -inf
      %2524 = vmax.xlane.f32.xlu0 %v2523
      %v2525 = vpop.xlane.xlu0 %2524
      %v2526 = vsub.f32 %v2510, %v2516
      %v2527 = vsub.f32 %v2511, %v2519
      %v2528 = vsub.f32 %v2512, %v2522
      %v2529 = vsub.f32 %v2513, %v2525
      %v2530 = vmul.f32 %v2526, 1.442695
      %v2531 = vpow.pop %v2530
      %v2532 = vmul.f32 %v2527, 1.442695
      %v2533 = vpow.pop %v2532
      %v2534 = vmul.f32 %v2528, 1.442695
      %v2535 = vpow.pop %v2534
      %v2536 = vmul.f32 %v2529, 1.442695
      %v2537 = vpow.pop %v2536
      %v2538 = vsel %vm1137, %v2531, 0.0
      %2539 = vadd.xlane.f32.xlu0 %v2538
      %v2540 = vpop.xlane.xlu0 %2539
      %v2541 = vsel %vm1137, %v2533, 0.0
      %2542 = vadd.xlane.f32.xlu0 %v2541
      %v2543 = vpop.xlane.xlu0 %2542
      %v2544 = vsel %vm1137, %v2535, 0.0
      %2545 = vadd.xlane.f32.xlu0 %v2544
      %v2546 = vpop.xlane.xlu0 %2545
      %v2547 = vsel %vm1137, %v2537, 0.0
      %2548 = vadd.xlane.f32.xlu0 %v2547
      %v2549 = vpop.xlane.xlu0 %2548
      %v2550 = vrcp.pop %v2540
      %v2551 = vrcp.pop %v2543
      %v2552 = vrcp.pop %v2546
      %v2553 = vrcp.pop %v2549
      %v2554 = vmul.f32 %v2531, %v2550
      %v2555 = vmul.f32 %v2533, %v2551
      %v2556 = vmul.f32 %v2535, %v2552
      %v2557 = vmul.f32 %v2537, %v2553
      %v2558 = vpack.c.bf16 %v2555, %v2554
      %v2559 = vpack.c.bf16 %v2557, %v2556
      %2560 = vrot.lane.b32.xlu0 %v2347, 56
      %v2561 = vpop.permute.xlu0 %2560
      %2562 = vrot.lane.b32.xlu0 %v2348, 56
      %v2563 = vpop.permute.xlu0 %2562
      %v2567 = vsel %vm1137, %v2558, 0
      %v2570 = vsel %vm1137, %v2559, 0
      %2572 = vmatpush.bf16.msra.mxu0 0
      %2573 = vmatpush.bf16.msra.mxu0 0
      %2574 = vmatpush.bf16.msra.mxu0 0
      %2575 = vmatpush.bf16.msra.mxu0 0
      %2576 = vmatpush.bf16.msra.mxu0 0
      %2577 = vmatpush.bf16.msra.mxu0 0
      %2578 = vmatpush.bf16.msra.mxu0 %v2563
      %2579 = vmatpush.bf16.msra.mxu0 %v2561
      %2580 = vmatmul.bf16.gmra.mxu0 %v2567
      %v2581 = vpop.f32.mrf.mxu0
      %v2582 = vadd.f32 0.0, %v2581
      %v2583 = vpop.f32.mrf.mxu0
      %v2584 = vadd.f32 0.0, %v2583
      %2585 = vmatmul.bf16.gmra.mxu0 %v2570
      %v2586 = vpop.f32.mrf.mxu0
      %v2587 = vadd.f32 0.0, %v2586
      %v2588 = vpop.f32.mrf.mxu0
      %v2589 = vadd.f32 0.0, %v2588
      %2590 = vdwg.mxu0
      %v2591 = vpack.c.bf16 %v2584, %v2582
      %v2592 = vpack.c.bf16 %v2589, %v2587
      %v2594 = vsel %vm1313, %v2591, 0
      %v2597 = vsel %vm1313, %v2592, 0
      %v2600 = vsel %vm1560, %v2295, 0
      %2602 = vmatpush.bf16.msra.mxu0 0
      %2603 = vmatpush.bf16.msra.mxu0 0
      %2604 = vmatpush.bf16.msra.mxu0 0
      %2605 = vmatpush.bf16.msra.mxu0 0
      %2606 = vmatpush.bf16.msra.mxu0 0
      %2607 = vmatpush.bf16.msra.mxu0 0
      %2608 = vmatpush.bf16.msra.mxu0 0
      %2609 = vmatpush.bf16.msra.mxu0 %v2600
      %2610 = vmatmul.bf16.gmra.mxu0 %v2594
      %v2611 = vpop.f32.mrf.mxu0
      %v2612 = vadd.f32 0.0, %v2611
      %v2613 = vpop.f32.mrf.mxu0
      %v2614 = vadd.f32 0.0, %v2613
      %2615 = vmatmul.bf16.gmra.mxu0 %v2597
      %v2616 = vpop.f32.mrf.mxu0
      %v2617 = vadd.f32 0.0, %v2616
      %v2618 = vpop.f32.mrf.mxu0
      %v2619 = vadd.f32 0.0, %v2618
      %2620 = vdwg.mxu0
      %v2622 = vsel %vm1313, %v2467, 0
      %v2625 = vsel %vm1313, %v2468, 0
      %v2628 = vsel %vm1560, %v2294, 0
      %2630 = vmatpush.bf16.msra.mxu0 0
      %2631 = vmatpush.bf16.msra.mxu0 0
      %2632 = vmatpush.bf16.msra.mxu0 0
      %2633 = vmatpush.bf16.msra.mxu0 0
      %2634 = vmatpush.bf16.msra.mxu0 0
      %2635 = vmatpush.bf16.msra.mxu0 0
      %2636 = vmatpush.bf16.msra.mxu0 0
      %2637 = vmatpush.bf16.msra.mxu0 %v2628
      %2638 = vmatmul.bf16.gmra.mxu0 %v2622
      %v2639 = vpop.f32.mrf.mxu0
      %v2640 = vadd.f32 %v2612, %v2639
      %v2641 = vpop.f32.mrf.mxu0
      %v2642 = vadd.f32 %v2614, %v2641
      %2643 = vmatmul.bf16.gmra.mxu0 %v2625
      %v2644 = vpop.f32.mrf.mxu0
      %v2645 = vadd.f32 %v2617, %v2644
      %v2646 = vpop.f32.mrf.mxu0
      %v2647 = vadd.f32 %v2619, %v2646
      %2648 = vdwg.mxu0
      %2649 = vrot.lane.b32.xlu0 %v2345, 112
      %v2650 = vpop.permute.xlu0 %2649
      %2651 = vrot.lane.b32.xlu0 %v2346, 112
      %v2652 = vpop.permute.xlu0 %2651
      %2653 = vrot.lane.b32.xlu0 %v2347, 80
      %v2654 = vpop.permute.xlu0 %2653
      %2655 = vrot.lane.b32.xlu0 %v2348, 80
      %v2656 = vpop.permute.xlu0 %2655
      %v2658 = vsel %vm1313, %v2650, 0
      %v2661 = vsel %vm1313, %v2652, 0
      %v2664 = vsel %vm1313, %v2654, 0
      %v2667 = vsel %vm1313, %v2656, 0
      %2669 = vmatpush.bf16.xpose.msra.mxu0 0
      %2670 = vmatpush.bf16.xpose.msra.mxu0 0
      %2671 = vmatpush.bf16.xpose.msra.mxu0 0
      %2672 = vmatpush.bf16.xpose.msra.mxu0 0
      %2673 = vmatpush.bf16.xpose.msra.mxu0 0
      %2674 = vmatpush.bf16.xpose.msra.mxu0 0
      %2675 = vmatpush.bf16.xpose.msra.mxu0 %v2667
      %2676 = vmatpush.bf16.xpose.msra.mxu0 %v2664
      %2677 = vmatmul.bf16.gmra.mxu0 %v2658
      %v2678 = vpop.f32.mrf.mxu0
      %v2679 = vadd.f32 0.0, %v2678
      %v2680 = vpop.f32.mrf.mxu0
      %v2681 = vadd.f32 0.0, %v2680
      %2682 = vmatmul.bf16.gmra.mxu0 %v2661
      %v2683 = vpop.f32.mrf.mxu0
      %v2684 = vadd.f32 0.0, %v2683
      %v2685 = vpop.f32.mrf.mxu0
      %v2686 = vadd.f32 0.0, %v2685
      %2687 = vdwg.mxu0
      %v2688 = vsel %vm1346, %v2679, -1e+30
      %v2689 = vsel %vm1346, %v2681, -1e+30
      %v2690 = vsel %vm1346, %v2684, -1e+30
      %v2691 = vsel %vm1346, %v2686, -1e+30
      %v2692 = vsel %vm1137, %v2688, -inf
      %2693 = vmax.xlane.f32.xlu0 %v2692
      %v2694 = vpop.xlane.xlu0 %2693
      %v2695 = vsel %vm1137, %v2689, -inf
      %2696 = vmax.xlane.f32.xlu0 %v2695
      %v2697 = vpop.xlane.xlu0 %2696
      %v2698 = vsel %vm1137, %v2690, -inf
      %2699 = vmax.xlane.f32.xlu0 %v2698
      %v2700 = vpop.xlane.xlu0 %2699
      %v2701 = vsel %vm1137, %v2691, -inf
      %2702 = vmax.xlane.f32.xlu0 %v2701
      %v2703 = vpop.xlane.xlu0 %2702
      %v2704 = vsub.f32 %v2688, %v2694
      %v2705 = vsub.f32 %v2689, %v2697
      %v2706 = vsub.f32 %v2690, %v2700
      %v2707 = vsub.f32 %v2691, %v2703
      %v2708 = vmul.f32 %v2704, 1.442695
      %v2709 = vpow.pop %v2708
      %v2710 = vmul.f32 %v2705, 1.442695
      %v2711 = vpow.pop %v2710
      %v2712 = vmul.f32 %v2706, 1.442695
      %v2713 = vpow.pop %v2712
      %v2714 = vmul.f32 %v2707, 1.442695
      %v2715 = vpow.pop %v2714
      %v2716 = vsel %vm1137, %v2709, 0.0
      %2717 = vadd.xlane.f32.xlu0 %v2716
      %v2718 = vpop.xlane.xlu0 %2717
      %v2719 = vsel %vm1137, %v2711, 0.0
      %2720 = vadd.xlane.f32.xlu0 %v2719
      %v2721 = vpop.xlane.xlu0 %2720
      %v2722 = vsel %vm1137, %v2713, 0.0
      %2723 = vadd.xlane.f32.xlu0 %v2722
      %v2724 = vpop.xlane.xlu0 %2723
      %v2725 = vsel %vm1137, %v2715, 0.0
      %2726 = vadd.xlane.f32.xlu0 %v2725
      %v2727 = vpop.xlane.xlu0 %2726
      %v2728 = vrcp.pop %v2718
      %v2729 = vrcp.pop %v2721
      %v2730 = vrcp.pop %v2724
      %v2731 = vrcp.pop %v2727
      %v2732 = vmul.f32 %v2709, %v2728
      %v2733 = vmul.f32 %v2711, %v2729
      %v2734 = vmul.f32 %v2713, %v2730
      %v2735 = vmul.f32 %v2715, %v2731
      %v2736 = vpack.c.bf16 %v2733, %v2732
      %v2737 = vpack.c.bf16 %v2735, %v2734
      %2738 = vrot.lane.b32.xlu0 %v2347, 48
      %v2739 = vpop.permute.xlu0 %2738
      %2740 = vrot.lane.b32.xlu0 %v2348, 48
      %v2741 = vpop.permute.xlu0 %2740
      %v2745 = vsel %vm1137, %v2736, 0
      %v2748 = vsel %vm1137, %v2737, 0
      %2750 = vmatpush.bf16.msra.mxu0 0
      %2751 = vmatpush.bf16.msra.mxu0 0
      %2752 = vmatpush.bf16.msra.mxu0 0
      %2753 = vmatpush.bf16.msra.mxu0 0
      %2754 = vmatpush.bf16.msra.mxu0 0
      %2755 = vmatpush.bf16.msra.mxu0 0
      %2756 = vmatpush.bf16.msra.mxu0 %v2741
      %2757 = vmatpush.bf16.msra.mxu0 %v2739
      %2758 = vmatmul.bf16.gmra.mxu0 %v2745
      %v2759 = vpop.f32.mrf.mxu0
      %v2760 = vadd.f32 0.0, %v2759
      %v2761 = vpop.f32.mrf.mxu0
      %v2762 = vadd.f32 0.0, %v2761
      %2763 = vmatmul.bf16.gmra.mxu0 %v2748
      %v2764 = vpop.f32.mrf.mxu0
      %v2765 = vadd.f32 0.0, %v2764
      %v2766 = vpop.f32.mrf.mxu0
      %v2767 = vadd.f32 0.0, %v2766
      %2768 = vdwg.mxu0
      %v2769 = vpack.c.bf16 %v2762, %v2760
      %v2770 = vpack.c.bf16 %v2767, %v2765
      %v2772 = vsel %vm1313, %v2769, 0
      %v2775 = vsel %vm1313, %v2770, 0
      %v2778 = vsel %vm1560, %v2296, 0
      %2780 = vmatpush.bf16.msra.mxu0 0
      %2781 = vmatpush.bf16.msra.mxu0 0
      %2782 = vmatpush.bf16.msra.mxu0 0
      %2783 = vmatpush.bf16.msra.mxu0 0
      %2784 = vmatpush.bf16.msra.mxu0 0
      %2785 = vmatpush.bf16.msra.mxu0 0
      %2786 = vmatpush.bf16.msra.mxu0 0
      %2787 = vmatpush.bf16.msra.mxu0 %v2778
      %2788 = vmatmul.bf16.gmra.mxu0 %v2772
      %v2789 = vpop.f32.mrf.mxu0
      %v2790 = vadd.f32 0.0, %v2789
      %v2791 = vpop.f32.mrf.mxu0
      %v2792 = vadd.f32 0.0, %v2791
      %2793 = vmatmul.bf16.gmra.mxu0 %v2775
      %v2794 = vpop.f32.mrf.mxu0
      %v2795 = vadd.f32 0.0, %v2794
      %v2796 = vpop.f32.mrf.mxu0
      %v2797 = vadd.f32 0.0, %v2796
      %2798 = vdwg.mxu0
      %v2799 = vadd.f32 %v2640, %v2790
      %v2800 = vadd.f32 %v2642, %v2792
      %v2801 = vadd.f32 %v2645, %v2795
      %v2802 = vadd.f32 %v2647, %v2797
      %2803 = vrot.lane.b32.xlu0 %v2345, 104
      %v2804 = vpop.permute.xlu0 %2803
      %2805 = vrot.lane.b32.xlu0 %v2346, 104
      %v2806 = vpop.permute.xlu0 %2805
      %2807 = vrot.lane.b32.xlu0 %v2347, 72
      %v2808 = vpop.permute.xlu0 %2807
      %2809 = vrot.lane.b32.xlu0 %v2348, 72
      %v2810 = vpop.permute.xlu0 %2809
      %v2812 = vsel %vm1313, %v2804, 0
      %v2815 = vsel %vm1313, %v2806, 0
      %v2818 = vsel %vm1313, %v2808, 0
      %v2821 = vsel %vm1313, %v2810, 0
      %2823 = vmatpush.bf16.xpose.msra.mxu0 0
      %2824 = vmatpush.bf16.xpose.msra.mxu0 0
      %2825 = vmatpush.bf16.xpose.msra.mxu0 0
      %2826 = vmatpush.bf16.xpose.msra.mxu0 0
      %2827 = vmatpush.bf16.xpose.msra.mxu0 0
      %2828 = vmatpush.bf16.xpose.msra.mxu0 0
      %2829 = vmatpush.bf16.xpose.msra.mxu0 %v2821
      %2830 = vmatpush.bf16.xpose.msra.mxu0 %v2818
      %2831 = vmatmul.bf16.gmra.mxu0 %v2812
      %v2832 = vpop.f32.mrf.mxu0
      %v2833 = vadd.f32 0.0, %v2832
      %v2834 = vpop.f32.mrf.mxu0
      %v2835 = vadd.f32 0.0, %v2834
      %2836 = vmatmul.bf16.gmra.mxu0 %v2815
      %v2837 = vpop.f32.mrf.mxu0
      %v2838 = vadd.f32 0.0, %v2837
      %v2839 = vpop.f32.mrf.mxu0
      %v2840 = vadd.f32 0.0, %v2839
      %2841 = vdwg.mxu0
      %v2842 = vsel %vm1346, %v2833, -1e+30
      %v2843 = vsel %vm1346, %v2835, -1e+30
      %v2844 = vsel %vm1346, %v2838, -1e+30
      %v2845 = vsel %vm1346, %v2840, -1e+30
      %v2846 = vsel %vm1137, %v2842, -inf
      %2847 = vmax.xlane.f32.xlu0 %v2846
      %v2848 = vpop.xlane.xlu0 %2847
      %v2849 = vsel %vm1137, %v2843, -inf
      %2850 = vmax.xlane.f32.xlu0 %v2849
      %v2851 = vpop.xlane.xlu0 %2850
      %v2852 = vsel %vm1137, %v2844, -inf
      %2853 = vmax.xlane.f32.xlu0 %v2852
      %v2854 = vpop.xlane.xlu0 %2853
      %v2855 = vsel %vm1137, %v2845, -inf
      %2856 = vmax.xlane.f32.xlu0 %v2855
      %v2857 = vpop.xlane.xlu0 %2856
      %v2858 = vsub.f32 %v2842, %v2848
      %v2859 = vsub.f32 %v2843, %v2851
      %v2860 = vsub.f32 %v2844, %v2854
      %v2861 = vsub.f32 %v2845, %v2857
      %v2862 = vmul.f32 %v2858, 1.442695
      %v2863 = vpow.pop %v2862
      %v2864 = vmul.f32 %v2859, 1.442695
      %v2865 = vpow.pop %v2864
      %v2866 = vmul.f32 %v2860, 1.442695
      %v2867 = vpow.pop %v2866
      %v2868 = vmul.f32 %v2861, 1.442695
      %v2869 = vpow.pop %v2868
      %v2870 = vsel %vm1137, %v2863, 0.0
      %2871 = vadd.xlane.f32.xlu0 %v2870
      %v2872 = vpop.xlane.xlu0 %2871
      %v2873 = vsel %vm1137, %v2865, 0.0
      %2874 = vadd.xlane.f32.xlu0 %v2873
      %v2875 = vpop.xlane.xlu0 %2874
      %v2876 = vsel %vm1137, %v2867, 0.0
      %2877 = vadd.xlane.f32.xlu0 %v2876
      %v2878 = vpop.xlane.xlu0 %2877
      %v2879 = vsel %vm1137, %v2869, 0.0
      %2880 = vadd.xlane.f32.xlu0 %v2879
      %v2881 = vpop.xlane.xlu0 %2880
      %v2882 = vrcp.pop %v2872
      %v2883 = vrcp.pop %v2875
      %v2884 = vrcp.pop %v2878
      %v2885 = vrcp.pop %v2881
      %v2886 = vmul.f32 %v2863, %v2882
      %v2887 = vmul.f32 %v2865, %v2883
      %v2888 = vmul.f32 %v2867, %v2884
      %v2889 = vmul.f32 %v2869, %v2885
      %v2890 = vpack.c.bf16 %v2887, %v2886
      %v2891 = vpack.c.bf16 %v2889, %v2888
      %2892 = vrot.lane.b32.xlu0 %v2347, 40
      %v2893 = vpop.permute.xlu0 %2892
      %2894 = vrot.lane.b32.xlu0 %v2348, 40
      %v2895 = vpop.permute.xlu0 %2894
      %v2899 = vsel %vm1137, %v2890, 0
      %v2902 = vsel %vm1137, %v2891, 0
      %2904 = vmatpush.bf16.msra.mxu0 0
      %2905 = vmatpush.bf16.msra.mxu0 0
      %2906 = vmatpush.bf16.msra.mxu0 0
      %2907 = vmatpush.bf16.msra.mxu0 0
      %2908 = vmatpush.bf16.msra.mxu0 0
      %2909 = vmatpush.bf16.msra.mxu0 0
      %2910 = vmatpush.bf16.msra.mxu0 %v2895
      %2911 = vmatpush.bf16.msra.mxu0 %v2893
      %2912 = vmatmul.bf16.gmra.mxu0 %v2899
      %v2913 = vpop.f32.mrf.mxu0
      %v2914 = vadd.f32 0.0, %v2913
      %v2915 = vpop.f32.mrf.mxu0
      %v2916 = vadd.f32 0.0, %v2915
      %2917 = vmatmul.bf16.gmra.mxu0 %v2902
      %v2918 = vpop.f32.mrf.mxu0
      %v2919 = vadd.f32 0.0, %v2918
      %v2920 = vpop.f32.mrf.mxu0
      %v2921 = vadd.f32 0.0, %v2920
      %2922 = vdwg.mxu0
      %v2923 = vpack.c.bf16 %v2916, %v2914
      %v2924 = vpack.c.bf16 %v2921, %v2919
      %v2926 = vsel %vm1313, %v2923, 0
      %v2929 = vsel %vm1313, %v2924, 0
      %v2932 = vsel %vm1560, %v2297, 0
      %2934 = vmatpush.bf16.msra.mxu0 0
      %2935 = vmatpush.bf16.msra.mxu0 0
      %2936 = vmatpush.bf16.msra.mxu0 0
      %2937 = vmatpush.bf16.msra.mxu0 0
      %2938 = vmatpush.bf16.msra.mxu0 0
      %2939 = vmatpush.bf16.msra.mxu0 0
      %2940 = vmatpush.bf16.msra.mxu0 0
      %2941 = vmatpush.bf16.msra.mxu0 %v2932
      %2942 = vmatmul.bf16.gmra.mxu0 %v2926
      %v2943 = vpop.f32.mrf.mxu0
      %v2944 = vadd.f32 0.0, %v2943
      %v2945 = vpop.f32.mrf.mxu0
      %v2946 = vadd.f32 0.0, %v2945
      %2947 = vmatmul.bf16.gmra.mxu0 %v2929
      %v2948 = vpop.f32.mrf.mxu0
      %v2949 = vadd.f32 0.0, %v2948
      %v2950 = vpop.f32.mrf.mxu0
      %v2951 = vadd.f32 0.0, %v2950
      %2952 = vdwg.mxu0
      %v2953 = vadd.f32 %v2799, %v2944
      %v2954 = vadd.f32 %v2800, %v2946
      %v2955 = vadd.f32 %v2801, %v2949
      %v2956 = vadd.f32 %v2802, %v2951
      %v2958 = vperm.slane %v2298, 0
      %v2960 = vadd.f32 %v2953, %v2958
      %v2961 = vadd.f32 %v2954, %v2958
      %v2962 = vadd.f32 %v2955, %v2958
      %v2963 = vadd.f32 %v2956, %v2958
      %v2964 = vadd.f32 %v2181, %v2960
      %v2965 = vadd.f32 %v2182, %v2961
      %v2966 = vadd.f32 %v2183, %v2962
      %v2967 = vadd.f32 %v2184, %v2963
      %v2968 = vld [vmem:[%s43] sm:$0x1]
      %v2969 = vld [vmem:[%s45] sm:$0x1]
      %v2970 = vsel %vm1137, %v2964, 0.0
      %2971 = vadd.xlane.f32.xlu0 %v2970
      %v2972 = vpop.xlane.xlu0 %2971
      %v2973 = vsel %vm1137, %v2965, 0.0
      %2974 = vadd.xlane.f32.xlu0 %v2973
      %v2975 = vpop.xlane.xlu0 %2974
      %v2976 = vsel %vm1137, %v2966, 0.0
      %2977 = vadd.xlane.f32.xlu0 %v2976
      %v2978 = vpop.xlane.xlu0 %2977
      %v2979 = vsel %vm1137, %v2967, 0.0
      %2980 = vadd.xlane.f32.xlu0 %v2979
      %v2981 = vpop.xlane.xlu0 %2980
      %v2982 = vmul.f32 %v2972, %v1156
      %v2983 = vmul.f32 %v2975, %v1156
      %v2984 = vmul.f32 %v2978, %v1156
      %v2985 = vmul.f32 %v2981, %v1156
      %v2986 = vsub.f32 %v2964, %v2982
      %v2987 = vsub.f32 %v2965, %v2983
      %v2988 = vsub.f32 %v2966, %v2984
      %v2989 = vsub.f32 %v2967, %v2985
      %v2990 = vmul.f32 %v2986, %v2986
      %v2991 = vmul.f32 %v2987, %v2987
      %v2992 = vmul.f32 %v2988, %v2988
      %v2993 = vmul.f32 %v2989, %v2989
      %v2994 = vsel %vm1137, %v2990, 0.0
      %2995 = vadd.xlane.f32.xlu0 %v2994
      %v2996 = vpop.xlane.xlu0 %2995
      %v2997 = vsel %vm1137, %v2991, 0.0
      %2998 = vadd.xlane.f32.xlu0 %v2997
      %v2999 = vpop.xlane.xlu0 %2998
      %v3000 = vsel %vm1137, %v2992, 0.0
      %3001 = vadd.xlane.f32.xlu0 %v3000
      %v3002 = vpop.xlane.xlu0 %3001
      %v3003 = vsel %vm1137, %v2993, 0.0
      %3004 = vadd.xlane.f32.xlu0 %v3003
      %v3005 = vpop.xlane.xlu0 %3004
      %v3006 = vmul.f32 %v2996, %v1156
      %v3007 = vmul.f32 %v2999, %v1156
      %v3008 = vmul.f32 %v3002, %v1156
      %v3009 = vmul.f32 %v3005, %v1156
      %v3010 = vadd.f32 %v3006, 1e-06
      %v3011 = vadd.f32 %v3007, 1e-06
      %v3012 = vadd.f32 %v3008, 1e-06
      %v3013 = vadd.f32 %v3009, 1e-06
      %v3014 = vrsqrt.pop %v3010
      %v3015 = vmul.f32 %v3014, %v3010
      %v3016 = vmul.f32 %v3015, %v3014
      %v3017 = vmul.f32 0.5, %v3016
      %v3018 = vsub.f32 1.5, %v3017
      %v3019 = vmul.f32 %v3014, %v3018
      %vm3020 = vweird.f32 %v3010
      %vm3021 = vweird.f32 %v3014
      %vm3022 = vmor %vm3020, %vm3021
      %v3023 = vsel %vm3022, %v3014, %v3019
      %v3024 = vrsqrt.pop %v3011
      %v3025 = vmul.f32 %v3024, %v3011
      %v3026 = vmul.f32 %v3025, %v3024
      %v3027 = vmul.f32 0.5, %v3026
      %v3028 = vsub.f32 1.5, %v3027
      %v3029 = vmul.f32 %v3024, %v3028
      %vm3030 = vweird.f32 %v3011
      %vm3031 = vweird.f32 %v3024
      %vm3032 = vmor %vm3030, %vm3031
      %v3033 = vsel %vm3032, %v3024, %v3029
      %v3034 = vrsqrt.pop %v3012
      %v3035 = vmul.f32 %v3034, %v3012
      %v3036 = vmul.f32 %v3035, %v3034
      %v3037 = vmul.f32 0.5, %v3036
      %v3038 = vsub.f32 1.5, %v3037
      %v3039 = vmul.f32 %v3034, %v3038
      %vm3040 = vweird.f32 %v3012
      %vm3041 = vweird.f32 %v3034
      %vm3042 = vmor %vm3040, %vm3041
      %v3043 = vsel %vm3042, %v3034, %v3039
      %v3044 = vrsqrt.pop %v3013
      %v3045 = vmul.f32 %v3044, %v3013
      %v3046 = vmul.f32 %v3045, %v3044
      %v3047 = vmul.f32 0.5, %v3046
      %v3048 = vsub.f32 1.5, %v3047
      %v3049 = vmul.f32 %v3044, %v3048
      %vm3050 = vweird.f32 %v3013
      %vm3051 = vweird.f32 %v3044
      %vm3052 = vmor %vm3050, %vm3051
      %v3053 = vsel %vm3052, %v3044, %v3049
      %v3054 = vmul.f32 %v2986, %v3023
      %v3055 = vmul.f32 %v2987, %v3033
      %v3056 = vmul.f32 %v2988, %v3043
      %v3057 = vmul.f32 %v2989, %v3053
      %v3059 = vperm.slane %v2968, 0
      %v3061 = vmul.f32 %v3054, %v3059
      %v3062 = vmul.f32 %v3055, %v3059
      %v3063 = vmul.f32 %v3056, %v3059
      %v3064 = vmul.f32 %v3057, %v3059
      %v3066 = vperm.slane %v2969, 0
      %v3068 = vadd.f32 %v3061, %v3066
      %v3069 = vadd.f32 %v3062, %v3066
      %v3070 = vadd.f32 %v3063, %v3066
      %v3071 = vadd.f32 %v3064, %v3066
      %v3072 = vld [vmem:[%s47] sm:$0xf]
      %v3073 = vld [vmem:[%s47 + $0x4] sm:$0xf]
      %v3074 = vld [vmem:[%s47 + $0x8] sm:$0xf]
      %v3075 = vld [vmem:[%s47 + $0xc] sm:$0xf]
      %v3076 = vld [vmem:[%s49] sm:$0x1]
      %v3077 = vpack.c.bf16 %v3069, %v3068
      %v3078 = vpack.c.bf16 %v3071, %v3070
      %v3080 = vperm.slane %v3076, 0
      %v3086 = vunpack.c.l.b16 %v3072
      %v3087 = vunpack.c.l.b16 %v3073
      %v3088 = vunpack.c.l.b16 %v3074
      %v3089 = vunpack.c.l.b16 %v3075
      %v3090 = vpack.c.b16 %v3087, %v3086
      %v3091 = vpack.c.b16 %v3089, %v3088
      %v3095 = vsel %vm1137, %v3077, 0
      %v3098 = vsel %vm1137, %v3078, 0
      %3100 = vmatpush.bf16.msra.mxu0 0
      %3101 = vmatpush.bf16.msra.mxu0 0
      %3102 = vmatpush.bf16.msra.mxu0 0
      %3103 = vmatpush.bf16.msra.mxu0 0
      %3104 = vmatpush.bf16.msra.mxu0 0
      %3105 = vmatpush.bf16.msra.mxu0 0
      %3106 = vmatpush.bf16.msra.mxu0 %v3091
      %3107 = vmatpush.bf16.msra.mxu0 %v3090
      %3108 = vmatmul.bf16.gmra.mxu0 %v3095
      %v3109 = vpop.f32.mrf.mxu0
      %v3110 = vadd.f32 %v3080, %v3109
      %v3111 = vpop.f32.mrf.mxu0
      %v3112 = vadd.f32 %v3080, %v3111
      %3113 = vmatmul.bf16.gmra.mxu0 %v3098
      %v3114 = vpop.f32.mrf.mxu0
      %v3115 = vadd.f32 %v3080, %v3114
      %v3116 = vpop.f32.mrf.mxu0
      %v3117 = vadd.f32 %v3080, %v3116
      %3118 = vdwg.mxu0
      %v3119 = vmul.f32 %v3110, 0.5
      %v3120 = vmul.f32 %v3112, 0.5
      %v3121 = vmul.f32 %v3115, 0.5
      %v3122 = vmul.f32 %v3117, 0.5
      %v3123 = vmul.f32 %v3110, 0.044715
      %v3124 = vmul.f32 %v3112, 0.044715
      %v3125 = vmul.f32 %v3115, 0.044715
      %v3126 = vmul.f32 %v3117, 0.044715
      %v3127 = vmul.f32 %v3123, %v3110
      %v3128 = vmul.f32 %v3124, %v3112
      %v3129 = vmul.f32 %v3125, %v3115
      %v3130 = vmul.f32 %v3126, %v3117
      %v3131 = vmul.f32 %v3127, %v3110
      %v3132 = vmul.f32 %v3128, %v3112
      %v3133 = vmul.f32 %v3129, %v3115
      %v3134 = vmul.f32 %v3130, %v3117
      %v3135 = vadd.f32 %v3110, %v3131
      %v3136 = vadd.f32 %v3112, %v3132
      %v3137 = vadd.f32 %v3115, %v3133
      %v3138 = vadd.f32 %v3117, %v3134
      %v3139 = vmul.f32 %v3135, 0.7978846
      %v3140 = vmul.f32 %v3136, 0.7978846
      %v3141 = vmul.f32 %v3137, 0.7978846
      %v3142 = vmul.f32 %v3138, 0.7978846
      %v3143 = vtanh.pop %v3139
      %v3144 = vtanh.pop %v3140
      %v3145 = vtanh.pop %v3141
      %v3146 = vtanh.pop %v3142
      %v3147 = vadd.f32 %v3143, 1.0
      %v3148 = vadd.f32 %v3144, 1.0
      %v3149 = vadd.f32 %v3145, 1.0
      %v3150 = vadd.f32 %v3146, 1.0
      %v3151 = vmul.f32 %v3119, %v3147
      %v3152 = vmul.f32 %v3120, %v3148
      %v3153 = vmul.f32 %v3121, %v3149
      %v3154 = vmul.f32 %v3122, %v3150
      %v3155 = vld [vmem:[%s51] sm:$0xf]
      %v3156 = vld [vmem:[%s51 + $0x4] sm:$0xf]
      %v3157 = vld [vmem:[%s51 + $0x8] sm:$0xf]
      %v3158 = vld [vmem:[%s51 + $0xc] sm:$0xf]
      %v3159 = vld [vmem:[%s51 + $0x10] sm:$0xf]
      %v3160 = vld [vmem:[%s51 + $0x14] sm:$0xf]
      %v3161 = vld [vmem:[%s51 + $0x18] sm:$0xf]
      %v3162 = vld [vmem:[%s51 + $0x1c] sm:$0xf]
      %v3163 = vld [vmem:[%s53] sm:$0x1]
      %v3164 = vpack.c.bf16 %v3152, %v3151
      %v3165 = vpack.c.bf16 %v3154, %v3153
      %v3167 = vperm.slane %v3163, 0
      %v3177 = vunpack.c.l.b16 %v3155
      %v3178 = vunpack.c.l.b16 %v3156
      %v3179 = vunpack.c.l.b16 %v3157
      %v3180 = vunpack.c.l.b16 %v3158
      %v3181 = vunpack.c.l.b16 %v3159
      %v3182 = vunpack.c.l.b16 %v3160
      %v3183 = vunpack.c.l.b16 %v3161
      %v3184 = vunpack.c.l.b16 %v3162
      %v3185 = vpack.c.b16 %v3178, %v3177
      %v3186 = vpack.c.b16 %v3180, %v3179
      %v3187 = vpack.c.b16 %v3182, %v3181
      %v3188 = vpack.c.b16 %v3184, %v3183
      %v3194 = vsel %vm2155, %v3164, 0
      %v3197 = vsel %vm2155, %v3165, 0
      %3199 = vmatpush.bf16.msra.mxu0 0
      %3200 = vmatpush.bf16.msra.mxu0 0
      %3201 = vmatpush.bf16.msra.mxu0 0
      %3202 = vmatpush.bf16.msra.mxu0 0
      %3203 = vmatpush.bf16.msra.mxu0 %v3188
      %3204 = vmatpush.bf16.msra.mxu0 %v3187
      %3205 = vmatpush.bf16.msra.mxu0 %v3186
      %3206 = vmatpush.bf16.msra.mxu0 %v3185
      %3207 = vmatmul.bf16.gmra.mxu0 %v3194
      %v3208 = vpop.f32.mrf.mxu0
      %v3209 = vadd.f32 %v3167, %v3208
      %v3210 = vpop.f32.mrf.mxu0
      %v3211 = vadd.f32 %v3167, %v3210
      %3212 = vmatmul.bf16.gmra.mxu0 %v3197
      %v3213 = vpop.f32.mrf.mxu0
      %v3214 = vadd.f32 %v3167, %v3213
      %v3215 = vpop.f32.mrf.mxu0
      %v3216 = vadd.f32 %v3167, %v3215
      %3217 = vdwg.mxu0
      %v3218 = vadd.f32 %v2964, %v3209
      %v3219 = vadd.f32 %v2965, %v3211
      %v3220 = vadd.f32 %v2966, %v3214
      %v3221 = vadd.f32 %v2967, %v3216
      %v3222 = vld [vmem:[%s55] sm:$0x1]
      %v3223 = vld [vmem:[%s57] sm:$0x1]
      %v3224 = vsel %vm1137, %v3218, 0.0
      %3225 = vadd.xlane.f32.xlu0 %v3224
      %v3226 = vpop.xlane.xlu0 %3225
      %v3227 = vsel %vm1137, %v3219, 0.0
      %3228 = vadd.xlane.f32.xlu0 %v3227
      %v3229 = vpop.xlane.xlu0 %3228
      %v3230 = vsel %vm1137, %v3220, 0.0
      %3231 = vadd.xlane.f32.xlu0 %v3230
      %v3232 = vpop.xlane.xlu0 %3231
      %v3233 = vsel %vm1137, %v3221, 0.0
      %3234 = vadd.xlane.f32.xlu0 %v3233
      %v3235 = vpop.xlane.xlu0 %3234
      %v3236 = vmul.f32 %v3226, %v1156
      %v3237 = vmul.f32 %v3229, %v1156
      %v3238 = vmul.f32 %v3232, %v1156
      %v3239 = vmul.f32 %v3235, %v1156
      %v3240 = vsub.f32 %v3218, %v3236
      %v3241 = vsub.f32 %v3219, %v3237
      %v3242 = vsub.f32 %v3220, %v3238
      %v3243 = vsub.f32 %v3221, %v3239
      %v3244 = vmul.f32 %v3240, %v3240
      %v3245 = vmul.f32 %v3241, %v3241
      %v3246 = vmul.f32 %v3242, %v3242
      %v3247 = vmul.f32 %v3243, %v3243
      %v3248 = vsel %vm1137, %v3244, 0.0
      %3249 = vadd.xlane.f32.xlu0 %v3248
      %v3250 = vpop.xlane.xlu0 %3249
      %v3251 = vsel %vm1137, %v3245, 0.0
      %3252 = vadd.xlane.f32.xlu0 %v3251
      %v3253 = vpop.xlane.xlu0 %3252
      %v3254 = vsel %vm1137, %v3246, 0.0
      %3255 = vadd.xlane.f32.xlu0 %v3254
      %v3256 = vpop.xlane.xlu0 %3255
      %v3257 = vsel %vm1137, %v3247, 0.0
      %3258 = vadd.xlane.f32.xlu0 %v3257
      %v3259 = vpop.xlane.xlu0 %3258
      %v3260 = vmul.f32 %v3250, %v1156
      %v3261 = vmul.f32 %v3253, %v1156
      %v3262 = vmul.f32 %v3256, %v1156
      %v3263 = vmul.f32 %v3259, %v1156
      %v3264 = vadd.f32 %v3260, 1e-06
      %v3265 = vadd.f32 %v3261, 1e-06
      %v3266 = vadd.f32 %v3262, 1e-06
      %v3267 = vadd.f32 %v3263, 1e-06
      %v3268 = vrsqrt.pop %v3264
      %v3269 = vmul.f32 %v3268, %v3264
      %v3270 = vmul.f32 %v3269, %v3268
      %v3271 = vmul.f32 0.5, %v3270
      %v3272 = vsub.f32 1.5, %v3271
      %v3273 = vmul.f32 %v3268, %v3272
      %vm3274 = vweird.f32 %v3264
      %vm3275 = vweird.f32 %v3268
      %vm3276 = vmor %vm3274, %vm3275
      %v3277 = vsel %vm3276, %v3268, %v3273
      %v3278 = vrsqrt.pop %v3265
      %v3279 = vmul.f32 %v3278, %v3265
      %v3280 = vmul.f32 %v3279, %v3278
      %v3281 = vmul.f32 0.5, %v3280
      %v3282 = vsub.f32 1.5, %v3281
      %v3283 = vmul.f32 %v3278, %v3282
      %vm3284 = vweird.f32 %v3265
      %vm3285 = vweird.f32 %v3278
      %vm3286 = vmor %vm3284, %vm3285
      %v3287 = vsel %vm3286, %v3278, %v3283
      %v3288 = vrsqrt.pop %v3266
      %v3289 = vmul.f32 %v3288, %v3266
      %v3290 = vmul.f32 %v3289, %v3288
      %v3291 = vmul.f32 0.5, %v3290
      %v3292 = vsub.f32 1.5, %v3291
      %v3293 = vmul.f32 %v3288, %v3292
      %vm3294 = vweird.f32 %v3266
      %vm3295 = vweird.f32 %v3288
      %vm3296 = vmor %vm3294, %vm3295
      %v3297 = vsel %vm3296, %v3288, %v3293
      %v3298 = vrsqrt.pop %v3267
      %v3299 = vmul.f32 %v3298, %v3267
      %v3300 = vmul.f32 %v3299, %v3298
      %v3301 = vmul.f32 0.5, %v3300
      %v3302 = vsub.f32 1.5, %v3301
      %v3303 = vmul.f32 %v3298, %v3302
      %vm3304 = vweird.f32 %v3267
      %vm3305 = vweird.f32 %v3298
      %vm3306 = vmor %vm3304, %vm3305
      %v3307 = vsel %vm3306, %v3298, %v3303
      %v3308 = vmul.f32 %v3240, %v3277
      %v3309 = vmul.f32 %v3241, %v3287
      %v3310 = vmul.f32 %v3242, %v3297
      %v3311 = vmul.f32 %v3243, %v3307
      %v3313 = vperm.slane %v3222, 0
      %v3315 = vmul.f32 %v3308, %v3313
      %v3316 = vmul.f32 %v3309, %v3313
      %v3317 = vmul.f32 %v3310, %v3313
      %v3318 = vmul.f32 %v3311, %v3313
      %v3320 = vperm.slane %v3223, 0
      %v3322 = vadd.f32 %v3315, %v3320
      %v3323 = vadd.f32 %v3316, %v3320
      %v3324 = vadd.f32 %v3317, %v3320
      %v3325 = vadd.f32 %v3318, %v3320
      %v3326 = vld [vmem:[%s59] sm:$0xf]
      %v3327 = vld [vmem:[%s59 + $0x4] sm:$0xf]
      %v3328 = vld [vmem:[%s59 + $0x8] sm:$0xf]
      %v3329 = vld [vmem:[%s59 + $0xc] sm:$0xf]
      %v3330 = vld [vmem:[%s61] sm:$0x1]
      %v3331 = vpack.c.bf16 %v3323, %v3322
      %v3332 = vpack.c.bf16 %v3325, %v3324
      %v3334 = vperm.slane %v3330, 0
      %v3340 = vunpack.c.l.b16 %v3326
      %v3341 = vunpack.c.l.b16 %v3327
      %v3342 = vunpack.c.l.b16 %v3328
      %v3343 = vunpack.c.l.b16 %v3329
      %v3344 = vpack.c.b16 %v3341, %v3340
      %v3345 = vpack.c.b16 %v3343, %v3342
      %v3349 = vsel %vm1137, %v3331, 0
      %v3352 = vsel %vm1137, %v3332, 0
      %3354 = vmatpush.bf16.msra.mxu0 0
      %3355 = vmatpush.bf16.msra.mxu0 0
      %3356 = vmatpush.bf16.msra.mxu0 0
      %3357 = vmatpush.bf16.msra.mxu0 0
      %3358 = vmatpush.bf16.msra.mxu0 0
      %3359 = vmatpush.bf16.msra.mxu0 0
      %3360 = vmatpush.bf16.msra.mxu0 %v3345
      %3361 = vmatpush.bf16.msra.mxu0 %v3344
      %3362 = vmatmul.bf16.gmra.mxu0 %v3349
      %v3363 = vpop.f32.mrf.mxu0
      %v3364 = vadd.f32 %v3334, %v3363
      %v3365 = vpop.f32.mrf.mxu0
      %v3366 = vadd.f32 %v3334, %v3365
      %3367 = vmatmul.bf16.gmra.mxu0 %v3352
      %v3368 = vpop.f32.mrf.mxu0
      %v3369 = vadd.f32 %v3334, %v3368
      %v3370 = vpop.f32.mrf.mxu0
      %v3371 = vadd.f32 %v3334, %v3370
      %3372 = vdwg.mxu0
      %v3373 = vmul.f32 %v3364, 0.5
      %v3374 = vmul.f32 %v3366, 0.5
      %v3375 = vmul.f32 %v3369, 0.5
      %v3376 = vmul.f32 %v3371, 0.5
      %v3377 = vmul.f32 %v3364, 0.044715
      %v3378 = vmul.f32 %v3366, 0.044715
      %v3379 = vmul.f32 %v3369, 0.044715
      %v3380 = vmul.f32 %v3371, 0.044715
      %v3381 = vmul.f32 %v3377, %v3364
      %v3382 = vmul.f32 %v3378, %v3366
      %v3383 = vmul.f32 %v3379, %v3369
      %v3384 = vmul.f32 %v3380, %v3371
      %v3385 = vmul.f32 %v3381, %v3364
      %v3386 = vmul.f32 %v3382, %v3366
      %v3387 = vmul.f32 %v3383, %v3369
      %v3388 = vmul.f32 %v3384, %v3371
      %v3389 = vadd.f32 %v3364, %v3385
      %v3390 = vadd.f32 %v3366, %v3386
      %v3391 = vadd.f32 %v3369, %v3387
      %v3392 = vadd.f32 %v3371, %v3388
      %v3393 = vmul.f32 %v3389, 0.7978846
      %v3394 = vmul.f32 %v3390, 0.7978846
      %v3395 = vmul.f32 %v3391, 0.7978846
      %v3396 = vmul.f32 %v3392, 0.7978846
      %v3397 = vtanh.pop %v3393
      %v3398 = vtanh.pop %v3394
      %v3399 = vtanh.pop %v3395
      %v3400 = vtanh.pop %v3396
      %v3401 = vadd.f32 %v3397, 1.0
      %v3402 = vadd.f32 %v3398, 1.0
      %v3403 = vadd.f32 %v3399, 1.0
      %v3404 = vadd.f32 %v3400, 1.0
      %v3405 = vmul.f32 %v3373, %v3401
      %v3406 = vmul.f32 %v3374, %v3402
      %v3407 = vmul.f32 %v3375, %v3403
      %v3408 = vmul.f32 %v3376, %v3404
      %v3409 = vld [vmem:[%s63] sm:$0xf]
      %v3410 = vld [vmem:[%s63 + $0x4] sm:$0xf]
      %v3411 = vld [vmem:[%s63 + $0x8] sm:$0xf]
      %v3412 = vld [vmem:[%s63 + $0xc] sm:$0xf]
      %v3413 = vld [vmem:[%s65] sm:$0x1]
      %v3414 = vpack.c.bf16 %v3406, %v3405
      %v3415 = vpack.c.bf16 %v3408, %v3407
      %v3417 = vperm.slane %v3413, 0
      %v3423 = vunpack.c.l.b16 %v3409
      %v3424 = vunpack.c.l.b16 %v3410
      %v3425 = vunpack.c.l.b16 %v3411
      %v3426 = vunpack.c.l.b16 %v3412
      %v3427 = vpack.c.b16 %v3424, %v3423
      %v3428 = vpack.c.b16 %v3426, %v3425
      %v3432 = vsel %vm1137, %v3414, 0
      %v3435 = vsel %vm1137, %v3415, 0
      %3437 = vmatpush.bf16.msra.mxu0 0
      %3438 = vmatpush.bf16.msra.mxu0 0
      %3439 = vmatpush.bf16.msra.mxu0 0
      %3440 = vmatpush.bf16.msra.mxu0 0
      %3441 = vmatpush.bf16.msra.mxu0 0
      %3442 = vmatpush.bf16.msra.mxu0 0
      %3443 = vmatpush.bf16.msra.mxu0 %v3428
      %3444 = vmatpush.bf16.msra.mxu0 %v3427
      %3445 = vmatmul.bf16.gmra.mxu0 %v3432
      %v3446 = vpop.f32.mrf.mxu0
      %v3447 = vadd.f32 %v3417, %v3446
      %v3448 = vpop.f32.mrf.mxu0
      %v3449 = vadd.f32 %v3417, %v3448
      %3450 = vmatmul.bf16.gmra.mxu0 %v3435
      %v3451 = vpop.f32.mrf.mxu0
      %v3452 = vadd.f32 %v3417, %v3451
      %v3453 = vpop.f32.mrf.mxu0
      %3454 = vdwg.mxu0
      %v3455 = vld [vmem:[%s67] sm:$0x1]
      %v3456 = vld [vmem:[%s69] sm:$0x1]
      %v3457 = vsel %vm1137, %v3447, 0.0
      %3458 = vadd.xlane.f32.xlu0 %v3457
      %v3459 = vpop.xlane.xlu0 %3458
      %v3460 = vsel %vm1137, %v3449, 0.0
      %3461 = vadd.xlane.f32.xlu0 %v3460
      %v3462 = vpop.xlane.xlu0 %3461
      %v3463 = vsel %vm1137, %v3452, 0.0
      %3464 = vadd.xlane.f32.xlu0 %v3463
      %v3465 = vpop.xlane.xlu0 %3464
      %v3466 = vmul.f32 %v3459, %v1156
      %v3467 = vmul.f32 %v3462, %v1156
      %v3468 = vmul.f32 %v3465, %v1156
      %v3469 = vsub.f32 %v3447, %v3466
      %v3470 = vsub.f32 %v3449, %v3467
      %v3471 = vsub.f32 %v3452, %v3468
      %v3472 = vmul.f32 %v3469, %v3469
      %v3473 = vmul.f32 %v3470, %v3470
      %v3474 = vmul.f32 %v3471, %v3471
      %v3475 = vsel %vm1137, %v3472, 0.0
      %3476 = vadd.xlane.f32.xlu0 %v3475
      %v3477 = vpop.xlane.xlu0 %3476
      %v3478 = vsel %vm1137, %v3473, 0.0
      %3479 = vadd.xlane.f32.xlu0 %v3478
      %v3480 = vpop.xlane.xlu0 %3479
      %v3481 = vsel %vm1137, %v3474, 0.0
      %3482 = vadd.xlane.f32.xlu0 %v3481
      %v3483 = vpop.xlane.xlu0 %3482
      %v3484 = vmul.f32 %v3477, %v1156
      %v3485 = vmul.f32 %v3480, %v1156
      %v3486 = vmul.f32 %v3483, %v1156
      %v3487 = vadd.f32 %v3484, 1e-05
      %v3488 = vadd.f32 %v3485, 1e-05
      %v3489 = vadd.f32 %v3486, 1e-05
      %v3490 = vrsqrt.pop %v3487
      %v3491 = vmul.f32 %v3490, %v3487
      %v3492 = vmul.f32 %v3491, %v3490
      %v3493 = vmul.f32 0.5, %v3492
      %v3494 = vsub.f32 1.5, %v3493
      %v3495 = vmul.f32 %v3490, %v3494
      %vm3496 = vweird.f32 %v3487
      %vm3497 = vweird.f32 %v3490
      %vm3498 = vmor %vm3496, %vm3497
      %v3499 = vsel %vm3498, %v3490, %v3495
      %v3500 = vrsqrt.pop %v3488
      %v3501 = vmul.f32 %v3500, %v3488
      %v3502 = vmul.f32 %v3501, %v3500
      %v3503 = vmul.f32 0.5, %v3502
      %v3504 = vsub.f32 1.5, %v3503
      %v3505 = vmul.f32 %v3500, %v3504
      %vm3506 = vweird.f32 %v3488
      %vm3507 = vweird.f32 %v3500
      %vm3508 = vmor %vm3506, %vm3507
      %v3509 = vsel %vm3508, %v3500, %v3505
      %v3510 = vrsqrt.pop %v3489
      %v3511 = vmul.f32 %v3510, %v3489
      %v3512 = vmul.f32 %v3511, %v3510
      %v3513 = vmul.f32 0.5, %v3512
      %v3514 = vsub.f32 1.5, %v3513
      %v3515 = vmul.f32 %v3510, %v3514
      %vm3516 = vweird.f32 %v3489
      %vm3517 = vweird.f32 %v3510
      %vm3518 = vmor %vm3516, %vm3517
      %v3519 = vsel %vm3518, %v3510, %v3515
      %v3520 = vmul.f32 %v3469, %v3499
      %v3521 = vmul.f32 %v3470, %v3509
      %v3522 = vmul.f32 %v3471, %v3519
      %v3524 = vperm.slane %v3455, 0
      %v3526 = vmul.f32 %v3520, %v3524
      %v3527 = vmul.f32 %v3521, %v3524
      %v3528 = vmul.f32 %v3522, %v3524
      %v3530 = vperm.slane %v3456, 0
      %v3532 = vadd.f32 %v3526, %v3530
      %v3533 = vadd.f32 %v3527, %v3530
      %v3534 = vadd.f32 %v3528, %v3530
      %3535 = vst.msk [vmem:[%s1070] sm:$0xff] %vm1137, %v3532
      %3536 = vst.msk [vmem:[%s1070 + $0x8] sm:$0xff] %vm1137, %v3533
      %vm3537 = vcmask 253952
      %3538 = vst.msk [vmem:[%s1070 + $0x10] sm:$0x1] %vm3537, %v3534
      %p3539 = scmp.lt.s32.totalorder %s82, 1
      %s3540 = scalar_select %p3539, %s82, 1
      %s3541 = smul.addr %s3540, 3
      %s3542 = smul.addr %s3541, 8
      %s3543 = scalar_lea.vmem %s71, %s3542
      // Predicated region
      $region161: #{image_encoder_forward.1} parent=159 // pred_check
        %p3544 = pneg %p840
      $region162: #{image_encoder_forward.1} parent=159 // pred_check_branch
        %3546 = sbr.rel (%p3544) target = $region164
      $region163: #{image_encoder_forward.1} parent=159 // pred_region
        _
      $region164: #{image_encoder_forward.1} parent=159 // pred_fallthru
        _
    $region160: #{image_encoder_forward.1} parent=5 // pred_fallthru
      _
    %p3547 = scmp.le.s32.totalorder 2, %s77
    // Predicated region
    $region165: #{image_encoder_forward.1} parent=5 // pred_check
      %p3548 = pneg %p3547
    $region166: #{image_encoder_forward.1} parent=5 // pred_check_branch
      %3550 = sbr.rel (%p3548) target = $region168
    $region167: #{image_encoder_forward.1} parent=5 // pred_region
      %s3551 = ssub.s32 %s77, 2
      // Predicated region
      $region169: #{image_encoder_forward.1} parent=167 // pred_check
        %p3552 = pneg %p846
      $region170: #{image_encoder_forward.1} parent=167 // pred_check_branch
        %3554 = sbr.rel (%p3552) target = $region172
      $region171: #{image_encoder_forward.1} parent=167 // pred_region
        %p3555 = scmp.lt.s32.totalorder %s83, 1
        %s3556 = scalar_select %p3555, %s83, 1
        %s3557 = smul.addr %s3556, 3
        %s3558 = smul.addr %s3557, 8
        %s3559 = scalar_lea.vmem %s71, %s3558
      $region172: #{image_encoder_forward.1} parent=167 // pred_fallthru
        _
    $region168: #{image_encoder_forward.1} parent=5 // pred_fallthru
      _
  $region6: #{image_encoder_forward.1} parent=0 // loop_footer
    %s81 = sadd.s32 1, %s77
  $region7: #{image_encoder_forward.1} parent=0 // loop_footer_branch
    %76 = sbr.rel target = $region3
  $region8: #{image_encoder_forward.1} parent=0 // loop_exit
    _

</llo_original>
